<compile_context>
chip_gen: v7x
topology: tpu7x:2x2x1
jax: 0.10.0
libtpu: 0.0.40
codegen_flags: <defaults>
</compile_context>

<pallas_src>
import functools

import jax
import jax.numpy as jnp
from jax import lax
from jax.experimental import pallas as pl
from jax.experimental.pallas import tpu as pltpu

_BN_EPS = 1e-5


def _round_up(x, m):
    return (x + m - 1) // m * m


def _vmem_limit_bytes():
    # ~75% of physical VMEM, capped: v5e/v6e (128 MiB) -> 96 MiB, v7x (64 MiB)
    # -> 48 MiB.  Conservative fallback if the query is unavailable.
    try:
        cap = pltpu.get_tpu_info().vmem_capacity_bytes
        return int(min(cap * 3 // 4, 100 * 1024 * 1024))
    except Exception:
        return 48 * 1024 * 1024


_VMEM_LIMIT = _vmem_limit_bytes()
# One copy of XWs must fit here for the VMEM-resident aggregate path
# (counted x2 for pipeline buffering when budgeting).
_XWS_RESIDENT_BUDGET = min(_VMEM_LIMIT // 4, 12 * 1024 * 1024)


def _choose_tiling(n):
    """(tile_m, tile_k, n_pad): decoupled row / contraction tiles for the
    adjacency.  n_pad divides by both and gives an EVEN row-tile count so the
    'parallel' grid axis load-balances across both v7x TensorCores."""
    if n >= 4096:
        tm, tk = 256, 1024
    elif n >= 1024:
        tm, tk = 256, 512
    elif n >= 256:
        tm, tk = 128, 256
    else:
        tm, tk = 128, 128
    n_pad = _round_up(n, max(2 * tm, tk))
    return tm, tk, n_pad


# -----------------------------------------------------------------------------
# Degree kernel (the "dispersion_norm" re-weighting, computed ONCE per forward).
# TODO(synk): exact `dispersion_norm(x, adj_t, k_hop_nbrs)` source is not
# available; we use the standard symmetric GCN normalization with self-loops
# D^{-1/2}(A+I)D^{-1/2}. It does not depend on x / k_hop_nbrs, so it is hoisted
# out of the layer loop and only the degree vector is materialized.  Since the
# graph is symmetric, row degrees == column degrees -> a single pass suffices.
# -----------------------------------------------------------------------------
def _degree_kernel(adj_ref, d_ref, acc_ref):
    @pl.when(pl.program_id(1) == 0)
    def _():
        acc_ref[...] = jnp.zeros_like(acc_ref)

    acc_ref[...] += jnp.sum(adj_ref[...].astype(jnp.float32), axis=1,
                            keepdims=True)

    @pl.when(pl.program_id(1) == pl.num_programs(1) - 1)
    def _():
        # +1.0 accounts for the self-loop -> degree >= 1, rsqrt is safe.
        d_ref[...] = lax.rsqrt(acc_ref[...] + 1.0)


def degree_isqrt(adj_i8, tile_m, tile_k):
    """Returns d = (deg + 1)^{-1/2} of shape (N, 1), f32."""
    n = adj_i8.shape[0]
    return pl.pallas_call(
        _degree_kernel,
        grid_spec=pltpu.PrefetchScalarGridSpec(
            num_scalar_prefetch=0, grid=(n // tile_m, n // tile_k),
            in_specs=[pl.BlockSpec((tile_m, tile_k), lambda i, j: (i, j))],
            out_specs=pl.BlockSpec((tile_m, 1), lambda i, j: (i, 0)),
            scratch_shapes=[pltpu.VMEM((tile_m, 1), jnp.float32)]),
        out_shape=jax.ShapeDtypeStruct((n, 1), jnp.float32),
        compiler_params=pltpu.CompilerParams(
            dimension_semantics=("parallel", "arbitrary"),
            vmem_limit_bytes=_VMEM_LIMIT),
    )(adj_i8)


# -----------------------------------------------------------------------------
# Kernel: feature transform  XWs = d * (X @ W)
# Row-tiled over nodes, K-tiled over f_in (f32 VMEM accumulator), W resident.
# -----------------------------------------------------------------------------
def _transform_kernel(x_ref, w_ref, d_ref, o_ref, acc_ref, *, tile_kf):
    k = pl.program_id(1)

    @pl.when(k == 0)
    def _():
        acc_ref[...] = jnp.zeros_like(acc_ref)

    off = pl.multiple_of(k * tile_kf, tile_kf)
    acc_ref[...] += jnp.dot(x_ref[...], w_ref[pl.ds(off, tile_kf), :],
                            preferred_element_type=jnp.float32)

    @pl.when(k == pl.num_programs(1) - 1)
    def _():
        o_ref[...] = (d_ref[...] * acc_ref[...]).astype(o_ref.dtype)


def transform(x_bf16, w_bf16, d_col, tile_m):
    n, f_in = x_bf16.shape
    f_out = w_bf16.shape[1]
    tile_kf = 512 if f_in % 512 == 0 else (256 if f_in % 256 == 0 else 128)
    tile_kf = min(tile_kf, f_in)
    kernel = functools.partial(_transform_kernel, tile_kf=tile_kf)
    return pl.pallas_call(
        kernel,
        grid_spec=pltpu.PrefetchScalarGridSpec(
            num_scalar_prefetch=0, grid=(n // tile_m, f_in // tile_kf),
            in_specs=[pl.BlockSpec((tile_m, tile_kf), lambda i, k: (i, k)),
                      pl.BlockSpec((f_in, f_out), lambda i, k: (0, 0)),  # W resident
                      pl.BlockSpec((tile_m, 1), lambda i, k: (i, 0))],
            out_specs=pl.BlockSpec((tile_m, f_out), lambda i, k: (i, 0)),
            scratch_shapes=[pltpu.VMEM((tile_m, f_out), jnp.float32)]),
        out_shape=jax.ShapeDtypeStruct((n, f_out), jnp.bfloat16),
        compiler_params=pltpu.CompilerParams(
            dimension_semantics=("parallel", "arbitrary"),
            vmem_limit_bytes=_VMEM_LIMIT),
    )(x_bf16, w_bf16, d_col)


# -----------------------------------------------------------------------------
# Kernel: aggregation  out = d * (A @ XWs + XWs) + b  [+ BN/ReLU | log_softmax]
# grid = (row_tiles, k_tiles); int8 adjacency upcast in-kernel; XWs either
# fully VMEM-resident (sliced by k) or k-blocked; epilogue fused at last K.
# -----------------------------------------------------------------------------
def _aggregate_kernel(*refs, xws_resident, tile_k, apply_bn, apply_relu,
                      apply_log_softmax, valid_cols):
    if apply_bn:
        (adj_ref, xws_ref, xself_ref, d_ref, b_ref, scale_ref, shift_ref,
         o_ref, acc_ref) = refs
    else:
        adj_ref, xws_ref, xself_ref, d_ref, b_ref, o_ref, acc_ref = refs
        scale_ref = shift_ref = None

    k = pl.program_id(1)

    @pl.when(k == 0)
    def _():
        acc_ref[...] = jnp.zeros_like(acc_ref)

    if xws_resident:
        off = pl.multiple_of(k * tile_k, tile_k)
        xws_blk = xws_ref[pl.ds(off, tile_k), :]
    else:
        xws_blk = xws_ref[...]

    # Adjacency lives in HBM as int8 (1 byte/entry); upcast on the VPU right
    # before the bf16 MXU dot (hidden under the adjacency DMA).
    adj_blk = adj_ref[...].astype(jnp.float32).astype(jnp.bfloat16)
    acc_ref[...] += jnp.dot(adj_blk, xws_blk,
                            preferred_element_type=jnp.float32)

    @pl.when(k == pl.num_programs(1) - 1)
    def _():
        # Self-loop (A + I): add this row tile's own XWs, then row-scale + bias.
        h = d_ref[...] * (acc_ref[...] + xself_ref[...].astype(jnp.float32))
        h = h + b_ref[...]
        if apply_bn:
            h = h * scale_ref[...] + shift_ref[...]   # folded eval BatchNorm1d
        if apply_relu:
            h = jnp.maximum(h, 0.0)                   # dropout = identity (eval)
        if apply_log_softmax:
            cols = lax.broadcasted_iota(jnp.int32, h.shape, 1)
            h = jnp.where(cols < valid_cols, h, jnp.float32(-1e30))
            m = jnp.max(h, axis=-1, keepdims=True)
            s = h - m
            lse = jnp.log(jnp.sum(jnp.exp(s), axis=-1, keepdims=True))
            h = s - lse
        o_ref[...] = h.astype(o_ref.dtype)


def aggregate(adj_i8, xws_bf16, d, bias, bn_scale=None, bn_shift=None, *,
              tile_m, tile_k, apply_bn, apply_relu, apply_log_softmax,
              valid_cols, out_dtype, xws_resident=None):
    n = adj_i8.shape[0]
    f_out = xws_bf16.shape[1]
    if xws_resident is None:
        xws_resident = (n * f_out * 2 <= _XWS_RESIDENT_BUDGET)

    vec_spec = pl.BlockSpec((1, f_out), lambda i, k: (0, 0))      # resident consts
    if xws_resident:
        xws_spec = pl.BlockSpec((n, f_out), lambda i, k: (0, 0))  # VMEM-resident
    else:
        xws_spec = pl.BlockSpec((tile_k, f_out), lambda i, k: (k, 0))

    in_specs = [pl.BlockSpec((tile_m, tile_k), lambda i, k: (i, k)),  # adj (int8)
                xws_spec,
                pl.BlockSpec((tile_m, f_out), lambda i, k: (i, 0)),   # self rows
                pl.BlockSpec((tile_m, 1), lambda i, k: (i, 0)),       # degree
                vec_spec]                                             # bias
    args = [adj_i8, xws_bf16, xws_bf16, d, bias]
    if apply_bn:
        in_specs += [vec_spec, vec_spec]
        args += [bn_scale, bn_shift]

    kernel = functools.partial(
        _aggregate_kernel, xws_resident=xws_resident, tile_k=tile_k,
        apply_bn=apply_bn, apply_relu=apply_relu,
        apply_log_softmax=apply_log_softmax, valid_cols=valid_cols)
    return pl.pallas_call(
        kernel,
        grid_spec=pltpu.PrefetchScalarGridSpec(
            num_scalar_prefetch=0, grid=(n // tile_m, n // tile_k),
            in_specs=in_specs,
            out_specs=pl.BlockSpec((tile_m, f_out), lambda i, k: (i, 0)),
            scratch_shapes=[pltpu.VMEM((tile_m, f_out), jnp.float32)]),
        out_shape=jax.ShapeDtypeStruct((n, f_out), out_dtype),
        compiler_params=pltpu.CompilerParams(
            dimension_semantics=("parallel", "arbitrary"),
            vmem_limit_bytes=_VMEM_LIMIT),
    )(*args)


# -----------------------------------------------------------------------------
# Parameters (mirrors ReweightedGCN.__init__ with graph_classification=False):
#   convs[0]: in -> hidden, bns[0] ; convs[1..L-2]: hidden -> hidden, bns[i]
#   convs[L-1]: hidden -> out (no BN / ReLU, then log_softmax)
# -----------------------------------------------------------------------------
def init_params(key, in_channels, hidden_channels, out_channels, num_layers):
    dims = [in_channels] + [hidden_channels] * (num_layers - 1) + [out_channels]
    layers = []
    for i in range(num_layers):
        f_in, f_out = dims[i], dims[i + 1]
        key, kw = jax.random.split(key)
        limit = (6.0 / (f_in + f_out)) ** 0.5            # glorot-uniform
        w = jax.random.uniform(kw, (f_in, f_out), jnp.float32, -limit, limit)
        b = jnp.zeros((1, f_out), jnp.float32)
        # BatchNorm1d at init (eval): gamma=1, beta=0, mean=0, var=1.
        bn_scale = jnp.full((1, f_out), 1.0 / jnp.sqrt(1.0 + _BN_EPS),
                            jnp.float32)
        bn_shift = jnp.zeros((1, f_out), jnp.float32)
        layers.append((w, b, bn_scale, bn_shift))
    return layers


def _pad_layer(w, b, s, t):
    fi, fo = w.shape
    fi_p, fo_p = _round_up(fi, 128), _round_up(fo, 128)
    w_p = jnp.zeros((fi_p, fo_p), jnp.bfloat16).at[:fi, :fo].set(
        w.astype(jnp.bfloat16))
    b_p = jnp.zeros((1, fo_p), jnp.float32).at[:, :fo].set(b)
    s_p = jnp.zeros((1, fo_p), jnp.float32).at[:, :fo].set(s)
    t_p = jnp.zeros((1, fo_p), jnp.float32).at[:, :fo].set(t)
    return w_p, b_p, s_p, t_p


def reweighted_gcn_forward(x, adj, k_hop_nbrs, layers, use_bn=True,
                           xws_resident=None):
    # TODO(synk): placeholder dispersion_norm ignores x / k_hop_nbrs, so the
    # re-weighting is loop-invariant and computed exactly once below.
    del k_hop_nbrs
    n, f_in = x.shape
    num_classes = layers[-1][0].shape[1]
    tile_m, tile_k, n_pad = _choose_tiling(n)

    # Pad node count / features; adjacency travels as 1-byte int8 in HBM.
    adj_p = jnp.zeros((n_pad, n_pad), jnp.int8).at[:n, :n].set(
        adj.astype(jnp.int8))
    f_in_pad = _round_up(f_in, 128)
    h = jnp.zeros((n_pad, f_in_pad), jnp.bfloat16).at[:n, :f_in].set(
        x.astype(jnp.bfloat16))

    # Single degree pass (symmetric graph), hoisted out of the layer loop.
    d = degree_isqrt(adj_p, tile_m, tile_k)          # (n_pad, 1) f32

    # Hidden layers: conv -> (BN) -> ReLU -> (dropout = identity in eval).
    for (w, b, s, t) in layers[:-1]:
        w_p, b_p, s_p, t_p = _pad_layer(w, b, s, t)
        xws = transform(h, w_p, d, tile_m)
        h = aggregate(adj_p, xws, d, b_p,
                      s_p if use_bn else None, t_p if use_bn else None,
                      tile_m=tile_m, tile_k=tile_k, apply_bn=use_bn,
                      apply_relu=True, apply_log_softmax=False,
                      valid_cols=w_p.shape[1], out_dtype=jnp.bfloat16,
                      xws_resident=xws_resident)

    # Final layer: conv -> log_softmax (padded class columns masked out).
    w, b, s, t = layers[-1]
    w_p, b_p, _, _ = _pad_layer(w, b, s, t)
    xws = transform(h, w_p, d, tile_m)
    out = aggregate(adj_p, xws, d, b_p,
                    tile_m=tile_m, tile_k=tile_k, apply_bn=False,
                    apply_relu=False, apply_log_softmax=True,
                    valid_cols=num_classes, out_dtype=jnp.float32,
                    xws_resident=xws_resident)
    return out[:n, :num_classes]


if __name__ == "__main__":
    key = jax.random.PRNGKey(0)

    N = 64              # nodes
    IN_C = 16           # in_channels
    HID_C = 32          # hidden_channels
    OUT_C = 8           # out_channels
    NUM_LAYERS = 3
    DROPOUT = 0.5       # inactive in eval-mode forward

    k_x, k_adj, k_p = jax.random.split(key, 3)

    # node features
    x = jax.random.normal(k_x, (N, IN_C), jnp.float32)

    # symmetric random 0/1 adjacency (no self loops; kernels add them)
    a_rand = jax.random.uniform(k_adj, (N, N))
    adj = (a_rand < 0.1).astype(jnp.float32)
    adj = jnp.maximum(adj, adj.T)
    adj = adj * (1.0 - jnp.eye(N, dtype=jnp.float32))

    # k-hop neighbor table (unused by the placeholder dispersion_norm; see TODO)
    k_hop_nbrs = jax.random.randint(k_p, (N, 8), 0, N, dtype=jnp.int32)

    layers = init_params(k_p, IN_C, HID_C, OUT_C, NUM_LAYERS)

    # Primary (auto -> VMEM-resident XWs) path.
    fwd = jax.jit(functools.partial(reweighted_gcn_forward, use_bn=True))
    out = jax.block_until_ready(fwd(x, adj, k_hop_nbrs, layers))

    assert out.shape == (N, OUT_C)
    assert bool(jnp.all(jnp.isfinite(out)))
    # log_softmax rows must (approximately) exponentiate-sum to 1
    assert jnp.allclose(jnp.sum(jnp.exp(out), axis=-1), 1.0, atol=1e-4)

    # Also exercise the k-blocked XWs fallback path and check consistency.
    fwd_blk = jax.jit(functools.partial(reweighted_gcn_forward, use_bn=True,
                                        xws_resident=False))
    out_blk = jax.block_until_ready(fwd_blk(x, adj, k_hop_nbrs, layers))
    assert jnp.allclose(out, out_blk, atol=5e-3, rtol=5e-3)

    print("KERNEL_OK")
</pallas_src>

<mosaic_0001>
module attributes {stable_mosaic.version = 11 : i64} {
  func.func @_degree_kernel(%arg0: i32, %arg1: i32, %arg2: memref<128x128xi8, #tpu.memory_space<vmem>>, %arg3: memref<128x1xf32, #tpu.memory_space<vmem>>, %arg4: memref<128x1xf32, #tpu.memory_space<vmem>>) attributes {dimension_semantics = [#tpu.dimension_semantics<parallel>, #tpu.dimension_semantics<arbitrary>], iteration_bounds = array<i64: 2, 2>, scalar_prefetch = 0 : i64, scratch_operands = 1 : i64, tpu.core_type = #tpu.core_type<tc>, window_params = [{transform_indices = @transform_0, window_bounds = array<i64: 128, 128>}, {transform_indices = @transform_1, window_bounds = array<i64: 128, 1>}]} {
    %c0_i32 = arith.constant 0 : i32
    %0 = arith.cmpi eq, %arg1, %c0_i32 : i32
    %1 = arith.extui %0 : i1 to i32
    %c0_i32_0 = arith.constant 0 : i32
    %2 = arith.cmpi ne, %1, %c0_i32_0 : i32
    scf.if %2 {
      %cst_7 = arith.constant 0.000000e+00 : f32
      %13 = vector.broadcast %cst_7 : f32 to vector<128x1xf32>
      %c0_8 = arith.constant 0 : index
      %c0_9 = arith.constant 0 : index
      %14 = vector.load %arg4[%c0_8, %c0_9] : memref<128x1xf32, #tpu.memory_space<vmem>>, vector<128x1xf32>
      tpu.vector_store %arg4[%c0_8, %c0_9], %13 {strides = array<i32>} : memref<128x1xf32, #tpu.memory_space<vmem>>, vector<128x1xf32>,
    } else {
    }
    %c0 = arith.constant 0 : index
    %c0_1 = arith.constant 0 : index
    %3 = vector.load %arg4[%c0, %c0_1] : memref<128x1xf32, #tpu.memory_space<vmem>>, vector<128x1xf32>
    %c0_2 = arith.constant 0 : index
    %c0_3 = arith.constant 0 : index
    %4 = vector.load %arg2[%c0_2, %c0_3] : memref<128x128xi8, #tpu.memory_space<vmem>>, vector<128x128xi8>
    %5 = arith.sitofp %4 : vector<128x128xi8> to vector<128x128xf32>
    %cst = arith.constant dense<0.000000e+00> : vector<128xf32>
    %6 = vector.multi_reduction <add>, %5, %cst [1] : vector<128x128xf32> to vector<128xf32>
    %7 = vector.shape_cast %6 : vector<128xf32> to vector<128x1xf32>
    %8 = arith.addf %3, %7 : vector<128x1xf32>
    %c0_4 = arith.constant 0 : index
    %c0_5 = arith.constant 0 : index
    %9 = vector.load %arg4[%c0_4, %c0_5] : memref<128x1xf32, #tpu.memory_space<vmem>>, vector<128x1xf32>
    tpu.vector_store %arg4[%c0_4, %c0_5], %8 {strides = array<i32>} : memref<128x1xf32, #tpu.memory_space<vmem>>, vector<128x1xf32>,
    %c1_i32 = arith.constant 1 : i32
    %10 = arith.cmpi eq, %arg1, %c1_i32 : i32
    %11 = arith.extui %10 : i1 to i32
    %c0_i32_6 = arith.constant 0 : i32
    %12 = arith.cmpi ne, %11, %c0_i32_6 : i32
    scf.if %12 {
      %c0_7 = arith.constant 0 : index
      %c0_8 = arith.constant 0 : index
      %13 = vector.load %arg4[%c0_7, %c0_8] : memref<128x1xf32, #tpu.memory_space<vmem>>, vector<128x1xf32>
      %cst_9 = arith.constant 1.000000e+00 : f32
      %14 = vector.broadcast %cst_9 : f32 to vector<128x1xf32>
      %15 = arith.addf %13, %14 : vector<128x1xf32>
      %16 = math.rsqrt %15 : vector<128x1xf32>
      %c0_10 = arith.constant 0 : index
      %c0_11 = arith.constant 0 : index
      %17 = vector.load %arg3[%c0_10, %c0_11] : memref<128x1xf32, #tpu.memory_space<vmem>>, vector<128x1xf32>
      tpu.vector_store %arg3[%c0_10, %c0_11], %16 {strides = array<i32>} : memref<128x1xf32, #tpu.memory_space<vmem>>, vector<128x1xf32>,
    } else {
    }
    return
  }
  func.func @transform_0(%arg0: i32, %arg1: i32) -> (i32, i32) {
    %c0_i32 = arith.constant 0 : i32
    return %arg0, %arg1 : i32, i32
  }
  func.func @transform_1(%arg0: i32, %arg1: i32) -> (i32, i32) {
    %c0_i32 = arith.constant 0 : i32
    %c0_i32_0 = arith.constant 0 : i32
    return %arg0, %c0_i32 : i32, i32
  }
}

module attributes {stable_mosaic.version = 11 : i64} {
  func.func @_transform_kernel(%arg0: i32, %arg1: i32, %arg2: memref<128x128xbf16, #tpu.memory_space<vmem>>, %arg3: memref<128x128xbf16, #tpu.memory_space<vmem>>, %arg4: memref<128x1xf32, #tpu.memory_space<vmem>>, %arg5: memref<128x128xbf16, #tpu.memory_space<vmem>>, %arg6: memref<128x128xf32, #tpu.memory_space<vmem>>) attributes {dimension_semantics = [#tpu.dimension_semantics<parallel>, #tpu.dimension_semantics<arbitrary>], iteration_bounds = array<i64: 2, 1>, scalar_prefetch = 0 : i64, scratch_operands = 1 : i64, tpu.core_type = #tpu.core_type<tc>, window_params = [{transform_indices = @transform_0, window_bounds = array<i64: 128, 128>}, {pipeline_mode = #tpu.pipeline_mode<synchronous>, transform_indices = @transform_1, window_bounds = array<i64: 128, 128>}, {transform_indices = @transform_2, window_bounds = array<i64: 128, 1>}, {transform_indices = @transform_3, window_bounds = array<i64: 128, 128>}]} {
    %c0_i32 = arith.constant 0 : i32
    %0 = arith.cmpi eq, %arg1, %c0_i32 : i32
    %1 = arith.extui %0 : i1 to i32
    %c0_i32_0 = arith.constant 0 : i32
    %2 = arith.cmpi ne, %1, %c0_i32_0 : i32
    scf.if %2 {
      %cst_9 = arith.constant 0.000000e+00 : f32
      %15 = vector.broadcast %cst_9 : f32 to vector<128x128xf32>
      %c0_10 = arith.constant 0 : index
      %c0_11 = arith.constant 0 : index
      %16 = vector.load %arg6[%c0_10, %c0_11] : memref<128x128xf32, #tpu.memory_space<vmem>>, vector<128x128xf32>
      tpu.vector_store %arg6[%c0_10, %c0_11], %15 {strides = array<i32>} : memref<128x128xf32, #tpu.memory_space<vmem>>, vector<128x128xf32>,
    } else {
    }
    %c128_i32 = arith.constant 128 : i32
    %3 = arith.muli %arg1, %c128_i32 : i32
    %4 = tpu.assume_multiple %3, 128 : i32
    %c0 = arith.constant 0 : index
    %c0_1 = arith.constant 0 : index
    %5 = vector.load %arg6[%c0, %c0_1] : memref<128x128xf32, #tpu.memory_space<vmem>>, vector<128x128xf32>
    %c0_2 = arith.constant 0 : index
    %c0_3 = arith.constant 0 : index
    %6 = vector.load %arg2[%c0_2, %c0_3] : memref<128x128xbf16, #tpu.memory_space<vmem>>, vector<128x128xbf16>
    %7 = arith.index_cast %4 : i32 to index
    %c0_4 = arith.constant 0 : index
    %8 = vector.load %arg3[%7, %c0_4] : memref<128x128xbf16, #tpu.memory_space<vmem>>, vector<128x128xbf16>
    %cst = arith.constant dense<0.000000e+00> : vector<128x128xf32>
    %9 = tpu.matmul %6, %8, %cst {dimension_numbers = #tpu.dot_dimension_numbers<[1], [0], [0], [1], [0, 0, 1, 1], [], []>} : vector<128x128xbf16>, vector<128x128xbf16>, vector<128x128xf32> -> vector<128x128xf32>
    %10 = arith.addf %5, %9 : vector<128x128xf32>
    %c0_5 = arith.constant 0 : index
    %c0_6 = arith.constant 0 : index
    %11 = vector.load %arg6[%c0_5, %c0_6] : memref<128x128xf32, #tpu.memory_space<vmem>>, vector<128x128xf32>
    tpu.vector_store %arg6[%c0_5, %c0_6], %10 {strides = array<i32>} : memref<128x128xf32, #tpu.memory_space<vmem>>, vector<128x128xf32>,
    %c0_i32_7 = arith.constant 0 : i32
    %12 = arith.cmpi eq, %arg1, %c0_i32_7 : i32
    %13 = arith.extui %12 : i1 to i32
    %c0_i32_8 = arith.constant 0 : i32
    %14 = arith.cmpi ne, %13, %c0_i32_8 : i32
    scf.if %14 {
      %c0_9 = arith.constant 0 : index
      %c0_10 = arith.constant 0 : index
      %15 = vector.load %arg4[%c0_9, %c0_10] : memref<128x1xf32, #tpu.memory_space<vmem>>, vector<128x1xf32>
      %c0_11 = arith.constant 0 : index
      %c0_12 = arith.constant 0 : index
      %16 = vector.load %arg6[%c0_11, %c0_12] : memref<128x128xf32, #tpu.memory_space<vmem>>, vector<128x128xf32>
      %17 = vector.broadcast %15 : vector<128x1xf32> to vector<128x128xf32>
      %18 = arith.mulf %17, %16 : vector<128x128xf32>
      %19 = arith.truncf %18 : vector<128x128xf32> to vector<128x128xbf16>
      %c0_13 = arith.constant 0 : index
      %c0_14 = arith.constant 0 : index
      %20 = vector.load %arg5[%c0_13, %c0_14] : memref<128x128xbf16, #tpu.memory_space<vmem>>, vector<128x128xbf16>
      tpu.vector_store %arg5[%c0_13, %c0_14], %19 {strides = array<i32>} : memref<128x128xbf16, #tpu.memory_space<vmem>>, vector<128x128xbf16>,
    } else {
    }
    return
  }
  func.func @transform_0(%arg0: i32, %arg1: i32) -> (i32, i32) {
    %c0_i32 = arith.constant 0 : i32
    return %arg0, %arg1 : i32, i32
  }
  func.func @transform_1(%arg0: i32, %arg1: i32) -> (i32, i32) {
    %c0_i32 = arith.constant 0 : i32
    %c0_i32_0 = arith.constant 0 : i32
    %c0_i32_1 = arith.constant 0 : i32
    return %c0_i32, %c0_i32_0 : i32, i32
  }
  func.func @transform_2(%arg0: i32, %arg1: i32) -> (i32, i32) {
    %c0_i32 = arith.constant 0 : i32
    %c0_i32_0 = arith.constant 0 : i32
    return %arg0, %c0_i32 : i32, i32
  }
  func.func @transform_3(%arg0: i32, %arg1: i32) -> (i32, i32) {
    %c0_i32 = arith.constant 0 : i32
    %c0_i32_0 = arith.constant 0 : i32
    return %arg0, %c0_i32 : i32, i32
  }
}

module attributes {stable_mosaic.version = 11 : i64} {
  func.func @_aggregate_kernel(%arg0: i32, %arg1: i32, %arg2: memref<128x128xi8, #tpu.memory_space<vmem>>, %arg3: memref<256x128xbf16, #tpu.memory_space<vmem>>, %arg4: memref<128x128xbf16, #tpu.memory_space<vmem>>, %arg5: memref<128x1xf32, #tpu.memory_space<vmem>>, %arg6: memref<1x128xf32, #tpu.memory_space<vmem>>, %arg7: memref<1x128xf32, #tpu.memory_space<vmem>>, %arg8: memref<1x128xf32, #tpu.memory_space<vmem>>, %arg9: memref<128x128xbf16, #tpu.memory_space<vmem>>, %arg10: memref<128x128xf32, #tpu.memory_space<vmem>>) attributes {dimension_semantics = [#tpu.dimension_semantics<parallel>, #tpu.dimension_semantics<arbitrary>], iteration_bounds = array<i64: 2, 2>, scalar_prefetch = 0 : i64, scratch_operands = 1 : i64, tpu.core_type = #tpu.core_type<tc>, window_params = [{transform_indices = @transform_0, window_bounds = array<i64: 128, 128>}, {pipeline_mode = #tpu.pipeline_mode<synchronous>, transform_indices = @transform_1, window_bounds = array<i64: 256, 128>}, {transform_indices = @transform_2, window_bounds = array<i64: 128, 128>}, {transform_indices = @transform_3, window_bounds = array<i64: 128, 1>}, {pipeline_mode = #tpu.pipeline_mode<synchronous>, transform_indices = @transform_4, window_bounds = array<i64: 1, 128>}, {pipeline_mode = #tpu.pipeline_mode<synchronous>, transform_indices = @transform_5, window_bounds = array<i64: 1, 128>}, {pipeline_mode = #tpu.pipeline_mode<synchronous>, transform_indices = @transform_6, window_bounds = array<i64: 1, 128>}, {transform_indices = @transform_7, window_bounds = array<i64: 128, 128>}]} {
    %c0_i32 = arith.constant 0 : i32
    %0 = arith.cmpi eq, %arg1, %c0_i32 : i32
    %1 = arith.extui %0 : i1 to i32
    %c0_i32_0 = arith.constant 0 : i32
    %2 = arith.cmpi ne, %1, %c0_i32_0 : i32
    scf.if %2 {
      %cst_8 = arith.constant 0.000000e+00 : f32
      %17 = vector.broadcast %cst_8 : f32 to vector<128x128xf32>
      %c0_9 = arith.constant 0 : index
      %c0_10 = arith.constant 0 : index
      %18 = vector.load %arg10[%c0_9, %c0_10] : memref<128x128xf32, #tpu.memory_space<vmem>>, vector<128x128xf32>
      tpu.vector_store %arg10[%c0_9, %c0_10], %17 {strides = array<i32>} : memref<128x128xf32, #tpu.memory_space<vmem>>, vector<128x128xf32>,
    } else {
    }
    %c128_i32 = arith.constant 128 : i32
    %3 = arith.muli %arg1, %c128_i32 : i32
    %4 = tpu.assume_multiple %3, 128 : i32
    %5 = arith.index_cast %4 : i32 to index
    %c0 = arith.constant 0 : index
    %6 = vector.load %arg3[%5, %c0] : memref<256x128xbf16, #tpu.memory_space<vmem>>, vector<128x128xbf16>
    %c0_1 = arith.constant 0 : index
    %c0_2 = arith.constant 0 : index
    %7 = vector.load %arg2[%c0_1, %c0_2] : memref<128x128xi8, #tpu.memory_space<vmem>>, vector<128x128xi8>
    %8 = arith.sitofp %7 : vector<128x128xi8> to vector<128x128xf32>
    %9 = arith.truncf %8 : vector<128x128xf32> to vector<128x128xbf16>
    %c0_3 = arith.constant 0 : index
    %c0_4 = arith.constant 0 : index
    %10 = vector.load %arg10[%c0_3, %c0_4] : memref<128x128xf32, #tpu.memory_space<vmem>>, vector<128x128xf32>
    %cst = arith.constant dense<0.000000e+00> : vector<128x128xf32>
    %11 = tpu.matmul %9, %6, %cst {dimension_numbers = #tpu.dot_dimension_numbers<[1], [0], [0], [1], [0, 0, 1, 1], [], []>} : vector<128x128xbf16>, vector<128x128xbf16>, vector<128x128xf32> -> vector<128x128xf32>
    %12 = arith.addf %10, %11 : vector<128x128xf32>
    %c0_5 = arith.constant 0 : index
    %c0_6 = arith.constant 0 : index
    %13 = vector.load %arg10[%c0_5, %c0_6] : memref<128x128xf32, #tpu.memory_space<vmem>>, vector<128x128xf32>
    tpu.vector_store %arg10[%c0_5, %c0_6], %12 {strides = array<i32>} : memref<128x128xf32, #tpu.memory_space<vmem>>, vector<128x128xf32>,
    %c1_i32 = arith.constant 1 : i32
    %14 = arith.cmpi eq, %arg1, %c1_i32 : i32
    %15 = arith.extui %14 : i1 to i32
    %c0_i32_7 = arith.constant 0 : i32
    %16 = arith.cmpi ne, %15, %c0_i32_7 : i32
    scf.if %16 {
      %c0_8 = arith.constant 0 : index
      %c0_9 = arith.constant 0 : index
      %17 = vector.load %arg5[%c0_8, %c0_9] : memref<128x1xf32, #tpu.memory_space<vmem>>, vector<128x1xf32>
      %c0_10 = arith.constant 0 : index
      %c0_11 = arith.constant 0 : index
      %18 = vector.load %arg10[%c0_10, %c0_11] : memref<128x128xf32, #tpu.memory_space<vmem>>, vector<128x128xf32>
      %c0_12 = arith.constant 0 : index
      %c0_13 = arith.constant 0 : index
      %19 = vector.load %arg4[%c0_12, %c0_13] : memref<128x128xbf16, #tpu.memory_space<vmem>>, vector<128x128xbf16>
      %20 = arith.extf %19 : vector<128x128xbf16> to vector<128x128xf32>
      %21 = arith.addf %18, %20 : vector<128x128xf32>
      %22 = vector.broadcast %17 : vector<128x1xf32> to vector<128x128xf32>
      %23 = arith.mulf %22, %21 : vector<128x128xf32>
      %c0_14 = arith.constant 0 : index
      %c0_15 = arith.constant 0 : index
      %24 = vector.load %arg6[%c0_14, %c0_15] : memref<1x128xf32, #tpu.memory_space<vmem>>, vector<1x128xf32>
      %25 = vector.broadcast %24 : vector<1x128xf32> to vector<128x128xf32>
      %26 = arith.addf %23, %25 : vector<128x128xf32>
      %c0_16 = arith.constant 0 : index
      %c0_17 = arith.constant 0 : index
      %27 = vector.load %arg7[%c0_16, %c0_17] : memref<1x128xf32, #tpu.memory_space<vmem>>, vector<1x128xf32>
      %28 = vector.broadcast %27 : vector<1x128xf32> to vector<128x128xf32>
      %29 = arith.mulf %26, %28 : vector<128x128xf32>
      %c0_18 = arith.constant 0 : index
      %c0_19 = arith.constant 0 : index
      %30 = vector.load %arg8[%c0_18, %c0_19] : memref<1x128xf32, #tpu.memory_space<vmem>>, vector<1x128xf32>
      %31 = vector.broadcast %30 : vector<1x128xf32> to vector<128x128xf32>
      %32 = arith.addf %29, %31 : vector<128x128xf32>
      %cst_20 = arith.constant 0.000000e+00 : f32
      %33 = vector.broadcast %cst_20 : f32 to vector<128x128xf32>
      %34 = arith.maximumf %32, %33 : vector<128x128xf32>
      %35 = arith.truncf %34 : vector<128x128xf32> to vector<128x128xbf16>
      %c0_21 = arith.constant 0 : index
      %c0_22 = arith.constant 0 : index
      %36 = vector.load %arg9[%c0_21, %c0_22] : memref<128x128xbf16, #tpu.memory_space<vmem>>, vector<128x128xbf16>
      tpu.vector_store %arg9[%c0_21, %c0_22], %35 {strides = array<i32>} : memref<128x128xbf16, #tpu.memory_space<vmem>>, vector<128x128xbf16>,
    } else {
    }
    return
  }
  func.func @transform_0(%arg0: i32, %arg1: i32) -> (i32, i32) {
    %c0_i32 = arith.constant 0 : i32
    return %arg0, %arg1 : i32, i32
  }
  func.func @transform_1(%arg0: i32, %arg1: i32) -> (i32, i32) {
    %c0_i32 = arith.constant 0 : i32
    %c0_i32_0 = arith.constant 0 : i32
    %c0_i32_1 = arith.constant 0 : i32
    return %c0_i32, %c0_i32_0 : i32, i32
  }
  func.func @transform_2(%arg0: i32, %arg1: i32) -> (i32, i32) {
    %c0_i32 = arith.constant 0 : i32
    %c0_i32_0 = arith.constant 0 : i32
    return %arg0, %c0_i32 : i32, i32
  }
  func.func @transform_3(%arg0: i32, %arg1: i32) -> (i32, i32) {
    %c0_i32 = arith.constant 0 : i32
    %c0_i32_0 = arith.constant 0 : i32
    return %arg0, %c0_i32 : i32, i32
  }
  func.func @transform_4(%arg0: i32, %arg1: i32) -> (i32, i32) {
    %c0_i32 = arith.constant 0 : i32
    %c0_i32_0 = arith.constant 0 : i32
    %c0_i32_1 = arith.constant 0 : i32
    return %c0_i32, %c0_i32_0 : i32, i32
  }
  func.func @transform_5(%arg0: i32, %arg1: i32) -> (i32, i32) {
    %c0_i32 = arith.constant 0 : i32
    %c0_i32_0 = arith.constant 0 : i32
    %c0_i32_1 = arith.constant 0 : i32
    return %c0_i32, %c0_i32_0 : i32, i32
  }
  func.func @transform_6(%arg0: i32, %arg1: i32) -> (i32, i32) {
    %c0_i32 = arith.constant 0 : i32
    %c0_i32_0 = arith.constant 0 : i32
    %c0_i32_1 = arith.constant 0 : i32
    return %c0_i32, %c0_i32_0 : i32, i32
  }
  func.func @transform_7(%arg0: i32, %arg1: i32) -> (i32, i32) {
    %c0_i32 = arith.constant 0 : i32
    %c0_i32_0 = arith.constant 0 : i32
    return %arg0, %c0_i32 : i32, i32
  }
}

module attributes {stable_mosaic.version = 11 : i64} {
  func.func @_aggregate_kernel(%arg0: i32, %arg1: i32, %arg2: memref<128x128xi8, #tpu.memory_space<vmem>>, %arg3: memref<256x128xbf16, #tpu.memory_space<vmem>>, %arg4: memref<128x128xbf16, #tpu.memory_space<vmem>>, %arg5: memref<128x1xf32, #tpu.memory_space<vmem>>, %arg6: memref<1x128xf32, #tpu.memory_space<vmem>>, %arg7: memref<128x128xf32, #tpu.memory_space<vmem>>, %arg8: memref<128x128xf32, #tpu.memory_space<vmem>>) attributes {dimension_semantics = [#tpu.dimension_semantics<parallel>, #tpu.dimension_semantics<arbitrary>], iteration_bounds = array<i64: 2, 2>, scalar_prefetch = 0 : i64, scratch_operands = 1 : i64, tpu.core_type = #tpu.core_type<tc>, window_params = [{transform_indices = @transform_0, window_bounds = array<i64: 128, 128>}, {pipeline_mode = #tpu.pipeline_mode<synchronous>, transform_indices = @transform_1, window_bounds = array<i64: 256, 128>}, {transform_indices = @transform_2, window_bounds = array<i64: 128, 128>}, {transform_indices = @transform_3, window_bounds = array<i64: 128, 1>}, {pipeline_mode = #tpu.pipeline_mode<synchronous>, transform_indices = @transform_4, window_bounds = array<i64: 1, 128>}, {transform_indices = @transform_5, window_bounds = array<i64: 128, 128>}]} {
    %c0_i32 = arith.constant 0 : i32
    %0 = arith.cmpi eq, %arg1, %c0_i32 : i32
    %1 = arith.extui %0 : i1 to i32
    %c0_i32_0 = arith.constant 0 : i32
    %2 = arith.cmpi ne, %1, %c0_i32_0 : i32
    scf.if %2 {
      %cst_8 = arith.constant 0.000000e+00 : f32
      %17 = vector.broadcast %cst_8 : f32 to vector<128x128xf32>
      %c0_9 = arith.constant 0 : index
      %c0_10 = arith.constant 0 : index
      %18 = vector.load %arg8[%c0_9, %c0_10] : memref<128x128xf32, #tpu.memory_space<vmem>>, vector<128x128xf32>
      tpu.vector_store %arg8[%c0_9, %c0_10], %17 {strides = array<i32>} : memref<128x128xf32, #tpu.memory_space<vmem>>, vector<128x128xf32>,
    } else {
    }
    %c128_i32 = arith.constant 128 : i32
    %3 = arith.muli %arg1, %c128_i32 : i32
    %4 = tpu.assume_multiple %3, 128 : i32
    %5 = arith.index_cast %4 : i32 to index
    %c0 = arith.constant 0 : index
    %6 = vector.load %arg3[%5, %c0] : memref<256x128xbf16, #tpu.memory_space<vmem>>, vector<128x128xbf16>
    %c0_1 = arith.constant 0 : index
    %c0_2 = arith.constant 0 : index
    %7 = vector.load %arg2[%c0_1, %c0_2] : memref<128x128xi8, #tpu.memory_space<vmem>>, vector<128x128xi8>
    %8 = arith.sitofp %7 : vector<128x128xi8> to vector<128x128xf32>
    %9 = arith.truncf %8 : vector<128x128xf32> to vector<128x128xbf16>
    %c0_3 = arith.constant 0 : index
    %c0_4 = arith.constant 0 : index
    %10 = vector.load %arg8[%c0_3, %c0_4] : memref<128x128xf32, #tpu.memory_space<vmem>>, vector<128x128xf32>
    %cst = arith.constant dense<0.000000e+00> : vector<128x128xf32>
    %11 = tpu.matmul %9, %6, %cst {dimension_numbers = #tpu.dot_dimension_numbers<[1], [0], [0], [1], [0, 0, 1, 1], [], []>} : vector<128x128xbf16>, vector<128x128xbf16>, vector<128x128xf32> -> vector<128x128xf32>
    %12 = arith.addf %10, %11 : vector<128x128xf32>
    %c0_5 = arith.constant 0 : index
    %c0_6 = arith.constant 0 : index
    %13 = vector.load %arg8[%c0_5, %c0_6] : memref<128x128xf32, #tpu.memory_space<vmem>>, vector<128x128xf32>
    tpu.vector_store %arg8[%c0_5, %c0_6], %12 {strides = array<i32>} : memref<128x128xf32, #tpu.memory_space<vmem>>, vector<128x128xf32>,
    %c1_i32 = arith.constant 1 : i32
    %14 = arith.cmpi eq, %arg1, %c1_i32 : i32
    %15 = arith.extui %14 : i1 to i32
    %c0_i32_7 = arith.constant 0 : i32
    %16 = arith.cmpi ne, %15, %c0_i32_7 : i32
    scf.if %16 {
      %c0_8 = arith.constant 0 : index
      %c0_9 = arith.constant 0 : index
      %17 = vector.load %arg5[%c0_8, %c0_9] : memref<128x1xf32, #tpu.memory_space<vmem>>, vector<128x1xf32>
      %c0_10 = arith.constant 0 : index
      %c0_11 = arith.constant 0 : index
      %18 = vector.load %arg8[%c0_10, %c0_11] : memref<128x128xf32, #tpu.memory_space<vmem>>, vector<128x128xf32>
      %c0_12 = arith.constant 0 : index
      %c0_13 = arith.constant 0 : index
      %19 = vector.load %arg4[%c0_12, %c0_13] : memref<128x128xbf16, #tpu.memory_space<vmem>>, vector<128x128xbf16>
      %20 = arith.extf %19 : vector<128x128xbf16> to vector<128x128xf32>
      %21 = arith.addf %18, %20 : vector<128x128xf32>
      %22 = vector.broadcast %17 : vector<128x1xf32> to vector<128x128xf32>
      %23 = arith.mulf %22, %21 : vector<128x128xf32>
      %c0_14 = arith.constant 0 : index
      %c0_15 = arith.constant 0 : index
      %24 = vector.load %arg6[%c0_14, %c0_15] : memref<1x128xf32, #tpu.memory_space<vmem>>, vector<1x128xf32>
      %25 = vector.broadcast %24 : vector<1x128xf32> to vector<128x128xf32>
      %26 = arith.addf %23, %25 : vector<128x128xf32>
      %27 = tpu.iota {dimensions = array<i32: 1>} : vector<128x128xi32>
      %c8_i32 = arith.constant 8 : i32
      %28 = vector.broadcast %c8_i32 : i32 to vector<128x128xi32>
      %29 = arith.cmpi slt, %27, %28 : vector<128x128xi32>
      %cst_16 = arith.constant -1.000000e+30 : f32
      %30 = vector.broadcast %cst_16 : f32 to vector<128x128xf32>
      %31 = arith.select %29, %26, %30 : vector<128x128xi1>, vector<128x128xf32>
      %cst_17 = arith.constant dense<0xFF800000> : vector<128xf32>
      %32 = vector.multi_reduction <maximumf>, %31, %cst_17 [1] : vector<128x128xf32> to vector<128xf32>
      %33 = vector.shape_cast %32 : vector<128xf32> to vector<128x1xf32>
      %34 = vector.broadcast %33 : vector<128x1xf32> to vector<128x128xf32>
      %35 = arith.subf %31, %34 : vector<128x128xf32>
      %36 = math.exp %35 : vector<128x128xf32>
      %cst_18 = arith.constant dense<0.000000e+00> : vector<128xf32>
      %37 = vector.multi_reduction <add>, %36, %cst_18 [1] : vector<128x128xf32> to vector<128xf32>
      %38 = vector.shape_cast %37 : vector<128xf32> to vector<128x1xf32>
      %39 = math.log %38 : vector<128x1xf32>
      %40 = vector.broadcast %39 : vector<128x1xf32> to vector<128x128xf32>
      %41 = arith.subf %35, %40 : vector<128x128xf32>
      %c0_19 = arith.constant 0 : index
      %c0_20 = arith.constant 0 : index
      %42 = vector.load %arg7[%c0_19, %c0_20] : memref<128x128xf32, #tpu.memory_space<vmem>>, vector<128x128xf32>
      tpu.vector_store %arg7[%c0_19, %c0_20], %41 {strides = array<i32>} : memref<128x128xf32, #tpu.memory_space<vmem>>, vector<128x128xf32>,
    } else {
    }
    return
  }
  func.func @transform_0(%arg0: i32, %arg1: i32) -> (i32, i32) {
    %c0_i32 = arith.constant 0 : i32
    return %arg0, %arg1 : i32, i32
  }
  func.func @transform_1(%arg0: i32, %arg1: i32) -> (i32, i32) {
    %c0_i32 = arith.constant 0 : i32
    %c0_i32_0 = arith.constant 0 : i32
    %c0_i32_1 = arith.constant 0 : i32
    return %c0_i32, %c0_i32_0 : i32, i32
  }
  func.func @transform_2(%arg0: i32, %arg1: i32) -> (i32, i32) {
    %c0_i32 = arith.constant 0 : i32
    %c0_i32_0 = arith.constant 0 : i32
    return %arg0, %c0_i32 : i32, i32
  }
  func.func @transform_3(%arg0: i32, %arg1: i32) -> (i32, i32) {
    %c0_i32 = arith.constant 0 : i32
    %c0_i32_0 = arith.constant 0 : i32
    return %arg0, %c0_i32 : i32, i32
  }
  func.func @transform_4(%arg0: i32, %arg1: i32) -> (i32, i32) {
    %c0_i32 = arith.constant 0 : i32
    %c0_i32_0 = arith.constant 0 : i32
    %c0_i32_1 = arith.constant 0 : i32
    return %c0_i32, %c0_i32_0 : i32, i32
  }
  func.func @transform_5(%arg0: i32, %arg1: i32) -> (i32, i32) {
    %c0_i32 = arith.constant 0 : i32
    %c0_i32_0 = arith.constant 0 : i32
    return %arg0, %c0_i32 : i32, i32
  }
}

</mosaic_0001>

<llo_original>
// kernel: reweighted_gcn_forward.7
$region0: #{reweighted_gcn_forward.7}
  #allocation0 [shape = 'u32[]', space=smem, size = 0x4, offset = 0x4, fixed_abs, tag = 'smem constant byte address 0x4 - core index']
  #allocation1 [shape = 'u32[144,128]{1,0:T(1,128)}', space=vmem, size = 0x12000, scoped, tag = 'internal scratch']
  #allocation2 [shape = 'f32[128,1]{1,0:T(8,128)}', space=vmem, size = 0x10000, scoped, tag = 'scratch operand']
  %s0 = inlined_call_operand.vmem [shape: s8[256,256], index: 0, kind: input, shape index: {}]
  %s1 = inlined_call_operand.vmem [shape: f32[256,1], index: 1, kind: output, shape index: {}]
  %s2 = sld [smem:[#allocation0]]
  $region83: #{reweighted_gcn_forward.7} parent=0
    _
  %s4 = ssub.s32 1, %s2
  %s5 = scalar_select 0, %s4, %s2
  $region1: #{reweighted_gcn_forward.7} parent=0
    #allocation3 [shape = 'u8[32768]{0}', space=vmem, size = 0x8000, scoped, tag = 'input window, operand 0']
    loop: start=0, step=1, limit=6
    $region2: #{reweighted_gcn_forward.7} parent=1 // loop_pre_header
      _
    $region3: #{reweighted_gcn_forward.7} parent=1 // loop_header
      %s7 = sphi 0, %s11
      %p8 = scmp.ge.s32.totalorder %s7, 6
      %s14 = sphi 0, %s26
      %s15 = sphi 0, %s22
      %s16 = sphi 0, %s14
      %s17 = sphi 0, %s15
      %s18 = sphi 0, %s16
      %s19 = sphi 0, %s17
      %s31 = sphi 0, %s33
      %s34 = sphi 0, %s31
      %s35 = sphi 0, %s34
      %s51 = sphi 0, %s35
      %s57 = sphi 0, %s59
      %s60 = sphi 0, %s57
      %s61 = sphi 0, %s60
      %s77 = sphi 0, %s61
    $region4: #{reweighted_gcn_forward.7} parent=1 // loop_header_branch
      %10 = sbr.rel (%p8) target = $region8
    $region5: #{reweighted_gcn_forward.7} parent=1 // loop_body
      %s12 = ssub.s32 %s7, 1
      %s13 = ssub.s32 %s7, 2
      %s20 = sadd.s32 1, %s15
      %p21 = scmp.ge.s32.totalorder %s20, 2
      %s22 = scalar_select %p21, 0, %s20
      %s23 = sadd.s32 1, %s14
      %s24 = scalar_select %p21, %s23, %s14
      %p25 = scmp.ge.s32.totalorder %s24, 2
      %s26 = scalar_select %p25, 0, %s24
      %s27 = ssub.s32 %s14, %s26
      %s28 = ssub.s32 %s15, %s22
      %s29 = sor.u32 %s27, %s28
      %p30 = scmp.eq.s32.totalorder %s29, 0
      %s32 = sadd.s32 %s31, 1
      %s33 = scalar_select %p30, %s31, %s32
      %p36 = pneg %p30
      %p37 = scmp.eq.s32.totalorder %s7, 3
      %p38 = por %p36, %p37
      %p39 = scmp.ne.s32.totalorder %s31, %s34
      %p40 = scmp.eq.s32.totalorder %s7, 0
      %p41 = por %p39, %p40
      %p42 = scmp.ne.s32.totalorder %s31, %s34
      %p43 = scmp.eq.s32.totalorder %s12, 3
      %p44 = por %p42, %p43
      %p45 = scmp.ne.s32.totalorder %s34, %s35
      %p46 = scmp.eq.s32.totalorder %s12, 0
      %p47 = por %p45, %p46
      %p48 = scmp.ne.s32.totalorder %s34, %s35
      %p49 = scmp.eq.s32.totalorder %s13, 3
      %p50 = por %p48, %p49
      %p52 = scmp.ne.s32.totalorder %s35, %s51
      %p53 = scmp.eq.s32.totalorder %s13, 0
      %p54 = por %p52, %p53
      %s55 = ssub.s32 %s14, %s26
      %p56 = scmp.eq.s32.totalorder %s55, 0
      %s58 = sadd.s32 %s57, 1
      %s59 = scalar_select %p56, %s57, %s58
      %p62 = pneg %p56
      %p63 = scmp.eq.s32.totalorder %s7, 3
      %p64 = por %p62, %p63
      %p65 = scmp.ne.s32.totalorder %s57, %s60
      %p66 = scmp.eq.s32.totalorder %s7, 0
      %p67 = por %p65, %p66
      %p68 = scmp.ne.s32.totalorder %s57, %s60
      %p69 = scmp.eq.s32.totalorder %s12, 3
      %p70 = por %p68, %p69
      %p71 = scmp.ne.s32.totalorder %s60, %s61
      %p72 = scmp.eq.s32.totalorder %s12, 0
      %p73 = por %p71, %p72
      %p74 = scmp.ne.s32.totalorder %s60, %s61
      %p75 = scmp.eq.s32.totalorder %s13, 3
      %p76 = por %p74, %p75
      %p78 = scmp.ne.s32.totalorder %s61, %s77
      %p79 = scmp.eq.s32.totalorder %s13, 0
      %p80 = por %p78, %p79
      %p81 = scmp.le.s32.totalorder 1, %s7
      %p82 = scmp.lt.s32.totalorder %s7, 5
      %p83 = pnand %p81, %p82
      %p84 = pneg %p83
      // Predicated region
      $region9: #{reweighted_gcn_forward.7} parent=5 // pred_check
        _
      $region10: #{reweighted_gcn_forward.7} parent=5 // pred_check_branch
        %86 = sbr.rel (%p83) target = $region12
      $region11: #{reweighted_gcn_forward.7} parent=5 // pred_region
        %s87 = ssub.s32 %s7, 1
      $region12: #{reweighted_gcn_forward.7} parent=5 // pred_fallthru
        _
      %p88 = scmp.lt.s32.totalorder %s7, 4
      // Predicated region
      $region13: #{reweighted_gcn_forward.7} parent=5 // pred_check
        %p89 = pneg %p88
      $region14: #{reweighted_gcn_forward.7} parent=5 // pred_check_branch
        %91 = sbr.rel (%p89) target = $region16
      $region15: #{reweighted_gcn_forward.7} parent=5 // pred_region
        // Predicated region
        $region17: #{reweighted_gcn_forward.7} parent=15 // pred_check
          %p92 = pneg %p41
        $region18: #{reweighted_gcn_forward.7} parent=15 // pred_check_branch
          %94 = sbr.rel (%p92) target = $region20
        $region19: #{reweighted_gcn_forward.7} parent=15 // pred_region
          %s95 = sand.u32 %s31, 1
          %s96 = sand.u32 %s31, 1
          %s97 = smul.addr %s96, 32
          %s98 = scalar_lea.vmem [#allocation3], %s97
          %s99 = smul.u32 4, %s14
          %s100 = smul.addr %s99, 2
          %s101 = sadd.s32 %s15, %s100
          %s102 = smul.addr %s101, 8
          %s103 = scalar_lea.vmem %s0, %s102
          // Predicated region
          $region21: #{reweighted_gcn_forward.7} parent=19 // pred_check
            _
          $region22: #{reweighted_gcn_forward.7} parent=19 // pred_check_branch
            %105 = sbr.rel (0) target = $region24
          $region23: #{reweighted_gcn_forward.7} parent=19 // pred_region
            // Predicated region
            $region25: #{reweighted_gcn_forward.7} parent=23 // pred_check
              _
            $region26: #{reweighted_gcn_forward.7} parent=23 // pred_check_branch
              %107 = sbr.rel (0) target = $region28
            $region27: #{reweighted_gcn_forward.7} parent=23 // pred_region
              // Predicated region
              $region40: #{reweighted_gcn_forward.7} parent=27 // pred_check
                _
              $region41: #{reweighted_gcn_forward.7} parent=27 // pred_check_branch
                %128 = sbr.rel (0) target = $region43
              $region42: #{reweighted_gcn_forward.7} parent=27 // pred_region
                loop: start=0, step=1, limit=1
                $region44: #{reweighted_gcn_forward.7} parent=42 // loop_pre_header
                  _
                $region45: #{reweighted_gcn_forward.7} parent=42 // loop_header
                  %s130 = sphi 0, %s134
                  %p131 = scmp.ge.s32.totalorder %s130, 1
                  %s135 = sphi %s103, %s103
                  %s136 = sphi %s98, %s98
                $region46: #{reweighted_gcn_forward.7} parent=42 // loop_header_branch
                  %133 = sbr.rel (%p131) target = $region50
                $region47: #{reweighted_gcn_forward.7} parent=42 // loop_body
                  %v137 = vld [vmem:[%s135] sm:$0xff]
                  %138 = vst [vmem:[%s136] sm:$0xff] %v137
                  %v139 = vld [vmem:[%s135 + $0x10] sm:$0xff]
                  %140 = vst [vmem:[%s136 + $0x8] sm:$0xff] %v139
                  %v141 = vld [vmem:[%s135 + $0x20] sm:$0xff]
                  %142 = vst [vmem:[%s136 + $0x10] sm:$0xff] %v141
                  %v143 = vld [vmem:[%s135 + $0x30] sm:$0xff]
                  %144 = vst [vmem:[%s136 + $0x18] sm:$0xff] %v143
                $region48: #{reweighted_gcn_forward.7} parent=42 // loop_footer
                  %s134 = sadd.s32 1, %s130
                $region49: #{reweighted_gcn_forward.7} parent=42 // loop_footer_branch
                  %129 = sbr.rel target = $region45
                $region50: #{reweighted_gcn_forward.7} parent=42 // loop_exit
                  _
              $region43: #{reweighted_gcn_forward.7} parent=27 // pred_fallthru
                _
              // Predicated region
              $region51: #{reweighted_gcn_forward.7} parent=27 // pred_check
                _
              $region52: #{reweighted_gcn_forward.7} parent=27 // pred_check_branch
                %146 = sbr.rel target = $region54
              $region53: #{reweighted_gcn_forward.7} parent=27 // pred_region
                _
              $region54: #{reweighted_gcn_forward.7} parent=27 // pred_fallthru
                _
            $region28: #{reweighted_gcn_forward.7} parent=23 // pred_fallthru
              _
            // Predicated region
            $region29: #{reweighted_gcn_forward.7} parent=23 // pred_check
              _
            $region30: #{reweighted_gcn_forward.7} parent=23 // pred_check_branch
              %109 = sbr.rel target = $region32
            $region31: #{reweighted_gcn_forward.7} parent=23 // pred_region
              loop: start=0, step=1, limit=1
              $region33: #{reweighted_gcn_forward.7} parent=31 // loop_pre_header
                _
              $region34: #{reweighted_gcn_forward.7} parent=31 // loop_header
                %s112 = sphi 0, %s116
                %p113 = scmp.ge.s32.totalorder %s112, 1
                %s117 = sphi %s103, %s103
                %s118 = sphi %s98, %s98
              $region35: #{reweighted_gcn_forward.7} parent=31 // loop_header_branch
                %115 = sbr.rel (%p113) target = $region39
              $region36: #{reweighted_gcn_forward.7} parent=31 // loop_body
                %v119 = vld [vmem:[%s117] sm:$0xff]
                %120 = vst [vmem:[%s118] sm:$0xff] %v119
                %v121 = vld [vmem:[%s117 + $0x10] sm:$0xff]
                %122 = vst [vmem:[%s118 + $0x8] sm:$0xff] %v121
                %v123 = vld [vmem:[%s117 + $0x20] sm:$0xff]
                %124 = vst [vmem:[%s118 + $0x10] sm:$0xff] %v123
                %v125 = vld [vmem:[%s117 + $0x30] sm:$0xff]
                %126 = vst [vmem:[%s118 + $0x18] sm:$0xff] %v125
              $region37: #{reweighted_gcn_forward.7} parent=31 // loop_footer
                %s116 = sadd.s32 1, %s112
              $region38: #{reweighted_gcn_forward.7} parent=31 // loop_footer_branch
                %111 = sbr.rel target = $region34
              $region39: #{reweighted_gcn_forward.7} parent=31 // loop_exit
                _
            $region32: #{reweighted_gcn_forward.7} parent=23 // pred_fallthru
              _
          $region24: #{reweighted_gcn_forward.7} parent=19 // pred_fallthru
            _
          %147 = vnop
        $region20: #{reweighted_gcn_forward.7} parent=15 // pred_fallthru
          _
      $region16: #{reweighted_gcn_forward.7} parent=5 // pred_fallthru
        _
      %p148 = scmp.le.s32.totalorder 1, %s7
      %p149 = scmp.lt.s32.totalorder %s7, 5
      %p150 = pnand %p148, %p149
      %p151 = pneg %p150
      // Predicated region
      $region55: #{reweighted_gcn_forward.7} parent=5 // pred_check
        _
      $region56: #{reweighted_gcn_forward.7} parent=5 // pred_check_branch
        %153 = sbr.rel (%p150) target = $region58
      $region57: #{reweighted_gcn_forward.7} parent=5 // pred_region
        %s154 = ssub.s32 %s7, 1
        %s155 = sand.u32 %s34, 1
        %s156 = sand.u32 %s34, 1
        %s157 = smul.addr %s156, 32
        %s158 = scalar_lea.vmem [#allocation3], %s157
        // Predicated region
        $region59: #{reweighted_gcn_forward.7} parent=57 // pred_check
          %p159 = pneg %p47
        $region60: #{reweighted_gcn_forward.7} parent=57 // pred_check_branch
          %161 = sbr.rel (%p159) target = $region62
        $region61: #{reweighted_gcn_forward.7} parent=57 // pred_region
          _
        $region62: #{reweighted_gcn_forward.7} parent=57 // pred_fallthru
          _
        %s162 = sand.u32 %s34, 1
        %s163 = sand.u32 %s34, 1
        %s164 = smul.addr %s163, 32
        %s165 = scalar_lea.vmem [#allocation3], %s164
        %p166 = pneg %p47
        %p167 = pneg %p44
        %p168 = pneg %p73
        %p169 = pneg %p70
        %s170 = smul.u32 16, %s16
        %p171 = scmp.lt.s32.totalorder %s170, 31
        %s172 = scalar_select %p171, %s170, 31
        %s173 = smul.addr %s172, 8
        %s174 = scalar_lea.vmem %s1, %s173
        %s175 = smul.u32 4, %s16
        %s176 = smul.u32 16, %s16
        %p177 = scmp.lt.s32.totalorder %s176, 31
        %s178 = scalar_select %p177, %s176, 31
        %s179 = smul.addr %s178, 8
        %s180 = scalar_lea.vmem %s1, %s179
        %s181 = smul.u32 16, %s16
        %p182 = scmp.eq.s32.totalorder %s17, 0
        // Predicated region
        $region63: #{reweighted_gcn_forward.7} parent=57 // pred_check
          %p183 = pneg %p182
        $region64: #{reweighted_gcn_forward.7} parent=57 // pred_check_branch
          %185 = sbr.rel (%p183) target = $region66
        $region65: #{reweighted_gcn_forward.7} parent=57 // pred_region
          %vm186 = vcmask 7168
          %187 = vst.msk [vmem:[#allocation2] sm:$0xff] %vm186, 0.0
          %188 = vst.msk [vmem:[#allocation2 + $0x8] sm:$0xff] %vm186, 0.0
          %189 = vst.msk [vmem:[#allocation2 + $0x10] sm:$0xff] %vm186, 0.0
          %190 = vst.msk [vmem:[#allocation2 + $0x18] sm:$0xff] %vm186, 0.0
          %191 = vst.msk [vmem:[#allocation2 + $0x20] sm:$0xff] %vm186, 0.0
          %192 = vst.msk [vmem:[#allocation2 + $0x28] sm:$0xff] %vm186, 0.0
          %193 = vst.msk [vmem:[#allocation2 + $0x30] sm:$0xff] %vm186, 0.0
          %194 = vst.msk [vmem:[#allocation2 + $0x38] sm:$0xff] %vm186, 0.0
          %195 = vst.msk [vmem:[#allocation2 + $0x40] sm:$0xff] %vm186, 0.0
          %196 = vst.msk [vmem:[#allocation2 + $0x48] sm:$0xff] %vm186, 0.0
          %197 = vst.msk [vmem:[#allocation2 + $0x50] sm:$0xff] %vm186, 0.0
          %198 = vst.msk [vmem:[#allocation2 + $0x58] sm:$0xff] %vm186, 0.0
          %199 = vst.msk [vmem:[#allocation2 + $0x60] sm:$0xff] %vm186, 0.0
          %200 = vst.msk [vmem:[#allocation2 + $0x68] sm:$0xff] %vm186, 0.0
          %201 = vst.msk [vmem:[#allocation2 + $0x70] sm:$0xff] %vm186, 0.0
          %202 = vst.msk [vmem:[#allocation2 + $0x78] sm:$0xff] %vm186, 0.0
        $region66: #{reweighted_gcn_forward.7} parent=57 // pred_fallthru
          _
        %v203 = vld [vmem:[#allocation2] sm:$0xff]
        %v204 = vld [vmem:[#allocation2 + $0x8] sm:$0xff]
        %v205 = vld [vmem:[#allocation2 + $0x10] sm:$0xff]
        %v206 = vld [vmem:[#allocation2 + $0x18] sm:$0xff]
        %v207 = vld [vmem:[#allocation2 + $0x20] sm:$0xff]
        %v208 = vld [vmem:[#allocation2 + $0x28] sm:$0xff]
        %v209 = vld [vmem:[#allocation2 + $0x30] sm:$0xff]
        %v210 = vld [vmem:[#allocation2 + $0x38] sm:$0xff]
        %v211 = vld [vmem:[#allocation2 + $0x40] sm:$0xff]
        %v212 = vld [vmem:[#allocation2 + $0x48] sm:$0xff]
        %v213 = vld [vmem:[#allocation2 + $0x50] sm:$0xff]
        %v214 = vld [vmem:[#allocation2 + $0x58] sm:$0xff]
        %v215 = vld [vmem:[#allocation2 + $0x60] sm:$0xff]
        %v216 = vld [vmem:[#allocation2 + $0x68] sm:$0xff]
        %v217 = vld [vmem:[#allocation2 + $0x70] sm:$0xff]
        %v218 = vld [vmem:[#allocation2 + $0x78] sm:$0xff]
        %v219 = vld [vmem:[%s158] sm:$0xff]
        %v220 = vld [vmem:[%s158 + $0x8] sm:$0xff]
        %v221 = vld [vmem:[%s158 + $0x10] sm:$0xff]
        %v222 = vld [vmem:[%s158 + $0x18] sm:$0xff]
        %v223 = vunpack.c.0.s8 %v219
        %v224 = vunpack.c.1.s8 %v219
        %v225 = vunpack.c.2.s8 %v219
        %v226 = vunpack.c.3.s8 %v219
        %v227 = vunpack.c.0.s8 %v220
        %v228 = vunpack.c.1.s8 %v220
        %v229 = vunpack.c.2.s8 %v220
        %v230 = vunpack.c.3.s8 %v220
        %v231 = vunpack.c.0.s8 %v221
        %v232 = vunpack.c.1.s8 %v221
        %v233 = vunpack.c.2.s8 %v221
        %v234 = vunpack.c.3.s8 %v221
        %v235 = vunpack.c.0.s8 %v222
        %v236 = vunpack.c.1.s8 %v222
        %v237 = vunpack.c.2.s8 %v222
        %v238 = vunpack.c.3.s8 %v222
        %v239 = vcvt.s32.f32 %v223
        %v240 = vcvt.s32.f32 %v224
        %v241 = vcvt.s32.f32 %v225
        %v242 = vcvt.s32.f32 %v226
        %v243 = vcvt.s32.f32 %v227
        %v244 = vcvt.s32.f32 %v228
        %v245 = vcvt.s32.f32 %v229
        %v246 = vcvt.s32.f32 %v230
        %v247 = vcvt.s32.f32 %v231
        %v248 = vcvt.s32.f32 %v232
        %v249 = vcvt.s32.f32 %v233
        %v250 = vcvt.s32.f32 %v234
        %v251 = vcvt.s32.f32 %v235
        %v252 = vcvt.s32.f32 %v236
        %v253 = vcvt.s32.f32 %v237
        %v254 = vcvt.s32.f32 %v238
        %255 = vadd.xlane.f32.xlu0 %v239
        %v256 = vpop.xlane.xlu0 %255
        %257 = vadd.xlane.f32.xlu0 %v240
        %v258 = vpop.xlane.xlu0 %257
        %259 = vadd.xlane.f32.xlu0 %v241
        %v260 = vpop.xlane.xlu0 %259
        %261 = vadd.xlane.f32.xlu0 %v242
        %v262 = vpop.xlane.xlu0 %261
        %263 = vadd.xlane.f32.xlu0 %v243
        %v264 = vpop.xlane.xlu0 %263
        %265 = vadd.xlane.f32.xlu0 %v244
        %v266 = vpop.xlane.xlu0 %265
        %267 = vadd.xlane.f32.xlu0 %v245
        %v268 = vpop.xlane.xlu0 %267
        %269 = vadd.xlane.f32.xlu0 %v246
        %v270 = vpop.xlane.xlu0 %269
        %271 = vadd.xlane.f32.xlu0 %v247
        %v272 = vpop.xlane.xlu0 %271
        %273 = vadd.xlane.f32.xlu0 %v248
        %v274 = vpop.xlane.xlu0 %273
        %275 = vadd.xlane.f32.xlu0 %v249
        %v276 = vpop.xlane.xlu0 %275
        %277 = vadd.xlane.f32.xlu0 %v250
        %v278 = vpop.xlane.xlu0 %277
        %279 = vadd.xlane.f32.xlu0 %v251
        %v280 = vpop.xlane.xlu0 %279
        %281 = vadd.xlane.f32.xlu0 %v252
        %v282 = vpop.xlane.xlu0 %281
        %283 = vadd.xlane.f32.xlu0 %v253
        %v284 = vpop.xlane.xlu0 %283
        %285 = vadd.xlane.f32.xlu0 %v254
        %v286 = vpop.xlane.xlu0 %285
        %v287 = vadd.f32 %v203, %v256
        %v288 = vadd.f32 %v204, %v258
        %v289 = vadd.f32 %v205, %v260
        %v290 = vadd.f32 %v206, %v262
        %v291 = vadd.f32 %v207, %v264
        %v292 = vadd.f32 %v208, %v266
        %v293 = vadd.f32 %v209, %v268
        %v294 = vadd.f32 %v210, %v270
        %v295 = vadd.f32 %v211, %v272
        %v296 = vadd.f32 %v212, %v274
        %v297 = vadd.f32 %v213, %v276
        %v298 = vadd.f32 %v214, %v278
        %v299 = vadd.f32 %v215, %v280
        %v300 = vadd.f32 %v216, %v282
        %v301 = vadd.f32 %v217, %v284
        %v302 = vadd.f32 %v218, %v286
        %vm303 = vcmask 7168
        %304 = vst.msk [vmem:[#allocation2] sm:$0xff] %vm303, %v287
        %305 = vst.msk [vmem:[#allocation2 + $0x8] sm:$0xff] %vm303, %v288
        %306 = vst.msk [vmem:[#allocation2 + $0x10] sm:$0xff] %vm303, %v289
        %307 = vst.msk [vmem:[#allocation2 + $0x18] sm:$0xff] %vm303, %v290
        %308 = vst.msk [vmem:[#allocation2 + $0x20] sm:$0xff] %vm303, %v291
        %309 = vst.msk [vmem:[#allocation2 + $0x28] sm:$0xff] %vm303, %v292
        %310 = vst.msk [vmem:[#allocation2 + $0x30] sm:$0xff] %vm303, %v293
        %311 = vst.msk [vmem:[#allocation2 + $0x38] sm:$0xff] %vm303, %v294
        %312 = vst.msk [vmem:[#allocation2 + $0x40] sm:$0xff] %vm303, %v295
        %313 = vst.msk [vmem:[#allocation2 + $0x48] sm:$0xff] %vm303, %v296
        %314 = vst.msk [vmem:[#allocation2 + $0x50] sm:$0xff] %vm303, %v297
        %315 = vst.msk [vmem:[#allocation2 + $0x58] sm:$0xff] %vm303, %v298
        %316 = vst.msk [vmem:[#allocation2 + $0x60] sm:$0xff] %vm303, %v299
        %317 = vst.msk [vmem:[#allocation2 + $0x68] sm:$0xff] %vm303, %v300
        %318 = vst.msk [vmem:[#allocation2 + $0x70] sm:$0xff] %vm303, %v301
        %319 = vst.msk [vmem:[#allocation2 + $0x78] sm:$0xff] %vm303, %v302
        %p320 = scmp.eq.s32.totalorder %s17, 1
        // Predicated region
        $region67: #{reweighted_gcn_forward.7} parent=57 // pred_check
          %p321 = pneg %p320
        $region68: #{reweighted_gcn_forward.7} parent=57 // pred_check_branch
          %323 = sbr.rel (%p321) target = $region70
        $region69: #{reweighted_gcn_forward.7} parent=57 // pred_region
          %v324 = vld [vmem:[#allocation2] sm:$0xff]
          %v325 = vld [vmem:[#allocation2 + $0x8] sm:$0xff]
          %v326 = vld [vmem:[#allocation2 + $0x10] sm:$0xff]
          %v327 = vld [vmem:[#allocation2 + $0x18] sm:$0xff]
          %v328 = vld [vmem:[#allocation2 + $0x20] sm:$0xff]
          %v329 = vld [vmem:[#allocation2 + $0x28] sm:$0xff]
          %v330 = vld [vmem:[#allocation2 + $0x30] sm:$0xff]
          %v331 = vld [vmem:[#allocation2 + $0x38] sm:$0xff]
          %v332 = vld [vmem:[#allocation2 + $0x40] sm:$0xff]
          %v333 = vld [vmem:[#allocation2 + $0x48] sm:$0xff]
          %v334 = vld [vmem:[#allocation2 + $0x50] sm:$0xff]
          %v335 = vld [vmem:[#allocation2 + $0x58] sm:$0xff]
          %v336 = vld [vmem:[#allocation2 + $0x60] sm:$0xff]
          %v337 = vld [vmem:[#allocation2 + $0x68] sm:$0xff]
          %v338 = vld [vmem:[#allocation2 + $0x70] sm:$0xff]
          %v339 = vld [vmem:[#allocation2 + $0x78] sm:$0xff]
          %v340 = vadd.f32 %v324, 1.0
          %v341 = vadd.f32 %v325, 1.0
          %v342 = vadd.f32 %v326, 1.0
          %v343 = vadd.f32 %v327, 1.0
          %v344 = vadd.f32 %v328, 1.0
          %v345 = vadd.f32 %v329, 1.0
          %v346 = vadd.f32 %v330, 1.0
          %v347 = vadd.f32 %v331, 1.0
          %v348 = vadd.f32 %v332, 1.0
          %v349 = vadd.f32 %v333, 1.0
          %v350 = vadd.f32 %v334, 1.0
          %v351 = vadd.f32 %v335, 1.0
          %v352 = vadd.f32 %v336, 1.0
          %v353 = vadd.f32 %v337, 1.0
          %v354 = vadd.f32 %v338, 1.0
          %v355 = vadd.f32 %v339, 1.0
          %v356 = vrsqrt.pop %v340
          %v357 = vrsqrt.pop %v341
          %v358 = vrsqrt.pop %v342
          %v359 = vrsqrt.pop %v343
          %v360 = vrsqrt.pop %v344
          %v361 = vrsqrt.pop %v345
          %v362 = vrsqrt.pop %v346
          %v363 = vrsqrt.pop %v347
          %v364 = vrsqrt.pop %v348
          %v365 = vrsqrt.pop %v349
          %v366 = vrsqrt.pop %v350
          %v367 = vrsqrt.pop %v351
          %v368 = vrsqrt.pop %v352
          %v369 = vrsqrt.pop %v353
          %v370 = vrsqrt.pop %v354
          %v371 = vrsqrt.pop %v355
          %372 = vst.msk [vmem:[%s180] sm:$0xff] %vm303, %v356
          %373 = vst.msk [vmem:[%s180 + $0x8] sm:$0xff] %vm303, %v357
          %374 = vst.msk [vmem:[%s180 + $0x10] sm:$0xff] %vm303, %v358
          %375 = vst.msk [vmem:[%s180 + $0x18] sm:$0xff] %vm303, %v359
          %376 = vst.msk [vmem:[%s180 + $0x20] sm:$0xff] %vm303, %v360
          %377 = vst.msk [vmem:[%s180 + $0x28] sm:$0xff] %vm303, %v361
          %378 = vst.msk [vmem:[%s180 + $0x30] sm:$0xff] %vm303, %v362
          %379 = vst.msk [vmem:[%s180 + $0x38] sm:$0xff] %vm303, %v363
          %380 = vst.msk [vmem:[%s180 + $0x40] sm:$0xff] %vm303, %v364
          %381 = vst.msk [vmem:[%s180 + $0x48] sm:$0xff] %vm303, %v365
          %382 = vst.msk [vmem:[%s180 + $0x50] sm:$0xff] %vm303, %v366
          %383 = vst.msk [vmem:[%s180 + $0x58] sm:$0xff] %vm303, %v367
          %384 = vst.msk [vmem:[%s180 + $0x60] sm:$0xff] %vm303, %v368
          %385 = vst.msk [vmem:[%s180 + $0x68] sm:$0xff] %vm303, %v369
          %386 = vst.msk [vmem:[%s180 + $0x70] sm:$0xff] %vm303, %v370
          %387 = vst.msk [vmem:[%s180 + $0x78] sm:$0xff] %vm303, %v371
        $region70: #{reweighted_gcn_forward.7} parent=57 // pred_fallthru
          _
        %s388 = smul.u32 16, %s16
        %p389 = scmp.lt.s32.totalorder %s388, 31
        %s390 = scalar_select %p389, %s388, 31
        %s391 = smul.addr %s390, 8
        %s392 = scalar_lea.vmem %s1, %s391
        // Predicated region
        $region71: #{reweighted_gcn_forward.7} parent=57 // pred_check
          %p393 = pneg %p70
        $region72: #{reweighted_gcn_forward.7} parent=57 // pred_check_branch
          %395 = sbr.rel (%p393) target = $region74
        $region73: #{reweighted_gcn_forward.7} parent=57 // pred_region
          %s396 = smul.u32 16, %s16
        $region74: #{reweighted_gcn_forward.7} parent=57 // pred_fallthru
          _
      $region58: #{reweighted_gcn_forward.7} parent=5 // pred_fallthru
        _
      %p397 = scmp.le.s32.totalorder 2, %s7
      // Predicated region
      $region75: #{reweighted_gcn_forward.7} parent=5 // pred_check
        %p398 = pneg %p397
      $region76: #{reweighted_gcn_forward.7} parent=5 // pred_check_branch
        %400 = sbr.rel (%p398) target = $region78
      $region77: #{reweighted_gcn_forward.7} parent=5 // pred_region
        %s401 = ssub.s32 %s7, 2
        // Predicated region
        $region79: #{reweighted_gcn_forward.7} parent=77 // pred_check
          %p402 = pneg %p76
        $region80: #{reweighted_gcn_forward.7} parent=77 // pred_check_branch
          %404 = sbr.rel (%p402) target = $region82
        $region81: #{reweighted_gcn_forward.7} parent=77 // pred_region
          %s405 = smul.u32 16, %s18
          %p406 = scmp.lt.s32.totalorder %s405, 31
          %s407 = scalar_select %p406, %s405, 31
          %s408 = smul.addr %s407, 8
          %s409 = scalar_lea.vmem %s1, %s408
        $region82: #{reweighted_gcn_forward.7} parent=77 // pred_fallthru
          _
      $region78: #{reweighted_gcn_forward.7} parent=5 // pred_fallthru
        _
    $region6: #{reweighted_gcn_forward.7} parent=1 // loop_footer
      %s11 = sadd.s32 1, %s7
    $region7: #{reweighted_gcn_forward.7} parent=1 // loop_footer_branch
      %6 = sbr.rel target = $region3
    $region8: #{reweighted_gcn_forward.7} parent=1 // loop_exit
      _

// kernel: reweighted_gcn_forward.8
$region0: #{reweighted_gcn_forward.8}
  #allocation0 [shape = 'u32[]', space=smem, size = 0x4, offset = 0x4, fixed_abs, tag = 'smem constant byte address 0x4 - core index']
  #allocation1 [shape = 'u32[144,128]{1,0:T(1,128)}', space=vmem, size = 0x12000, scoped, tag = 'internal scratch']
  #allocation2 [shape = 'f32[128,128]{1,0:T(8,128)}', space=vmem, size = 0x10000, scoped, tag = 'scratch operand']
  %s0 = inlined_call_operand.vmem [shape: bf16[256,128], index: 0, kind: input, shape index: {}]
  %s1 = inlined_call_operand.vmem [shape: bf16[128,128], index: 1, kind: input, shape index: {}]
  %s2 = inlined_call_operand.vmem [shape: f32[256,1], index: 2, kind: input, shape index: {}]
  %s3 = inlined_call_operand.vmem [shape: bf16[256,128], index: 3, kind: output, shape index: {}]
  %s4 = sld [smem:[#allocation0]]
  $region53: #{reweighted_gcn_forward.8} parent=0
    _
  %s6 = ssub.s32 1, %s4
  %s7 = scalar_select 0, %s6, %s4
  loop: start=0, step=1, limit=4
  $region2: #{reweighted_gcn_forward.8} parent=0 // loop_pre_header
    _
  $region3: #{reweighted_gcn_forward.8} parent=0 // loop_header
    %s9 = sphi 0, %s13
    %p10 = scmp.ge.s32.totalorder %s9, 4
    %s16 = sphi 0, %s28
    %s17 = sphi 0, %s24
    %s18 = sphi 0, %s16
    %s19 = sphi 0, %s17
    %s20 = sphi 0, %s18
    %s21 = sphi 0, %s19
    %s33 = sphi 0, %s35
    %s36 = sphi 0, %s33
    %s37 = sphi 0, %s36
    %s53 = sphi 0, %s37
    %s57 = sphi 0, %s57
    %s59 = sphi 0, %s57
    %s60 = sphi 0, %s59
    %s74 = sphi 0, %s60
    %s80 = sphi 0, %s82
    %s83 = sphi 0, %s80
    %s84 = sphi 0, %s83
    %s100 = sphi 0, %s84
    %s106 = sphi 0, %s108
    %s109 = sphi 0, %s106
    %s110 = sphi 0, %s109
    %s126 = sphi 0, %s110
  $region4: #{reweighted_gcn_forward.8} parent=0 // loop_header_branch
    %12 = sbr.rel (%p10) target = $region8
  $region5: #{reweighted_gcn_forward.8} parent=0 // loop_body
    %s14 = ssub.s32 %s9, 1
    %s15 = ssub.s32 %s9, 2
    %s22 = sadd.s32 1, %s17
    %p23 = scmp.ge.s32.totalorder %s22, 1
    %s24 = scalar_select %p23, 0, %s22
    %s25 = sadd.s32 1, %s16
    %s26 = scalar_select %p23, %s25, %s16
    %p27 = scmp.ge.s32.totalorder %s26, 2
    %s28 = scalar_select %p27, 0, %s26
    %s29 = ssub.s32 %s16, %s28
    %s30 = ssub.s32 %s17, %s24
    %s31 = sor.u32 %s29, %s30
    %p32 = scmp.eq.s32.totalorder %s31, 0
    %s34 = sadd.s32 %s33, 1
    %s35 = scalar_select %p32, %s33, %s34
    %p38 = pneg %p32
    %p39 = scmp.eq.s32.totalorder %s9, 1
    %p40 = por %p38, %p39
    %p41 = scmp.ne.s32.totalorder %s33, %s36
    %p42 = scmp.eq.s32.totalorder %s9, 0
    %p43 = por %p41, %p42
    %p44 = scmp.ne.s32.totalorder %s33, %s36
    %p45 = scmp.eq.s32.totalorder %s14, 1
    %p46 = por %p44, %p45
    %p47 = scmp.ne.s32.totalorder %s36, %s37
    %p48 = scmp.eq.s32.totalorder %s14, 0
    %p49 = por %p47, %p48
    %p50 = scmp.ne.s32.totalorder %s36, %s37
    %p51 = scmp.eq.s32.totalorder %s15, 1
    %p52 = por %p50, %p51
    %p54 = scmp.ne.s32.totalorder %s37, %s53
    %p55 = scmp.eq.s32.totalorder %s15, 0
    %p56 = por %p54, %p55
    %s58 = sadd.s32 %s57, 1
    %p61 = scmp.eq.s32.totalorder %s9, 1
    %p62 = scmp.ne.s32.totalorder %s57, %s59
    %p63 = scmp.eq.s32.totalorder %s9, 0
    %p64 = por %p62, %p63
    %p65 = scmp.ne.s32.totalorder %s57, %s59
    %p66 = scmp.eq.s32.totalorder %s14, 1
    %p67 = por %p65, %p66
    %p68 = scmp.ne.s32.totalorder %s59, %s60
    %p69 = scmp.eq.s32.totalorder %s14, 0
    %p70 = por %p68, %p69
    %p71 = scmp.ne.s32.totalorder %s59, %s60
    %p72 = scmp.eq.s32.totalorder %s15, 1
    %p73 = por %p71, %p72
    %p75 = scmp.ne.s32.totalorder %s60, %s74
    %p76 = scmp.eq.s32.totalorder %s15, 0
    %p77 = por %p75, %p76
    %s78 = ssub.s32 %s16, %s28
    %p79 = scmp.eq.s32.totalorder %s78, 0
    %s81 = sadd.s32 %s80, 1
    %s82 = scalar_select %p79, %s80, %s81
    %p85 = pneg %p79
    %p86 = scmp.eq.s32.totalorder %s9, 1
    %p87 = por %p85, %p86
    %p88 = scmp.ne.s32.totalorder %s80, %s83
    %p89 = scmp.eq.s32.totalorder %s9, 0
    %p90 = por %p88, %p89
    %p91 = scmp.ne.s32.totalorder %s80, %s83
    %p92 = scmp.eq.s32.totalorder %s14, 1
    %p93 = por %p91, %p92
    %p94 = scmp.ne.s32.totalorder %s83, %s84
    %p95 = scmp.eq.s32.totalorder %s14, 0
    %p96 = por %p94, %p95
    %p97 = scmp.ne.s32.totalorder %s83, %s84
    %p98 = scmp.eq.s32.totalorder %s15, 1
    %p99 = por %p97, %p98
    %p101 = scmp.ne.s32.totalorder %s84, %s100
    %p102 = scmp.eq.s32.totalorder %s15, 0
    %p103 = por %p101, %p102
    %s104 = ssub.s32 %s16, %s28
    %p105 = scmp.eq.s32.totalorder %s104, 0
    %s107 = sadd.s32 %s106, 1
    %s108 = scalar_select %p105, %s106, %s107
    %p111 = pneg %p105
    %p112 = scmp.eq.s32.totalorder %s9, 1
    %p113 = por %p111, %p112
    %p114 = scmp.ne.s32.totalorder %s106, %s109
    %p115 = scmp.eq.s32.totalorder %s9, 0
    %p116 = por %p114, %p115
    %p117 = scmp.ne.s32.totalorder %s106, %s109
    %p118 = scmp.eq.s32.totalorder %s14, 1
    %p119 = por %p117, %p118
    %p120 = scmp.ne.s32.totalorder %s109, %s110
    %p121 = scmp.eq.s32.totalorder %s14, 0
    %p122 = por %p120, %p121
    %p123 = scmp.ne.s32.totalorder %s109, %s110
    %p124 = scmp.eq.s32.totalorder %s15, 1
    %p125 = por %p123, %p124
    %p127 = scmp.ne.s32.totalorder %s110, %s126
    %p128 = scmp.eq.s32.totalorder %s15, 0
    %p129 = por %p127, %p128
    %p130 = scmp.le.s32.totalorder 1, %s9
    %p131 = scmp.lt.s32.totalorder %s9, 3
    %p132 = pnand %p130, %p131
    %p133 = pneg %p132
    // Predicated region
    $region9: #{reweighted_gcn_forward.8} parent=5 // pred_check
      _
    $region10: #{reweighted_gcn_forward.8} parent=5 // pred_check_branch
      %135 = sbr.rel (%p132) target = $region12
    $region11: #{reweighted_gcn_forward.8} parent=5 // pred_region
      %s136 = ssub.s32 %s9, 1
      // Predicated region
      $region13: #{reweighted_gcn_forward.8} parent=11 // pred_check
        %p137 = pneg %p70
      $region14: #{reweighted_gcn_forward.8} parent=11 // pred_check_branch
        %139 = sbr.rel (%p137) target = $region16
      $region15: #{reweighted_gcn_forward.8} parent=11 // pred_region
        _
      $region16: #{reweighted_gcn_forward.8} parent=11 // pred_fallthru
        _
    $region12: #{reweighted_gcn_forward.8} parent=5 // pred_fallthru
      _
    %p140 = scmp.lt.s32.totalorder %s9, 2
    // Predicated region
    $region17: #{reweighted_gcn_forward.8} parent=5 // pred_check
      %p141 = pneg %p140
    $region18: #{reweighted_gcn_forward.8} parent=5 // pred_check_branch
      %143 = sbr.rel (%p141) target = $region20
    $region19: #{reweighted_gcn_forward.8} parent=5 // pred_region
      // Predicated region
      $region21: #{reweighted_gcn_forward.8} parent=19 // pred_check
        %p144 = pneg %p43
      $region22: #{reweighted_gcn_forward.8} parent=19 // pred_check_branch
        %146 = sbr.rel (%p144) target = $region24
      $region23: #{reweighted_gcn_forward.8} parent=19 // pred_region
        %s147 = smul.u32 16, %s16
        %p148 = scmp.lt.s32.totalorder %s147, 31
        %s149 = scalar_select %p148, %s147, 31
        %p150 = scmp.lt.s32.totalorder %s17, 0
        %s151 = scalar_select %p150, %s17, 0
        %s152 = sadd.s32 %s151, %s149
        %s153 = smul.addr %s152, 4
        %s154 = scalar_lea.vmem %s0, %s153
        %s155 = smul.u32 16, %s16
      $region24: #{reweighted_gcn_forward.8} parent=19 // pred_fallthru
        _
      // Predicated region
      $region25: #{reweighted_gcn_forward.8} parent=19 // pred_check
        %p156 = pneg %p90
      $region26: #{reweighted_gcn_forward.8} parent=19 // pred_check_branch
        %158 = sbr.rel (%p156) target = $region28
      $region27: #{reweighted_gcn_forward.8} parent=19 // pred_region
        %s159 = smul.u32 16, %s16
        %p160 = scmp.lt.s32.totalorder %s159, 31
        %s161 = scalar_select %p160, %s159, 31
        %s162 = smul.addr %s161, 8
        %s163 = scalar_lea.vmem %s2, %s162
        %s164 = smul.u32 16, %s16
      $region28: #{reweighted_gcn_forward.8} parent=19 // pred_fallthru
        _
    $region20: #{reweighted_gcn_forward.8} parent=5 // pred_fallthru
      _
    %p165 = scmp.le.s32.totalorder 1, %s9
    %p166 = scmp.lt.s32.totalorder %s9, 3
    %p167 = pnand %p165, %p166
    %p168 = pneg %p167
    // Predicated region
    $region29: #{reweighted_gcn_forward.8} parent=5 // pred_check
      _
    $region30: #{reweighted_gcn_forward.8} parent=5 // pred_check_branch
      %170 = sbr.rel (%p167) target = $region32
    $region31: #{reweighted_gcn_forward.8} parent=5 // pred_region
      %s171 = ssub.s32 %s9, 1
      %s172 = smul.u32 16, %s18
      %p173 = scmp.lt.s32.totalorder %s172, 31
      %s174 = scalar_select %p173, %s172, 31
      %p175 = scmp.lt.s32.totalorder %s19, 0
      %s176 = scalar_select %p175, %s19, 0
      %s177 = sadd.s32 %s176, %s174
      %s178 = smul.addr %s177, 4
      %s179 = scalar_lea.vmem %s0, %s178
      %p180 = pneg %p49
      %p181 = pneg %p46
      %p182 = pneg %p70
      %p183 = pneg %p67
      %s184 = smul.u32 16, %s18
      %p185 = scmp.lt.s32.totalorder %s184, 31
      %s186 = scalar_select %p185, %s184, 31
      %s187 = smul.addr %s186, 8
      %s188 = scalar_lea.vmem %s2, %s187
      %p189 = pneg %p96
      %p190 = pneg %p93
      %p191 = pneg %p122
      %p192 = pneg %p119
      %s193 = smul.u32 16, %s18
      %p194 = scmp.lt.s32.totalorder %s193, 31
      %s195 = scalar_select %p194, %s193, 31
      %s196 = smul.addr %s195, 4
      %s197 = scalar_lea.vmem %s3, %s196
      %s198 = smul.u32 16, %s18
      %p199 = scmp.lt.s32.totalorder %s198, 31
      %s200 = scalar_select %p199, %s198, 31
      %p201 = scmp.lt.s32.totalorder %s19, 0
      %s202 = scalar_select %p201, %s19, 0
      %s203 = sadd.s32 %s202, %s200
      %s204 = smul.addr %s203, 4
      %s205 = scalar_lea.vmem %s0, %s204
      %s206 = smul.u32 16, %s18
      %s207 = smul.u32 16, %s18
      %p208 = scmp.lt.s32.totalorder %s207, 31
      %s209 = scalar_select %p208, %s207, 31
      %s210 = smul.addr %s209, 8
      %s211 = scalar_lea.vmem %s2, %s210
      %s212 = smul.u32 16, %s18
      %s213 = smul.u32 16, %s18
      %p214 = scmp.lt.s32.totalorder %s213, 31
      %s215 = scalar_select %p214, %s213, 31
      %s216 = smul.addr %s215, 4
      %s217 = scalar_lea.vmem %s3, %s216
      %s218 = smul.u32 16, %s18
      %p220 = scmp.eq.s32.totalorder %s19, 0
      // Predicated region
      $region33: #{reweighted_gcn_forward.8} parent=31 // pred_check
        %p221 = pneg %p220
      $region34: #{reweighted_gcn_forward.8} parent=31 // pred_check_branch
        %223 = sbr.rel (%p221) target = $region36
      $region35: #{reweighted_gcn_forward.8} parent=31 // pred_region
        %224 = vst [vmem:[#allocation2] sm:$0xff] 0.0
        %225 = vst [vmem:[#allocation2 + $0x8] sm:$0xff] 0.0
        %226 = vst [vmem:[#allocation2 + $0x10] sm:$0xff] 0.0
        %227 = vst [vmem:[#allocation2 + $0x18] sm:$0xff] 0.0
        %228 = vst [vmem:[#allocation2 + $0x20] sm:$0xff] 0.0
        %229 = vst [vmem:[#allocation2 + $0x28] sm:$0xff] 0.0
        %230 = vst [vmem:[#allocation2 + $0x30] sm:$0xff] 0.0
        %231 = vst [vmem:[#allocation2 + $0x38] sm:$0xff] 0.0
        %232 = vst [vmem:[#allocation2 + $0x40] sm:$0xff] 0.0
        %233 = vst [vmem:[#allocation2 + $0x48] sm:$0xff] 0.0
        %234 = vst [vmem:[#allocation2 + $0x50] sm:$0xff] 0.0
        %235 = vst [vmem:[#allocation2 + $0x58] sm:$0xff] 0.0
        %236 = vst [vmem:[#allocation2 + $0x60] sm:$0xff] 0.0
        %237 = vst [vmem:[#allocation2 + $0x68] sm:$0xff] 0.0
        %238 = vst [vmem:[#allocation2 + $0x70] sm:$0xff] 0.0
        %239 = vst [vmem:[#allocation2 + $0x78] sm:$0xff] 0.0
      $region36: #{reweighted_gcn_forward.8} parent=31 // pred_fallthru
        _
      %s240 = smul.u32 %s19, 128
      %v241 = vld [vmem:[#allocation2] sm:$0xff]
      %v242 = vld [vmem:[#allocation2 + $0x8] sm:$0xff]
      %v243 = vld [vmem:[#allocation2 + $0x10] sm:$0xff]
      %v244 = vld [vmem:[#allocation2 + $0x18] sm:$0xff]
      %v245 = vld [vmem:[#allocation2 + $0x20] sm:$0xff]
      %v246 = vld [vmem:[#allocation2 + $0x28] sm:$0xff]
      %v247 = vld [vmem:[#allocation2 + $0x30] sm:$0xff]
      %v248 = vld [vmem:[#allocation2 + $0x38] sm:$0xff]
      %v249 = vld [vmem:[#allocation2 + $0x40] sm:$0xff]
      %v250 = vld [vmem:[#allocation2 + $0x48] sm:$0xff]
      %v251 = vld [vmem:[#allocation2 + $0x50] sm:$0xff]
      %v252 = vld [vmem:[#allocation2 + $0x58] sm:$0xff]
      %v253 = vld [vmem:[#allocation2 + $0x60] sm:$0xff]
      %v254 = vld [vmem:[#allocation2 + $0x68] sm:$0xff]
      %v255 = vld [vmem:[#allocation2 + $0x70] sm:$0xff]
      %v256 = vld [vmem:[#allocation2 + $0x78] sm:$0xff]
      %v257 = vld [vmem:[%s205] sm:$0xf]
      %v258 = vld [vmem:[%s205 + $0x4] sm:$0xf]
      %v259 = vld [vmem:[%s205 + $0x8] sm:$0xf]
      %v260 = vld [vmem:[%s205 + $0xc] sm:$0xf]
      %v261 = vld [vmem:[%s205 + $0x10] sm:$0xf]
      %v262 = vld [vmem:[%s205 + $0x14] sm:$0xf]
      %v263 = vld [vmem:[%s205 + $0x18] sm:$0xf]
      %v264 = vld [vmem:[%s205 + $0x1c] sm:$0xf]
      %v265 = vld [vmem:[%s205 + $0x20] sm:$0xf]
      %v266 = vld [vmem:[%s205 + $0x24] sm:$0xf]
      %v267 = vld [vmem:[%s205 + $0x28] sm:$0xf]
      %v268 = vld [vmem:[%s205 + $0x2c] sm:$0xf]
      %v269 = vld [vmem:[%s205 + $0x30] sm:$0xf]
      %v270 = vld [vmem:[%s205 + $0x34] sm:$0xf]
      %v271 = vld [vmem:[%s205 + $0x38] sm:$0xf]
      %v272 = vld [vmem:[%s205 + $0x3c] sm:$0xf]
      %s273 = sshra.s32 %s240, 3
      %s274 = sand.u32 %s240, 7
      %s275 = smul.addr %s273, 4
      %s276 = scalar_lea.vmem %s1, %s275
      %v277 = vld [vmem:[%s276] sm:$0xf]
      %v278 = vld [vmem:[%s276 + $0x4] sm:$0xf]
      %v279 = vld [vmem:[%s276 + $0x8] sm:$0xf]
      %v280 = vld [vmem:[%s276 + $0xc] sm:$0xf]
      %v281 = vld [vmem:[%s276 + $0x10] sm:$0xf]
      %v282 = vld [vmem:[%s276 + $0x14] sm:$0xf]
      %v283 = vld [vmem:[%s276 + $0x18] sm:$0xf]
      %v284 = vld [vmem:[%s276 + $0x1c] sm:$0xf]
      %v285 = vld [vmem:[%s276 + $0x20] sm:$0xf]
      %v286 = vld [vmem:[%s276 + $0x24] sm:$0xf]
      %v287 = vld [vmem:[%s276 + $0x28] sm:$0xf]
      %v288 = vld [vmem:[%s276 + $0x2c] sm:$0xf]
      %v289 = vld [vmem:[%s276 + $0x30] sm:$0xf]
      %v290 = vld [vmem:[%s276 + $0x34] sm:$0xf]
      %v291 = vld [vmem:[%s276 + $0x38] sm:$0xf]
      %v292 = vld [vmem:[%s276 + $0x3c] sm:$0xf]
      %v309 = vunpack.c.l.b16 %v257
      %v310 = vunpack.c.l.b16 %v258
      %v311 = vunpack.c.l.b16 %v259
      %v312 = vunpack.c.l.b16 %v260
      %v313 = vunpack.c.l.b16 %v261
      %v314 = vunpack.c.l.b16 %v262
      %v315 = vunpack.c.l.b16 %v263
      %v316 = vunpack.c.l.b16 %v264
      %v317 = vunpack.c.l.b16 %v265
      %v318 = vunpack.c.l.b16 %v266
      %v319 = vunpack.c.l.b16 %v267
      %v320 = vunpack.c.l.b16 %v268
      %v321 = vunpack.c.l.b16 %v269
      %v322 = vunpack.c.l.b16 %v270
      %v323 = vunpack.c.l.b16 %v271
      %v324 = vunpack.c.l.b16 %v272
      %v325 = vpack.c.b16 %v310, %v309
      %v326 = vpack.c.b16 %v312, %v311
      %v327 = vpack.c.b16 %v314, %v313
      %v328 = vpack.c.b16 %v316, %v315
      %v329 = vpack.c.b16 %v318, %v317
      %v330 = vpack.c.b16 %v320, %v319
      %v331 = vpack.c.b16 %v322, %v321
      %v332 = vpack.c.b16 %v324, %v323
      %v357 = vunpack.c.l.b16 %v277
      %v358 = vunpack.c.l.b16 %v278
      %v359 = vunpack.c.l.b16 %v279
      %v360 = vunpack.c.l.b16 %v280
      %v361 = vunpack.c.l.b16 %v281
      %v362 = vunpack.c.l.b16 %v282
      %v363 = vunpack.c.l.b16 %v283
      %v364 = vunpack.c.l.b16 %v284
      %v365 = vunpack.c.l.b16 %v285
      %v366 = vunpack.c.l.b16 %v286
      %v367 = vunpack.c.l.b16 %v287
      %v368 = vunpack.c.l.b16 %v288
      %v369 = vunpack.c.l.b16 %v289
      %v370 = vunpack.c.l.b16 %v290
      %v371 = vunpack.c.l.b16 %v291
      %v372 = vunpack.c.l.b16 %v292
      %v373 = vpack.c.b16 %v358, %v357
      %v374 = vpack.c.b16 %v360, %v359
      %v375 = vpack.c.b16 %v362, %v361
      %v376 = vpack.c.b16 %v364, %v363
      %v377 = vpack.c.b16 %v366, %v365
      %v378 = vpack.c.b16 %v368, %v367
      %v379 = vpack.c.b16 %v370, %v369
      %v380 = vpack.c.b16 %v372, %v371
      %389 = vmatprep.subr.bf16.mxu0 0
      %390 = vmatpush1.bf16.msra.mxu0 %v373
      %391 = vmatprep.subr.bf16.mxu0 0
      %392 = vmatpush1.bf16.msra.mxu0 %v374
      %393 = vmatprep.subr.bf16.mxu0 0
      %394 = vmatpush1.bf16.msra.mxu0 %v375
      %395 = vmatprep.subr.bf16.mxu0 0
      %396 = vmatpush1.bf16.msra.mxu0 %v376
      %397 = vmatprep.subr.bf16.mxu0 0
      %398 = vmatpush1.bf16.msra.mxu0 %v377
      %399 = vmatprep.subr.bf16.mxu0 0
      %400 = vmatpush1.bf16.msra.mxu0 %v378
      %401 = vmatprep.subr.bf16.mxu0 0
      %402 = vmatpush1.bf16.msra.mxu0 %v379
      %403 = vmatprep.subr.bf16.mxu0 0
      %404 = vmatpush1.bf16.msra.mxu0 %v380
      %405 = vmatprep.subr.bf16.mxu0 0
      %406 = vmatpush1.bf16.msra.mxu0 0
      %407 = vmatprep.subr.bf16.mxu0 0
      %408 = vmatpush1.bf16.msra.mxu0 0
      %409 = vmatprep.subr.bf16.mxu0 0
      %410 = vmatpush1.bf16.msra.mxu0 0
      %411 = vmatprep.subr.bf16.mxu0 0
      %412 = vmatpush1.bf16.msra.mxu0 0
      %413 = vmatprep.subr.bf16.mxu0 0
      %414 = vmatpush1.bf16.msra.mxu0 0
      %415 = vmatprep.subr.bf16.mxu0 0
      %416 = vmatpush1.bf16.msra.mxu0 0
      %417 = vmatprep.subr.bf16.mxu0 0
      %418 = vmatpush1.bf16.msra.mxu0 0
      %419 = vmatprep.subr.bf16.mxu0 0
      %420 = vmatpush1.bf16.msra.mxu0 0
      %421 = vmatprep.mubr.bf16.mxu0 0
      %422 = vmatmul.mubr.bf16.gmra.mrb[0].mxu0 %v325
      %v423 = vpop.f32.mrb[0].mxu0
      %v424 = vadd.f32 0.0, %v423
      %v425 = vpop.f32.mrb[0].mxu0
      %v426 = vpop.f32.mrb[0].mxu0
      %v427 = vadd.f32 0.0, %v426
      %v428 = vpop.f32.mrb[0].mxu0
      %429 = vmatprep.mubr.bf16.mxu0 0
      %430 = vmatmul.mubr.bf16.gmra.mrb[0].mxu0 %v326
      %v431 = vpop.f32.mrb[0].mxu0
      %v432 = vadd.f32 0.0, %v431
      %v433 = vpop.f32.mrb[0].mxu0
      %v434 = vpop.f32.mrb[0].mxu0
      %v435 = vadd.f32 0.0, %v434
      %v436 = vpop.f32.mrb[0].mxu0
      %437 = vmatprep.mubr.bf16.mxu0 0
      %438 = vmatmul.mubr.bf16.gmra.mrb[0].mxu0 %v327
      %v439 = vpop.f32.mrb[0].mxu0
      %v440 = vadd.f32 0.0, %v439
      %v441 = vpop.f32.mrb[0].mxu0
      %v442 = vpop.f32.mrb[0].mxu0
      %v443 = vadd.f32 0.0, %v442
      %v444 = vpop.f32.mrb[0].mxu0
      %445 = vmatprep.mubr.bf16.mxu0 0
      %446 = vmatmul.mubr.bf16.gmra.mrb[0].mxu0 %v328
      %v447 = vpop.f32.mrb[0].mxu0
      %v448 = vadd.f32 0.0, %v447
      %v449 = vpop.f32.mrb[0].mxu0
      %v450 = vpop.f32.mrb[0].mxu0
      %v451 = vadd.f32 0.0, %v450
      %v452 = vpop.f32.mrb[0].mxu0
      %453 = vmatprep.mubr.bf16.mxu0 0
      %454 = vmatmul.mubr.bf16.gmra.mrb[0].mxu0 %v329
      %v455 = vpop.f32.mrb[0].mxu0
      %v456 = vadd.f32 0.0, %v455
      %v457 = vpop.f32.mrb[0].mxu0
      %v458 = vpop.f32.mrb[0].mxu0
      %v459 = vadd.f32 0.0, %v458
      %v460 = vpop.f32.mrb[0].mxu0
      %461 = vmatprep.mubr.bf16.mxu0 0
      %462 = vmatmul.mubr.bf16.gmra.mrb[0].mxu0 %v330
      %v463 = vpop.f32.mrb[0].mxu0
      %v464 = vadd.f32 0.0, %v463
      %v465 = vpop.f32.mrb[0].mxu0
      %v466 = vpop.f32.mrb[0].mxu0
      %v467 = vadd.f32 0.0, %v466
      %v468 = vpop.f32.mrb[0].mxu0
      %469 = vmatprep.mubr.bf16.mxu0 0
      %470 = vmatmul.mubr.bf16.gmra.mrb[0].mxu0 %v331
      %v471 = vpop.f32.mrb[0].mxu0
      %v472 = vadd.f32 0.0, %v471
      %v473 = vpop.f32.mrb[0].mxu0
      %v474 = vpop.f32.mrb[0].mxu0
      %v475 = vadd.f32 0.0, %v474
      %v476 = vpop.f32.mrb[0].mxu0
      %477 = vmatprep.mubr.bf16.mxu0 0
      %478 = vmatmul.mubr.bf16.gmra.mrb[0].mxu0 %v332
      %v479 = vpop.f32.mrb[0].mxu0
      %v480 = vadd.f32 0.0, %v479
      %v481 = vpop.f32.mrb[0].mxu0
      %v482 = vpop.f32.mrb[0].mxu0
      %v483 = vadd.f32 0.0, %v482
      %v484 = vpop.f32.mrb[0].mxu0
      %485 = vdwg.mxu0
      %v486 = vadd.f32 %v241, %v424
      %v487 = vadd.f32 %v242, %v427
      %v488 = vadd.f32 %v243, %v432
      %v489 = vadd.f32 %v244, %v435
      %v490 = vadd.f32 %v245, %v440
      %v491 = vadd.f32 %v246, %v443
      %v492 = vadd.f32 %v247, %v448
      %v493 = vadd.f32 %v248, %v451
      %v494 = vadd.f32 %v249, %v456
      %v495 = vadd.f32 %v250, %v459
      %v496 = vadd.f32 %v251, %v464
      %v497 = vadd.f32 %v252, %v467
      %v498 = vadd.f32 %v253, %v472
      %v499 = vadd.f32 %v254, %v475
      %v500 = vadd.f32 %v255, %v480
      %v501 = vadd.f32 %v256, %v483
      %502 = vst [vmem:[#allocation2] sm:$0xff] %v486
      %503 = vst [vmem:[#allocation2 + $0x8] sm:$0xff] %v487
      %504 = vst [vmem:[#allocation2 + $0x10] sm:$0xff] %v488
      %505 = vst [vmem:[#allocation2 + $0x18] sm:$0xff] %v489
      %506 = vst [vmem:[#allocation2 + $0x20] sm:$0xff] %v490
      %507 = vst [vmem:[#allocation2 + $0x28] sm:$0xff] %v491
      %508 = vst [vmem:[#allocation2 + $0x30] sm:$0xff] %v492
      %509 = vst [vmem:[#allocation2 + $0x38] sm:$0xff] %v493
      %510 = vst [vmem:[#allocation2 + $0x40] sm:$0xff] %v494
      %511 = vst [vmem:[#allocation2 + $0x48] sm:$0xff] %v495
      %512 = vst [vmem:[#allocation2 + $0x50] sm:$0xff] %v496
      %513 = vst [vmem:[#allocation2 + $0x58] sm:$0xff] %v497
      %514 = vst [vmem:[#allocation2 + $0x60] sm:$0xff] %v498
      %515 = vst [vmem:[#allocation2 + $0x68] sm:$0xff] %v499
      %516 = vst [vmem:[#allocation2 + $0x70] sm:$0xff] %v500
      %517 = vst [vmem:[#allocation2 + $0x78] sm:$0xff] %v501
      // Predicated region
      $region37: #{reweighted_gcn_forward.8} parent=31 // pred_check
        %p518 = pneg %p220
      $region38: #{reweighted_gcn_forward.8} parent=31 // pred_check_branch
        %520 = sbr.rel (%p518) target = $region40
      $region39: #{reweighted_gcn_forward.8} parent=31 // pred_region
        %v521 = vld [vmem:[%s211] sm:$0xff]
        %v522 = vld [vmem:[%s211 + $0x8] sm:$0xff]
        %v523 = vld [vmem:[%s211 + $0x10] sm:$0xff]
        %v524 = vld [vmem:[%s211 + $0x18] sm:$0xff]
        %v525 = vld [vmem:[%s211 + $0x20] sm:$0xff]
        %v526 = vld [vmem:[%s211 + $0x28] sm:$0xff]
        %v527 = vld [vmem:[%s211 + $0x30] sm:$0xff]
        %v528 = vld [vmem:[%s211 + $0x38] sm:$0xff]
        %v529 = vld [vmem:[%s211 + $0x40] sm:$0xff]
        %v530 = vld [vmem:[%s211 + $0x48] sm:$0xff]
        %v531 = vld [vmem:[%s211 + $0x50] sm:$0xff]
        %v532 = vld [vmem:[%s211 + $0x58] sm:$0xff]
        %v533 = vld [vmem:[%s211 + $0x60] sm:$0xff]
        %v534 = vld [vmem:[%s211 + $0x68] sm:$0xff]
        %v535 = vld [vmem:[%s211 + $0x70] sm:$0xff]
        %v536 = vld [vmem:[%s211 + $0x78] sm:$0xff]
        %v537 = vld [vmem:[#allocation2] sm:$0xff]
        %v538 = vld [vmem:[#allocation2 + $0x8] sm:$0xff]
        %v539 = vld [vmem:[#allocation2 + $0x10] sm:$0xff]
        %v540 = vld [vmem:[#allocation2 + $0x18] sm:$0xff]
        %v541 = vld [vmem:[#allocation2 + $0x20] sm:$0xff]
        %v542 = vld [vmem:[#allocation2 + $0x28] sm:$0xff]
        %v543 = vld [vmem:[#allocation2 + $0x30] sm:$0xff]
        %v544 = vld [vmem:[#allocation2 + $0x38] sm:$0xff]
        %v545 = vld [vmem:[#allocation2 + $0x40] sm:$0xff]
        %v546 = vld [vmem:[#allocation2 + $0x48] sm:$0xff]
        %v547 = vld [vmem:[#allocation2 + $0x50] sm:$0xff]
        %v548 = vld [vmem:[#allocation2 + $0x58] sm:$0xff]
        %v549 = vld [vmem:[#allocation2 + $0x60] sm:$0xff]
        %v550 = vld [vmem:[#allocation2 + $0x68] sm:$0xff]
        %v551 = vld [vmem:[#allocation2 + $0x70] sm:$0xff]
        %v552 = vld [vmem:[#allocation2 + $0x78] sm:$0xff]
        %554 = vset.pattern.permute.xlu0 0
        %555 = vperm.xlu0 %554, %v521
        %v556 = vpop.permute.xlu0 %555
        %559 = vset.pattern.permute.xlu0 0
        %560 = vperm.xlu0 %559, %v522
        %v561 = vpop.permute.xlu0 %560
        %564 = vset.pattern.permute.xlu0 0
        %565 = vperm.xlu0 %564, %v523
        %v566 = vpop.permute.xlu0 %565
        %569 = vset.pattern.permute.xlu0 0
        %570 = vperm.xlu0 %569, %v524
        %v571 = vpop.permute.xlu0 %570
        %574 = vset.pattern.permute.xlu0 0
        %575 = vperm.xlu0 %574, %v525
        %v576 = vpop.permute.xlu0 %575
        %579 = vset.pattern.permute.xlu0 0
        %580 = vperm.xlu0 %579, %v526
        %v581 = vpop.permute.xlu0 %580
        %584 = vset.pattern.permute.xlu0 0
        %585 = vperm.xlu0 %584, %v527
        %v586 = vpop.permute.xlu0 %585
        %589 = vset.pattern.permute.xlu0 0
        %590 = vperm.xlu0 %589, %v528
        %v591 = vpop.permute.xlu0 %590
        %594 = vset.pattern.permute.xlu0 0
        %595 = vperm.xlu0 %594, %v529
        %v596 = vpop.permute.xlu0 %595
        %599 = vset.pattern.permute.xlu0 0
        %600 = vperm.xlu0 %599, %v530
        %v601 = vpop.permute.xlu0 %600
        %604 = vset.pattern.permute.xlu0 0
        %605 = vperm.xlu0 %604, %v531
        %v606 = vpop.permute.xlu0 %605
        %609 = vset.pattern.permute.xlu0 0
        %610 = vperm.xlu0 %609, %v532
        %v611 = vpop.permute.xlu0 %610
        %614 = vset.pattern.permute.xlu0 0
        %615 = vperm.xlu0 %614, %v533
        %v616 = vpop.permute.xlu0 %615
        %619 = vset.pattern.permute.xlu0 0
        %620 = vperm.xlu0 %619, %v534
        %v621 = vpop.permute.xlu0 %620
        %624 = vset.pattern.permute.xlu0 0
        %625 = vperm.xlu0 %624, %v535
        %v626 = vpop.permute.xlu0 %625
        %629 = vset.pattern.permute.xlu0 0
        %630 = vperm.xlu0 %629, %v536
        %v631 = vpop.permute.xlu0 %630
        %v633 = vmul.f32 %v556, %v537
        %v634 = vmul.f32 %v561, %v538
        %v635 = vmul.f32 %v566, %v539
        %v636 = vmul.f32 %v571, %v540
        %v637 = vmul.f32 %v576, %v541
        %v638 = vmul.f32 %v581, %v542
        %v639 = vmul.f32 %v586, %v543
        %v640 = vmul.f32 %v591, %v544
        %v641 = vmul.f32 %v596, %v545
        %v642 = vmul.f32 %v601, %v546
        %v643 = vmul.f32 %v606, %v547
        %v644 = vmul.f32 %v611, %v548
        %v645 = vmul.f32 %v616, %v549
        %v646 = vmul.f32 %v621, %v550
        %v647 = vmul.f32 %v626, %v551
        %v648 = vmul.f32 %v631, %v552
        %v649 = vpack.c.bf16 %v634, %v633
        %v650 = vpack.c.bf16 %v636, %v635
        %v651 = vpack.c.bf16 %v638, %v637
        %v652 = vpack.c.bf16 %v640, %v639
        %v653 = vpack.c.bf16 %v642, %v641
        %v654 = vpack.c.bf16 %v644, %v643
        %v655 = vpack.c.bf16 %v646, %v645
        %v656 = vpack.c.bf16 %v648, %v647
        %v665 = vunpack.c.l.b16 %v649
        %v666 = vunpack.c.h.b16 %v649
        %v667 = vunpack.c.l.b16 %v650
        %v668 = vunpack.c.h.b16 %v650
        %v669 = vunpack.c.l.b16 %v651
        %v670 = vunpack.c.h.b16 %v651
        %v671 = vunpack.c.l.b16 %v652
        %v672 = vunpack.c.h.b16 %v652
        %v673 = vunpack.c.l.b16 %v653
        %v674 = vunpack.c.h.b16 %v653
        %v675 = vunpack.c.l.b16 %v654
        %v676 = vunpack.c.h.b16 %v654
        %v677 = vunpack.c.l.b16 %v655
        %v678 = vunpack.c.h.b16 %v655
        %v679 = vunpack.c.l.b16 %v656
        %v680 = vunpack.c.h.b16 %v656
        %v681 = vpack.c.b16 %v665, %v665
        %v682 = vpack.c.b16 %v666, %v666
        %v683 = vpack.c.b16 %v667, %v667
        %v684 = vpack.c.b16 %v668, %v668
        %v685 = vpack.c.b16 %v669, %v669
        %v686 = vpack.c.b16 %v670, %v670
        %v687 = vpack.c.b16 %v671, %v671
        %v688 = vpack.c.b16 %v672, %v672
        %v689 = vpack.c.b16 %v673, %v673
        %v690 = vpack.c.b16 %v674, %v674
        %v691 = vpack.c.b16 %v675, %v675
        %v692 = vpack.c.b16 %v676, %v676
        %v693 = vpack.c.b16 %v677, %v677
        %v694 = vpack.c.b16 %v678, %v678
        %v695 = vpack.c.b16 %v679, %v679
        %v696 = vpack.c.b16 %v680, %v680
        %713 = vst [vmem:[%s217] sm:$0xf] %v681
        %714 = vst [vmem:[%s217 + $0x4] sm:$0xf] %v682
        %715 = vst [vmem:[%s217 + $0x8] sm:$0xf] %v683
        %716 = vst [vmem:[%s217 + $0xc] sm:$0xf] %v684
        %717 = vst [vmem:[%s217 + $0x10] sm:$0xf] %v685
        %718 = vst [vmem:[%s217 + $0x14] sm:$0xf] %v686
        %719 = vst [vmem:[%s217 + $0x18] sm:$0xf] %v687
        %720 = vst [vmem:[%s217 + $0x1c] sm:$0xf] %v688
        %721 = vst [vmem:[%s217 + $0x20] sm:$0xf] %v689
        %722 = vst [vmem:[%s217 + $0x24] sm:$0xf] %v690
        %723 = vst [vmem:[%s217 + $0x28] sm:$0xf] %v691
        %724 = vst [vmem:[%s217 + $0x2c] sm:$0xf] %v692
        %725 = vst [vmem:[%s217 + $0x30] sm:$0xf] %v693
        %726 = vst [vmem:[%s217 + $0x34] sm:$0xf] %v694
        %727 = vst [vmem:[%s217 + $0x38] sm:$0xf] %v695
        %728 = vst [vmem:[%s217 + $0x3c] sm:$0xf] %v696
      $region40: #{reweighted_gcn_forward.8} parent=31 // pred_fallthru
        _
      %s729 = smul.u32 16, %s18
      %p730 = scmp.lt.s32.totalorder %s729, 31
      %s731 = scalar_select %p730, %s729, 31
      %s732 = smul.addr %s731, 4
      %s733 = scalar_lea.vmem %s3, %s732
      // Predicated region
      $region41: #{reweighted_gcn_forward.8} parent=31 // pred_check
        %p734 = pneg %p119
      $region42: #{reweighted_gcn_forward.8} parent=31 // pred_check_branch
        %736 = sbr.rel (%p734) target = $region44
      $region43: #{reweighted_gcn_forward.8} parent=31 // pred_region
        %s737 = smul.u32 16, %s18
      $region44: #{reweighted_gcn_forward.8} parent=31 // pred_fallthru
        _
    $region32: #{reweighted_gcn_forward.8} parent=5 // pred_fallthru
      _
    %p738 = scmp.le.s32.totalorder 2, %s9
    // Predicated region
    $region45: #{reweighted_gcn_forward.8} parent=5 // pred_check
      %p739 = pneg %p738
    $region46: #{reweighted_gcn_forward.8} parent=5 // pred_check_branch
      %741 = sbr.rel (%p739) target = $region48
    $region47: #{reweighted_gcn_forward.8} parent=5 // pred_region
      %s742 = ssub.s32 %s9, 2
      // Predicated region
      $region49: #{reweighted_gcn_forward.8} parent=47 // pred_check
        %p743 = pneg %p125
      $region50: #{reweighted_gcn_forward.8} parent=47 // pred_check_branch
        %745 = sbr.rel (%p743) target = $region52
      $region51: #{reweighted_gcn_forward.8} parent=47 // pred_region
        %s746 = smul.u32 16, %s20
        %p747 = scmp.lt.s32.totalorder %s746, 31
        %s748 = scalar_select %p747, %s746, 31
        %s749 = smul.addr %s748, 4
        %s750 = scalar_lea.vmem %s3, %s749
      $region52: #{reweighted_gcn_forward.8} parent=47 // pred_fallthru
        _
    $region48: #{reweighted_gcn_forward.8} parent=5 // pred_fallthru
      _
  $region6: #{reweighted_gcn_forward.8} parent=0 // loop_footer
    %s13 = sadd.s32 1, %s9
  $region7: #{reweighted_gcn_forward.8} parent=0 // loop_footer_branch
    %8 = sbr.rel target = $region3
  $region8: #{reweighted_gcn_forward.8} parent=0 // loop_exit
    _

// kernel: reweighted_gcn_forward.9
$region0: #{reweighted_gcn_forward.9}
  #allocation0 [shape = 'u32[]', space=smem, size = 0x4, offset = 0x4, fixed_abs, tag = 'smem constant byte address 0x4 - core index']
  #allocation1 [shape = 'u32[144,128]{1,0:T(1,128)}', space=vmem, size = 0x12000, scoped, tag = 'internal scratch']
  #allocation2 [shape = 'f32[128,128]{1,0:T(8,128)}', space=vmem, size = 0x10000, scoped, tag = 'scratch operand']
  %s0 = inlined_call_operand.vmem [shape: s8[256,256], index: 0, kind: input, shape index: {}]
  %s1 = inlined_call_operand.vmem [shape: bf16[256,128], index: 1, kind: input, shape index: {}, may-alias: {1,2}]
  %s2 = inlined_call_operand.vmem [shape: bf16[256,128], index: 2, kind: input, shape index: {}, may-alias: {1,2}]
  %s3 = inlined_call_operand.vmem [shape: f32[256,1], index: 3, kind: input, shape index: {}]
  %s4 = inlined_call_operand.vmem [shape: f32[1,128], index: 4, kind: input, shape index: {}]
  %s5 = inlined_call_operand.vmem [shape: f32[1,128], index: 5, kind: input, shape index: {}]
  %s6 = inlined_call_operand.vmem [shape: f32[1,128], index: 6, kind: input, shape index: {}]
  %s7 = inlined_call_operand.vmem [shape: bf16[256,128], index: 7, kind: output, shape index: {}]
  %s8 = sld [smem:[#allocation0]]
  $region107: #{reweighted_gcn_forward.9} parent=0
    _
  %s10 = ssub.s32 1, %s8
  %s11 = scalar_select 0, %s10, %s8
  $region1: #{reweighted_gcn_forward.9} parent=0
    #allocation3 [shape = 'u8[32768]{0}', space=vmem, size = 0x8000, scoped, tag = 'input window, operand 0']
    loop: start=0, step=1, limit=6
    $region2: #{reweighted_gcn_forward.9} parent=1 // loop_pre_header
      _
    $region3: #{reweighted_gcn_forward.9} parent=1 // loop_header
      %s13 = sphi 0, %s17
      %p14 = scmp.ge.s32.totalorder %s13, 6
      %s20 = sphi 0, %s32
      %s21 = sphi 0, %s28
      %s22 = sphi 0, %s20
      %s23 = sphi 0, %s21
      %s24 = sphi 0, %s22
      %s25 = sphi 0, %s23
      %s37 = sphi 0, %s39
      %s40 = sphi 0, %s37
      %s41 = sphi 0, %s40
      %s57 = sphi 0, %s41
      %s61 = sphi 0, %s61
      %s63 = sphi 0, %s61
      %s64 = sphi 0, %s63
      %s78 = sphi 0, %s64
      %s84 = sphi 0, %s86
      %s87 = sphi 0, %s84
      %s88 = sphi 0, %s87
      %s104 = sphi 0, %s88
      %s110 = sphi 0, %s112
      %s113 = sphi 0, %s110
      %s114 = sphi 0, %s113
      %s130 = sphi 0, %s114
      %s134 = sphi 0, %s134
      %s136 = sphi 0, %s134
      %s137 = sphi 0, %s136
      %s151 = sphi 0, %s137
      %s155 = sphi 0, %s155
      %s157 = sphi 0, %s155
      %s158 = sphi 0, %s157
      %s172 = sphi 0, %s158
      %s176 = sphi 0, %s176
      %s178 = sphi 0, %s176
      %s179 = sphi 0, %s178
      %s193 = sphi 0, %s179
      %s199 = sphi 0, %s201
      %s202 = sphi 0, %s199
      %s203 = sphi 0, %s202
      %s219 = sphi 0, %s203
    $region4: #{reweighted_gcn_forward.9} parent=1 // loop_header_branch
      %16 = sbr.rel (%p14) target = $region8
    $region5: #{reweighted_gcn_forward.9} parent=1 // loop_body
      %s18 = ssub.s32 %s13, 1
      %s19 = ssub.s32 %s13, 2
      %s26 = sadd.s32 1, %s21
      %p27 = scmp.ge.s32.totalorder %s26, 2
      %s28 = scalar_select %p27, 0, %s26
      %s29 = sadd.s32 1, %s20
      %s30 = scalar_select %p27, %s29, %s20
      %p31 = scmp.ge.s32.totalorder %s30, 2
      %s32 = scalar_select %p31, 0, %s30
      %s33 = ssub.s32 %s20, %s32
      %s34 = ssub.s32 %s21, %s28
      %s35 = sor.u32 %s33, %s34
      %p36 = scmp.eq.s32.totalorder %s35, 0
      %s38 = sadd.s32 %s37, 1
      %s39 = scalar_select %p36, %s37, %s38
      %p42 = pneg %p36
      %p43 = scmp.eq.s32.totalorder %s13, 3
      %p44 = por %p42, %p43
      %p45 = scmp.ne.s32.totalorder %s37, %s40
      %p46 = scmp.eq.s32.totalorder %s13, 0
      %p47 = por %p45, %p46
      %p48 = scmp.ne.s32.totalorder %s37, %s40
      %p49 = scmp.eq.s32.totalorder %s18, 3
      %p50 = por %p48, %p49
      %p51 = scmp.ne.s32.totalorder %s40, %s41
      %p52 = scmp.eq.s32.totalorder %s18, 0
      %p53 = por %p51, %p52
      %p54 = scmp.ne.s32.totalorder %s40, %s41
      %p55 = scmp.eq.s32.totalorder %s19, 3
      %p56 = por %p54, %p55
      %p58 = scmp.ne.s32.totalorder %s41, %s57
      %p59 = scmp.eq.s32.totalorder %s19, 0
      %p60 = por %p58, %p59
      %s62 = sadd.s32 %s61, 1
      %p65 = scmp.eq.s32.totalorder %s13, 3
      %p66 = scmp.ne.s32.totalorder %s61, %s63
      %p67 = scmp.eq.s32.totalorder %s13, 0
      %p68 = por %p66, %p67
      %p69 = scmp.ne.s32.totalorder %s61, %s63
      %p70 = scmp.eq.s32.totalorder %s18, 3
      %p71 = por %p69, %p70
      %p72 = scmp.ne.s32.totalorder %s63, %s64
      %p73 = scmp.eq.s32.totalorder %s18, 0
      %p74 = por %p72, %p73
      %p75 = scmp.ne.s32.totalorder %s63, %s64
      %p76 = scmp.eq.s32.totalorder %s19, 3
      %p77 = por %p75, %p76
      %p79 = scmp.ne.s32.totalorder %s64, %s78
      %p80 = scmp.eq.s32.totalorder %s19, 0
      %p81 = por %p79, %p80
      %s82 = ssub.s32 %s20, %s32
      %p83 = scmp.eq.s32.totalorder %s82, 0
      %s85 = sadd.s32 %s84, 1
      %s86 = scalar_select %p83, %s84, %s85
      %p89 = pneg %p83
      %p90 = scmp.eq.s32.totalorder %s13, 3
      %p91 = por %p89, %p90
      %p92 = scmp.ne.s32.totalorder %s84, %s87
      %p93 = scmp.eq.s32.totalorder %s13, 0
      %p94 = por %p92, %p93
      %p95 = scmp.ne.s32.totalorder %s84, %s87
      %p96 = scmp.eq.s32.totalorder %s18, 3
      %p97 = por %p95, %p96
      %p98 = scmp.ne.s32.totalorder %s87, %s88
      %p99 = scmp.eq.s32.totalorder %s18, 0
      %p100 = por %p98, %p99
      %p101 = scmp.ne.s32.totalorder %s87, %s88
      %p102 = scmp.eq.s32.totalorder %s19, 3
      %p103 = por %p101, %p102
      %p105 = scmp.ne.s32.totalorder %s88, %s104
      %p106 = scmp.eq.s32.totalorder %s19, 0
      %p107 = por %p105, %p106
      %s108 = ssub.s32 %s20, %s32
      %p109 = scmp.eq.s32.totalorder %s108, 0
      %s111 = sadd.s32 %s110, 1
      %s112 = scalar_select %p109, %s110, %s111
      %p115 = pneg %p109
      %p116 = scmp.eq.s32.totalorder %s13, 3
      %p117 = por %p115, %p116
      %p118 = scmp.ne.s32.totalorder %s110, %s113
      %p119 = scmp.eq.s32.totalorder %s13, 0
      %p120 = por %p118, %p119
      %p121 = scmp.ne.s32.totalorder %s110, %s113
      %p122 = scmp.eq.s32.totalorder %s18, 3
      %p123 = por %p121, %p122
      %p124 = scmp.ne.s32.totalorder %s113, %s114
      %p125 = scmp.eq.s32.totalorder %s18, 0
      %p126 = por %p124, %p125
      %p127 = scmp.ne.s32.totalorder %s113, %s114
      %p128 = scmp.eq.s32.totalorder %s19, 3
      %p129 = por %p127, %p128
      %p131 = scmp.ne.s32.totalorder %s114, %s130
      %p132 = scmp.eq.s32.totalorder %s19, 0
      %p133 = por %p131, %p132
      %s135 = sadd.s32 %s134, 1
      %p138 = scmp.eq.s32.totalorder %s13, 3
      %p139 = scmp.ne.s32.totalorder %s134, %s136
      %p140 = scmp.eq.s32.totalorder %s13, 0
      %p141 = por %p139, %p140
      %p142 = scmp.ne.s32.totalorder %s134, %s136
      %p143 = scmp.eq.s32.totalorder %s18, 3
      %p144 = por %p142, %p143
      %p145 = scmp.ne.s32.totalorder %s136, %s137
      %p146 = scmp.eq.s32.totalorder %s18, 0
      %p147 = por %p145, %p146
      %p148 = scmp.ne.s32.totalorder %s136, %s137
      %p149 = scmp.eq.s32.totalorder %s19, 3
      %p150 = por %p148, %p149
      %p152 = scmp.ne.s32.totalorder %s137, %s151
      %p153 = scmp.eq.s32.totalorder %s19, 0
      %p154 = por %p152, %p153
      %s156 = sadd.s32 %s155, 1
      %p159 = scmp.eq.s32.totalorder %s13, 3
      %p160 = scmp.ne.s32.totalorder %s155, %s157
      %p161 = scmp.eq.s32.totalorder %s13, 0
      %p162 = por %p160, %p161
      %p163 = scmp.ne.s32.totalorder %s155, %s157
      %p164 = scmp.eq.s32.totalorder %s18, 3
      %p165 = por %p163, %p164
      %p166 = scmp.ne.s32.totalorder %s157, %s158
      %p167 = scmp.eq.s32.totalorder %s18, 0
      %p168 = por %p166, %p167
      %p169 = scmp.ne.s32.totalorder %s157, %s158
      %p170 = scmp.eq.s32.totalorder %s19, 3
      %p171 = por %p169, %p170
      %p173 = scmp.ne.s32.totalorder %s158, %s172
      %p174 = scmp.eq.s32.totalorder %s19, 0
      %p175 = por %p173, %p174
      %s177 = sadd.s32 %s176, 1
      %p180 = scmp.eq.s32.totalorder %s13, 3
      %p181 = scmp.ne.s32.totalorder %s176, %s178
      %p182 = scmp.eq.s32.totalorder %s13, 0
      %p183 = por %p181, %p182
      %p184 = scmp.ne.s32.totalorder %s176, %s178
      %p185 = scmp.eq.s32.totalorder %s18, 3
      %p186 = por %p184, %p185
      %p187 = scmp.ne.s32.totalorder %s178, %s179
      %p188 = scmp.eq.s32.totalorder %s18, 0
      %p189 = por %p187, %p188
      %p190 = scmp.ne.s32.totalorder %s178, %s179
      %p191 = scmp.eq.s32.totalorder %s19, 3
      %p192 = por %p190, %p191
      %p194 = scmp.ne.s32.totalorder %s179, %s193
      %p195 = scmp.eq.s32.totalorder %s19, 0
      %p196 = por %p194, %p195
      %s197 = ssub.s32 %s20, %s32
      %p198 = scmp.eq.s32.totalorder %s197, 0
      %s200 = sadd.s32 %s199, 1
      %s201 = scalar_select %p198, %s199, %s200
      %p204 = pneg %p198
      %p205 = scmp.eq.s32.totalorder %s13, 3
      %p206 = por %p204, %p205
      %p207 = scmp.ne.s32.totalorder %s199, %s202
      %p208 = scmp.eq.s32.totalorder %s13, 0
      %p209 = por %p207, %p208
      %p210 = scmp.ne.s32.totalorder %s199, %s202
      %p211 = scmp.eq.s32.totalorder %s18, 3
      %p212 = por %p210, %p211
      %p213 = scmp.ne.s32.totalorder %s202, %s203
      %p214 = scmp.eq.s32.totalorder %s18, 0
      %p215 = por %p213, %p214
      %p216 = scmp.ne.s32.totalorder %s202, %s203
      %p217 = scmp.eq.s32.totalorder %s19, 3
      %p218 = por %p216, %p217
      %p220 = scmp.ne.s32.totalorder %s203, %s219
      %p221 = scmp.eq.s32.totalorder %s19, 0
      %p222 = por %p220, %p221
      %p223 = scmp.le.s32.totalorder 1, %s13
      %p224 = scmp.lt.s32.totalorder %s13, 5
      %p225 = pnand %p223, %p224
      %p226 = pneg %p225
      // Predicated region
      $region9: #{reweighted_gcn_forward.9} parent=5 // pred_check
        _
      $region10: #{reweighted_gcn_forward.9} parent=5 // pred_check_branch
        %228 = sbr.rel (%p225) target = $region12
      $region11: #{reweighted_gcn_forward.9} parent=5 // pred_region
        %s229 = ssub.s32 %s13, 1
        // Predicated region
        $region13: #{reweighted_gcn_forward.9} parent=11 // pred_check
          %p230 = pneg %p74
        $region14: #{reweighted_gcn_forward.9} parent=11 // pred_check_branch
          %232 = sbr.rel (%p230) target = $region16
        $region15: #{reweighted_gcn_forward.9} parent=11 // pred_region
          _
        $region16: #{reweighted_gcn_forward.9} parent=11 // pred_fallthru
          _
        // Predicated region
        $region17: #{reweighted_gcn_forward.9} parent=11 // pred_check
          %p233 = pneg %p147
        $region18: #{reweighted_gcn_forward.9} parent=11 // pred_check_branch
          %235 = sbr.rel (%p233) target = $region20
        $region19: #{reweighted_gcn_forward.9} parent=11 // pred_region
          _
        $region20: #{reweighted_gcn_forward.9} parent=11 // pred_fallthru
          _
        // Predicated region
        $region21: #{reweighted_gcn_forward.9} parent=11 // pred_check
          %p236 = pneg %p168
        $region22: #{reweighted_gcn_forward.9} parent=11 // pred_check_branch
          %238 = sbr.rel (%p236) target = $region24
        $region23: #{reweighted_gcn_forward.9} parent=11 // pred_region
          _
        $region24: #{reweighted_gcn_forward.9} parent=11 // pred_fallthru
          _
        // Predicated region
        $region25: #{reweighted_gcn_forward.9} parent=11 // pred_check
          %p239 = pneg %p189
        $region26: #{reweighted_gcn_forward.9} parent=11 // pred_check_branch
          %241 = sbr.rel (%p239) target = $region28
        $region27: #{reweighted_gcn_forward.9} parent=11 // pred_region
          _
        $region28: #{reweighted_gcn_forward.9} parent=11 // pred_fallthru
          _
      $region12: #{reweighted_gcn_forward.9} parent=5 // pred_fallthru
        _
      %p242 = scmp.lt.s32.totalorder %s13, 4
      // Predicated region
      $region29: #{reweighted_gcn_forward.9} parent=5 // pred_check
        %p243 = pneg %p242
      $region30: #{reweighted_gcn_forward.9} parent=5 // pred_check_branch
        %245 = sbr.rel (%p243) target = $region32
      $region31: #{reweighted_gcn_forward.9} parent=5 // pred_region
        // Predicated region
        $region33: #{reweighted_gcn_forward.9} parent=31 // pred_check
          %p246 = pneg %p47
        $region34: #{reweighted_gcn_forward.9} parent=31 // pred_check_branch
          %248 = sbr.rel (%p246) target = $region36
        $region35: #{reweighted_gcn_forward.9} parent=31 // pred_region
          %s249 = sand.u32 %s37, 1
          %s250 = sand.u32 %s37, 1
          %s251 = smul.addr %s250, 32
          %s252 = scalar_lea.vmem [#allocation3], %s251
          %s253 = smul.u32 4, %s20
          %s254 = smul.addr %s253, 2
          %s255 = sadd.s32 %s21, %s254
          %s256 = smul.addr %s255, 8
          %s257 = scalar_lea.vmem %s0, %s256
          // Predicated region
          $region37: #{reweighted_gcn_forward.9} parent=35 // pred_check
            _
          $region38: #{reweighted_gcn_forward.9} parent=35 // pred_check_branch
            %259 = sbr.rel (0) target = $region40
          $region39: #{reweighted_gcn_forward.9} parent=35 // pred_region
            // Predicated region
            $region41: #{reweighted_gcn_forward.9} parent=39 // pred_check
              _
            $region42: #{reweighted_gcn_forward.9} parent=39 // pred_check_branch
              %261 = sbr.rel (0) target = $region44
            $region43: #{reweighted_gcn_forward.9} parent=39 // pred_region
              // Predicated region
              $region56: #{reweighted_gcn_forward.9} parent=43 // pred_check
                _
              $region57: #{reweighted_gcn_forward.9} parent=43 // pred_check_branch
                %282 = sbr.rel (0) target = $region59
              $region58: #{reweighted_gcn_forward.9} parent=43 // pred_region
                loop: start=0, step=1, limit=1
                $region60: #{reweighted_gcn_forward.9} parent=58 // loop_pre_header
                  _
                $region61: #{reweighted_gcn_forward.9} parent=58 // loop_header
                  %s284 = sphi 0, %s288
                  %p285 = scmp.ge.s32.totalorder %s284, 1
                  %s289 = sphi %s257, %s257
                  %s290 = sphi %s252, %s252
                $region62: #{reweighted_gcn_forward.9} parent=58 // loop_header_branch
                  %287 = sbr.rel (%p285) target = $region66
                $region63: #{reweighted_gcn_forward.9} parent=58 // loop_body
                  %v291 = vld [vmem:[%s289] sm:$0xff]
                  %292 = vst [vmem:[%s290] sm:$0xff] %v291
                  %v293 = vld [vmem:[%s289 + $0x10] sm:$0xff]
                  %294 = vst [vmem:[%s290 + $0x8] sm:$0xff] %v293
                  %v295 = vld [vmem:[%s289 + $0x20] sm:$0xff]
                  %296 = vst [vmem:[%s290 + $0x10] sm:$0xff] %v295
                  %v297 = vld [vmem:[%s289 + $0x30] sm:$0xff]
                  %298 = vst [vmem:[%s290 + $0x18] sm:$0xff] %v297
                $region64: #{reweighted_gcn_forward.9} parent=58 // loop_footer
                  %s288 = sadd.s32 1, %s284
                $region65: #{reweighted_gcn_forward.9} parent=58 // loop_footer_branch
                  %283 = sbr.rel target = $region61
                $region66: #{reweighted_gcn_forward.9} parent=58 // loop_exit
                  _
              $region59: #{reweighted_gcn_forward.9} parent=43 // pred_fallthru
                _
              // Predicated region
              $region67: #{reweighted_gcn_forward.9} parent=43 // pred_check
                _
              $region68: #{reweighted_gcn_forward.9} parent=43 // pred_check_branch
                %300 = sbr.rel target = $region70
              $region69: #{reweighted_gcn_forward.9} parent=43 // pred_region
                _
              $region70: #{reweighted_gcn_forward.9} parent=43 // pred_fallthru
                _
            $region44: #{reweighted_gcn_forward.9} parent=39 // pred_fallthru
              _
            // Predicated region
            $region45: #{reweighted_gcn_forward.9} parent=39 // pred_check
              _
            $region46: #{reweighted_gcn_forward.9} parent=39 // pred_check_branch
              %263 = sbr.rel target = $region48
            $region47: #{reweighted_gcn_forward.9} parent=39 // pred_region
              loop: start=0, step=1, limit=1
              $region49: #{reweighted_gcn_forward.9} parent=47 // loop_pre_header
                _
              $region50: #{reweighted_gcn_forward.9} parent=47 // loop_header
                %s266 = sphi 0, %s270
                %p267 = scmp.ge.s32.totalorder %s266, 1
                %s271 = sphi %s257, %s257
                %s272 = sphi %s252, %s252
              $region51: #{reweighted_gcn_forward.9} parent=47 // loop_header_branch
                %269 = sbr.rel (%p267) target = $region55
              $region52: #{reweighted_gcn_forward.9} parent=47 // loop_body
                %v273 = vld [vmem:[%s271] sm:$0xff]
                %274 = vst [vmem:[%s272] sm:$0xff] %v273
                %v275 = vld [vmem:[%s271 + $0x10] sm:$0xff]
                %276 = vst [vmem:[%s272 + $0x8] sm:$0xff] %v275
                %v277 = vld [vmem:[%s271 + $0x20] sm:$0xff]
                %278 = vst [vmem:[%s272 + $0x10] sm:$0xff] %v277
                %v279 = vld [vmem:[%s271 + $0x30] sm:$0xff]
                %280 = vst [vmem:[%s272 + $0x18] sm:$0xff] %v279
              $region53: #{reweighted_gcn_forward.9} parent=47 // loop_footer
                %s270 = sadd.s32 1, %s266
              $region54: #{reweighted_gcn_forward.9} parent=47 // loop_footer_branch
                %265 = sbr.rel target = $region50
              $region55: #{reweighted_gcn_forward.9} parent=47 // loop_exit
                _
            $region48: #{reweighted_gcn_forward.9} parent=39 // pred_fallthru
              _
          $region40: #{reweighted_gcn_forward.9} parent=35 // pred_fallthru
            _
          %301 = vnop
        $region36: #{reweighted_gcn_forward.9} parent=31 // pred_fallthru
          _
        // Predicated region
        $region71: #{reweighted_gcn_forward.9} parent=31 // pred_check
          %p302 = pneg %p94
        $region72: #{reweighted_gcn_forward.9} parent=31 // pred_check_branch
          %304 = sbr.rel (%p302) target = $region74
        $region73: #{reweighted_gcn_forward.9} parent=31 // pred_region
          %s305 = smul.u32 16, %s20
          %p306 = scmp.lt.s32.totalorder %s305, 31
          %s307 = scalar_select %p306, %s305, 31
          %s308 = smul.addr %s307, 4
          %s309 = scalar_lea.vmem %s2, %s308
          %s310 = smul.u32 16, %s20
        $region74: #{reweighted_gcn_forward.9} parent=31 // pred_fallthru
          _
        // Predicated region
        $region75: #{reweighted_gcn_forward.9} parent=31 // pred_check
          %p311 = pneg %p120
        $region76: #{reweighted_gcn_forward.9} parent=31 // pred_check_branch
          %313 = sbr.rel (%p311) target = $region78
        $region77: #{reweighted_gcn_forward.9} parent=31 // pred_region
          %s314 = smul.u32 16, %s20
          %p315 = scmp.lt.s32.totalorder %s314, 31
          %s316 = scalar_select %p315, %s314, 31
          %s317 = smul.addr %s316, 8
          %s318 = scalar_lea.vmem %s3, %s317
          %s319 = smul.u32 16, %s20
        $region78: #{reweighted_gcn_forward.9} parent=31 // pred_fallthru
          _
      $region32: #{reweighted_gcn_forward.9} parent=5 // pred_fallthru
        _
      %p320 = scmp.le.s32.totalorder 1, %s13
      %p321 = scmp.lt.s32.totalorder %s13, 5
      %p322 = pnand %p320, %p321
      %p323 = pneg %p322
      // Predicated region
      $region79: #{reweighted_gcn_forward.9} parent=5 // pred_check
        _
      $region80: #{reweighted_gcn_forward.9} parent=5 // pred_check_branch
        %325 = sbr.rel (%p322) target = $region82
      $region81: #{reweighted_gcn_forward.9} parent=5 // pred_region
        %s326 = ssub.s32 %s13, 1
        %s327 = sand.u32 %s40, 1
        %s328 = sand.u32 %s40, 1
        %s329 = smul.addr %s328, 32
        %s330 = scalar_lea.vmem [#allocation3], %s329
        // Predicated region
        $region83: #{reweighted_gcn_forward.9} parent=81 // pred_check
          %p331 = pneg %p53
        $region84: #{reweighted_gcn_forward.9} parent=81 // pred_check_branch
          %333 = sbr.rel (%p331) target = $region86
        $region85: #{reweighted_gcn_forward.9} parent=81 // pred_region
          _
        $region86: #{reweighted_gcn_forward.9} parent=81 // pred_fallthru
          _
        %s334 = sand.u32 %s40, 1
        %s335 = sand.u32 %s40, 1
        %s336 = smul.addr %s335, 32
        %s337 = scalar_lea.vmem [#allocation3], %s336
        %p338 = pneg %p53
        %p339 = pneg %p50
        %p340 = pneg %p74
        %p341 = pneg %p71
        %s342 = smul.u32 16, %s22
        %p343 = scmp.lt.s32.totalorder %s342, 31
        %s344 = scalar_select %p343, %s342, 31
        %s345 = smul.addr %s344, 4
        %s346 = scalar_lea.vmem %s2, %s345
        %p347 = pneg %p100
        %p348 = pneg %p97
        %s349 = smul.u32 16, %s22
        %p350 = scmp.lt.s32.totalorder %s349, 31
        %s351 = scalar_select %p350, %s349, 31
        %s352 = smul.addr %s351, 8
        %s353 = scalar_lea.vmem %s3, %s352
        %p354 = pneg %p126
        %p355 = pneg %p123
        %p356 = pneg %p147
        %p357 = pneg %p144
        %p358 = pneg %p168
        %p359 = pneg %p165
        %p360 = pneg %p189
        %p361 = pneg %p186
        %p362 = pneg %p215
        %p363 = pneg %p212
        %s364 = smul.u32 16, %s22
        %p365 = scmp.lt.s32.totalorder %s364, 31
        %s366 = scalar_select %p365, %s364, 31
        %s367 = smul.addr %s366, 4
        %s368 = scalar_lea.vmem %s7, %s367
        %s369 = smul.u32 4, %s22
        %s370 = smul.u32 16, %s22
        %p371 = scmp.lt.s32.totalorder %s370, 31
        %s372 = scalar_select %p371, %s370, 31
        %s373 = smul.addr %s372, 4
        %s374 = scalar_lea.vmem %s2, %s373
        %s375 = smul.u32 16, %s22
        %s376 = smul.u32 16, %s22
        %p377 = scmp.lt.s32.totalorder %s376, 31
        %s378 = scalar_select %p377, %s376, 31
        %s379 = smul.addr %s378, 8
        %s380 = scalar_lea.vmem %s3, %s379
        %s381 = smul.u32 16, %s22
        %s382 = smul.u32 16, %s22
        %p383 = scmp.lt.s32.totalorder %s382, 31
        %s384 = scalar_select %p383, %s382, 31
        %s385 = smul.addr %s384, 4
        %s386 = scalar_lea.vmem %s7, %s385
        %s387 = smul.u32 16, %s22
        %p389 = scmp.eq.s32.totalorder %s23, 0
        // Predicated region
        $region87: #{reweighted_gcn_forward.9} parent=81 // pred_check
          %p390 = pneg %p389
        $region88: #{reweighted_gcn_forward.9} parent=81 // pred_check_branch
          %392 = sbr.rel (%p390) target = $region90
        $region89: #{reweighted_gcn_forward.9} parent=81 // pred_region
          %393 = vst [vmem:[#allocation2] sm:$0xff] 0.0
          %394 = vst [vmem:[#allocation2 + $0x8] sm:$0xff] 0.0
          %395 = vst [vmem:[#allocation2 + $0x10] sm:$0xff] 0.0
          %396 = vst [vmem:[#allocation2 + $0x18] sm:$0xff] 0.0
          %397 = vst [vmem:[#allocation2 + $0x20] sm:$0xff] 0.0
          %398 = vst [vmem:[#allocation2 + $0x28] sm:$0xff] 0.0
          %399 = vst [vmem:[#allocation2 + $0x30] sm:$0xff] 0.0
          %400 = vst [vmem:[#allocation2 + $0x38] sm:$0xff] 0.0
          %401 = vst [vmem:[#allocation2 + $0x40] sm:$0xff] 0.0
          %402 = vst [vmem:[#allocation2 + $0x48] sm:$0xff] 0.0
          %403 = vst [vmem:[#allocation2 + $0x50] sm:$0xff] 0.0
          %404 = vst [vmem:[#allocation2 + $0x58] sm:$0xff] 0.0
          %405 = vst [vmem:[#allocation2 + $0x60] sm:$0xff] 0.0
          %406 = vst [vmem:[#allocation2 + $0x68] sm:$0xff] 0.0
          %407 = vst [vmem:[#allocation2 + $0x70] sm:$0xff] 0.0
          %408 = vst [vmem:[#allocation2 + $0x78] sm:$0xff] 0.0
        $region90: #{reweighted_gcn_forward.9} parent=81 // pred_fallthru
          _
        %s409 = smul.u32 %s23, 128
        %s410 = sshra.s32 %s409, 3
        %s411 = sand.u32 %s409, 7
        %s412 = smul.addr %s410, 4
        %s413 = scalar_lea.vmem %s1, %s412
        %v414 = vld [vmem:[%s413] sm:$0xf]
        %v415 = vld [vmem:[%s413 + $0x4] sm:$0xf]
        %v416 = vld [vmem:[%s413 + $0x8] sm:$0xf]
        %v417 = vld [vmem:[%s413 + $0xc] sm:$0xf]
        %v418 = vld [vmem:[%s413 + $0x10] sm:$0xf]
        %v419 = vld [vmem:[%s413 + $0x14] sm:$0xf]
        %v420 = vld [vmem:[%s413 + $0x18] sm:$0xf]
        %v421 = vld [vmem:[%s413 + $0x1c] sm:$0xf]
        %v422 = vld [vmem:[%s413 + $0x20] sm:$0xf]
        %v423 = vld [vmem:[%s413 + $0x24] sm:$0xf]
        %v424 = vld [vmem:[%s413 + $0x28] sm:$0xf]
        %v425 = vld [vmem:[%s413 + $0x2c] sm:$0xf]
        %v426 = vld [vmem:[%s413 + $0x30] sm:$0xf]
        %v427 = vld [vmem:[%s413 + $0x34] sm:$0xf]
        %v428 = vld [vmem:[%s413 + $0x38] sm:$0xf]
        %v429 = vld [vmem:[%s413 + $0x3c] sm:$0xf]
        %v430 = vld [vmem:[%s330] sm:$0xff]
        %v431 = vld [vmem:[%s330 + $0x8] sm:$0xff]
        %v432 = vld [vmem:[%s330 + $0x10] sm:$0xff]
        %v433 = vld [vmem:[%s330 + $0x18] sm:$0xff]
        %v434 = vunpack.c.l.s8.bf16 %v430
        %v435 = vunpack.c.h.s8.bf16 %v430
        %v436 = vunpack.c.l.s8.bf16 %v431
        %v437 = vunpack.c.h.s8.bf16 %v431
        %v438 = vunpack.c.l.s8.bf16 %v432
        %v439 = vunpack.c.h.s8.bf16 %v432
        %v440 = vunpack.c.l.s8.bf16 %v433
        %v441 = vunpack.c.h.s8.bf16 %v433
        %v442 = vld [vmem:[#allocation2] sm:$0xff]
        %v443 = vld [vmem:[#allocation2 + $0x8] sm:$0xff]
        %v444 = vld [vmem:[#allocation2 + $0x10] sm:$0xff]
        %v445 = vld [vmem:[#allocation2 + $0x18] sm:$0xff]
        %v446 = vld [vmem:[#allocation2 + $0x20] sm:$0xff]
        %v447 = vld [vmem:[#allocation2 + $0x28] sm:$0xff]
        %v448 = vld [vmem:[#allocation2 + $0x30] sm:$0xff]
        %v449 = vld [vmem:[#allocation2 + $0x38] sm:$0xff]
        %v450 = vld [vmem:[#allocation2 + $0x40] sm:$0xff]
        %v451 = vld [vmem:[#allocation2 + $0x48] sm:$0xff]
        %v452 = vld [vmem:[#allocation2 + $0x50] sm:$0xff]
        %v453 = vld [vmem:[#allocation2 + $0x58] sm:$0xff]
        %v454 = vld [vmem:[#allocation2 + $0x60] sm:$0xff]
        %v455 = vld [vmem:[#allocation2 + $0x68] sm:$0xff]
        %v456 = vld [vmem:[#allocation2 + $0x70] sm:$0xff]
        %v457 = vld [vmem:[#allocation2 + $0x78] sm:$0xff]
        %v474 = vunpack.c.l.b16 %v414
        %v475 = vunpack.c.l.b16 %v415
        %v476 = vunpack.c.l.b16 %v416
        %v477 = vunpack.c.l.b16 %v417
        %v478 = vunpack.c.l.b16 %v418
        %v479 = vunpack.c.l.b16 %v419
        %v480 = vunpack.c.l.b16 %v420
        %v481 = vunpack.c.l.b16 %v421
        %v482 = vunpack.c.l.b16 %v422
        %v483 = vunpack.c.l.b16 %v423
        %v484 = vunpack.c.l.b16 %v424
        %v485 = vunpack.c.l.b16 %v425
        %v486 = vunpack.c.l.b16 %v426
        %v487 = vunpack.c.l.b16 %v427
        %v488 = vunpack.c.l.b16 %v428
        %v489 = vunpack.c.l.b16 %v429
        %v490 = vpack.c.b16 %v475, %v474
        %v491 = vpack.c.b16 %v477, %v476
        %v492 = vpack.c.b16 %v479, %v478
        %v493 = vpack.c.b16 %v481, %v480
        %v494 = vpack.c.b16 %v483, %v482
        %v495 = vpack.c.b16 %v485, %v484
        %v496 = vpack.c.b16 %v487, %v486
        %v497 = vpack.c.b16 %v489, %v488
        %506 = vmatprep.subr.bf16.mxu0 0
        %507 = vmatpush1.bf16.msra.mxu0 %v490
        %508 = vmatprep.subr.bf16.mxu0 0
        %509 = vmatpush1.bf16.msra.mxu0 %v491
        %510 = vmatprep.subr.bf16.mxu0 0
        %511 = vmatpush1.bf16.msra.mxu0 %v492
        %512 = vmatprep.subr.bf16.mxu0 0
        %513 = vmatpush1.bf16.msra.mxu0 %v493
        %514 = vmatprep.subr.bf16.mxu0 0
        %515 = vmatpush1.bf16.msra.mxu0 %v494
        %516 = vmatprep.subr.bf16.mxu0 0
        %517 = vmatpush1.bf16.msra.mxu0 %v495
        %518 = vmatprep.subr.bf16.mxu0 0
        %519 = vmatpush1.bf16.msra.mxu0 %v496
        %520 = vmatprep.subr.bf16.mxu0 0
        %521 = vmatpush1.bf16.msra.mxu0 %v497
        %522 = vmatprep.subr.bf16.mxu0 0
        %523 = vmatpush1.bf16.msra.mxu0 0
        %524 = vmatprep.subr.bf16.mxu0 0
        %525 = vmatpush1.bf16.msra.mxu0 0
        %526 = vmatprep.subr.bf16.mxu0 0
        %527 = vmatpush1.bf16.msra.mxu0 0
        %528 = vmatprep.subr.bf16.mxu0 0
        %529 = vmatpush1.bf16.msra.mxu0 0
        %530 = vmatprep.subr.bf16.mxu0 0
        %531 = vmatpush1.bf16.msra.mxu0 0
        %532 = vmatprep.subr.bf16.mxu0 0
        %533 = vmatpush1.bf16.msra.mxu0 0
        %534 = vmatprep.subr.bf16.mxu0 0
        %535 = vmatpush1.bf16.msra.mxu0 0
        %536 = vmatprep.subr.bf16.mxu0 0
        %537 = vmatpush1.bf16.msra.mxu0 0
        %538 = vmatprep.mubr.bf16.mxu0 0
        %539 = vmatmul.mubr.bf16.gmra.mrb[0].mxu0 %v434
        %v540 = vpop.f32.mrb[0].mxu0
        %v541 = vadd.f32 0.0, %v540
        %v542 = vpop.f32.mrb[0].mxu0
        %v543 = vpop.f32.mrb[0].mxu0
        %v544 = vadd.f32 0.0, %v543
        %v545 = vpop.f32.mrb[0].mxu0
        %546 = vmatprep.mubr.bf16.mxu0 0
        %547 = vmatmul.mubr.bf16.gmra.mrb[0].mxu0 %v435
        %v548 = vpop.f32.mrb[0].mxu0
        %v549 = vadd.f32 0.0, %v548
        %v550 = vpop.f32.mrb[0].mxu0
        %v551 = vpop.f32.mrb[0].mxu0
        %v552 = vadd.f32 0.0, %v551
        %v553 = vpop.f32.mrb[0].mxu0
        %554 = vmatprep.mubr.bf16.mxu0 0
        %555 = vmatmul.mubr.bf16.gmra.mrb[0].mxu0 %v436
        %v556 = vpop.f32.mrb[0].mxu0
        %v557 = vadd.f32 0.0, %v556
        %v558 = vpop.f32.mrb[0].mxu0
        %v559 = vpop.f32.mrb[0].mxu0
        %v560 = vadd.f32 0.0, %v559
        %v561 = vpop.f32.mrb[0].mxu0
        %562 = vmatprep.mubr.bf16.mxu0 0
        %563 = vmatmul.mubr.bf16.gmra.mrb[0].mxu0 %v437
        %v564 = vpop.f32.mrb[0].mxu0
        %v565 = vadd.f32 0.0, %v564
        %v566 = vpop.f32.mrb[0].mxu0
        %v567 = vpop.f32.mrb[0].mxu0
        %v568 = vadd.f32 0.0, %v567
        %v569 = vpop.f32.mrb[0].mxu0
        %570 = vmatprep.mubr.bf16.mxu0 0
        %571 = vmatmul.mubr.bf16.gmra.mrb[0].mxu0 %v438
        %v572 = vpop.f32.mrb[0].mxu0
        %v573 = vadd.f32 0.0, %v572
        %v574 = vpop.f32.mrb[0].mxu0
        %v575 = vpop.f32.mrb[0].mxu0
        %v576 = vadd.f32 0.0, %v575
        %v577 = vpop.f32.mrb[0].mxu0
        %578 = vmatprep.mubr.bf16.mxu0 0
        %579 = vmatmul.mubr.bf16.gmra.mrb[0].mxu0 %v439
        %v580 = vpop.f32.mrb[0].mxu0
        %v581 = vadd.f32 0.0, %v580
        %v582 = vpop.f32.mrb[0].mxu0
        %v583 = vpop.f32.mrb[0].mxu0
        %v584 = vadd.f32 0.0, %v583
        %v585 = vpop.f32.mrb[0].mxu0
        %586 = vmatprep.mubr.bf16.mxu0 0
        %587 = vmatmul.mubr.bf16.gmra.mrb[0].mxu0 %v440
        %v588 = vpop.f32.mrb[0].mxu0
        %v589 = vadd.f32 0.0, %v588
        %v590 = vpop.f32.mrb[0].mxu0
        %v591 = vpop.f32.mrb[0].mxu0
        %v592 = vadd.f32 0.0, %v591
        %v593 = vpop.f32.mrb[0].mxu0
        %594 = vmatprep.mubr.bf16.mxu0 0
        %595 = vmatmul.mubr.bf16.gmra.mrb[0].mxu0 %v441
        %v596 = vpop.f32.mrb[0].mxu0
        %v597 = vadd.f32 0.0, %v596
        %v598 = vpop.f32.mrb[0].mxu0
        %v599 = vpop.f32.mrb[0].mxu0
        %v600 = vadd.f32 0.0, %v599
        %v601 = vpop.f32.mrb[0].mxu0
        %602 = vdwg.mxu0
        %v603 = vadd.f32 %v442, %v541
        %v604 = vadd.f32 %v443, %v544
        %v605 = vadd.f32 %v444, %v549
        %v606 = vadd.f32 %v445, %v552
        %v607 = vadd.f32 %v446, %v557
        %v608 = vadd.f32 %v447, %v560
        %v609 = vadd.f32 %v448, %v565
        %v610 = vadd.f32 %v449, %v568
        %v611 = vadd.f32 %v450, %v573
        %v612 = vadd.f32 %v451, %v576
        %v613 = vadd.f32 %v452, %v581
        %v614 = vadd.f32 %v453, %v584
        %v615 = vadd.f32 %v454, %v589
        %v616 = vadd.f32 %v455, %v592
        %v617 = vadd.f32 %v456, %v597
        %v618 = vadd.f32 %v457, %v600
        %619 = vst [vmem:[#allocation2] sm:$0xff] %v603
        %620 = vst [vmem:[#allocation2 + $0x8] sm:$0xff] %v604
        %621 = vst [vmem:[#allocation2 + $0x10] sm:$0xff] %v605
        %622 = vst [vmem:[#allocation2 + $0x18] sm:$0xff] %v606
        %623 = vst [vmem:[#allocation2 + $0x20] sm:$0xff] %v607
        %624 = vst [vmem:[#allocation2 + $0x28] sm:$0xff] %v608
        %625 = vst [vmem:[#allocation2 + $0x30] sm:$0xff] %v609
        %626 = vst [vmem:[#allocation2 + $0x38] sm:$0xff] %v610
        %627 = vst [vmem:[#allocation2 + $0x40] sm:$0xff] %v611
        %628 = vst [vmem:[#allocation2 + $0x48] sm:$0xff] %v612
        %629 = vst [vmem:[#allocation2 + $0x50] sm:$0xff] %v613
        %630 = vst [vmem:[#allocation2 + $0x58] sm:$0xff] %v614
        %631 = vst [vmem:[#allocation2 + $0x60] sm:$0xff] %v615
        %632 = vst [vmem:[#allocation2 + $0x68] sm:$0xff] %v616
        %633 = vst [vmem:[#allocation2 + $0x70] sm:$0xff] %v617
        %634 = vst [vmem:[#allocation2 + $0x78] sm:$0xff] %v618
        %p635 = scmp.eq.s32.totalorder %s23, 1
        // Predicated region
        $region91: #{reweighted_gcn_forward.9} parent=81 // pred_check
          %p636 = pneg %p635
        $region92: #{reweighted_gcn_forward.9} parent=81 // pred_check_branch
          %638 = sbr.rel (%p636) target = $region94
        $region93: #{reweighted_gcn_forward.9} parent=81 // pred_region
          %v639 = vld [vmem:[%s380] sm:$0xff]
          %v640 = vld [vmem:[%s380 + $0x8] sm:$0xff]
          %v641 = vld [vmem:[%s380 + $0x10] sm:$0xff]
          %v642 = vld [vmem:[%s380 + $0x18] sm:$0xff]
          %v643 = vld [vmem:[%s380 + $0x20] sm:$0xff]
          %v644 = vld [vmem:[%s380 + $0x28] sm:$0xff]
          %v645 = vld [vmem:[%s380 + $0x30] sm:$0xff]
          %v646 = vld [vmem:[%s380 + $0x38] sm:$0xff]
          %v647 = vld [vmem:[%s380 + $0x40] sm:$0xff]
          %v648 = vld [vmem:[%s380 + $0x48] sm:$0xff]
          %v649 = vld [vmem:[%s380 + $0x50] sm:$0xff]
          %v650 = vld [vmem:[%s380 + $0x58] sm:$0xff]
          %v651 = vld [vmem:[%s380 + $0x60] sm:$0xff]
          %v652 = vld [vmem:[%s380 + $0x68] sm:$0xff]
          %v653 = vld [vmem:[%s380 + $0x70] sm:$0xff]
          %v654 = vld [vmem:[%s380 + $0x78] sm:$0xff]
          %v655 = vld [vmem:[#allocation2] sm:$0xff]
          %v656 = vld [vmem:[#allocation2 + $0x8] sm:$0xff]
          %v657 = vld [vmem:[#allocation2 + $0x10] sm:$0xff]
          %v658 = vld [vmem:[#allocation2 + $0x18] sm:$0xff]
          %v659 = vld [vmem:[#allocation2 + $0x20] sm:$0xff]
          %v660 = vld [vmem:[#allocation2 + $0x28] sm:$0xff]
          %v661 = vld [vmem:[#allocation2 + $0x30] sm:$0xff]
          %v662 = vld [vmem:[#allocation2 + $0x38] sm:$0xff]
          %v663 = vld [vmem:[#allocation2 + $0x40] sm:$0xff]
          %v664 = vld [vmem:[#allocation2 + $0x48] sm:$0xff]
          %v665 = vld [vmem:[#allocation2 + $0x50] sm:$0xff]
          %v666 = vld [vmem:[#allocation2 + $0x58] sm:$0xff]
          %v667 = vld [vmem:[#allocation2 + $0x60] sm:$0xff]
          %v668 = vld [vmem:[#allocation2 + $0x68] sm:$0xff]
          %v669 = vld [vmem:[#allocation2 + $0x70] sm:$0xff]
          %v670 = vld [vmem:[#allocation2 + $0x78] sm:$0xff]
          %v671 = vld [vmem:[%s374] sm:$0xf]
          %v672 = vld [vmem:[%s374 + $0x4] sm:$0xf]
          %v673 = vld [vmem:[%s374 + $0x8] sm:$0xf]
          %v674 = vld [vmem:[%s374 + $0xc] sm:$0xf]
          %v675 = vld [vmem:[%s374 + $0x10] sm:$0xf]
          %v676 = vld [vmem:[%s374 + $0x14] sm:$0xf]
          %v677 = vld [vmem:[%s374 + $0x18] sm:$0xf]
          %v678 = vld [vmem:[%s374 + $0x1c] sm:$0xf]
          %v679 = vld [vmem:[%s374 + $0x20] sm:$0xf]
          %v680 = vld [vmem:[%s374 + $0x24] sm:$0xf]
          %v681 = vld [vmem:[%s374 + $0x28] sm:$0xf]
          %v682 = vld [vmem:[%s374 + $0x2c] sm:$0xf]
          %v683 = vld [vmem:[%s374 + $0x30] sm:$0xf]
          %v684 = vld [vmem:[%s374 + $0x34] sm:$0xf]
          %v685 = vld [vmem:[%s374 + $0x38] sm:$0xf]
          %v686 = vld [vmem:[%s374 + $0x3c] sm:$0xf]
          %v687 = vunpack.c.l.bf16 %v671
          %v688 = vunpack.c.l.bf16 %v672
          %v689 = vunpack.c.l.bf16 %v673
          %v690 = vunpack.c.l.bf16 %v674
          %v691 = vunpack.c.l.bf16 %v675
          %v692 = vunpack.c.l.bf16 %v676
          %v693 = vunpack.c.l.bf16 %v677
          %v694 = vunpack.c.l.bf16 %v678
          %v695 = vunpack.c.l.bf16 %v679
          %v696 = vunpack.c.l.bf16 %v680
          %v697 = vunpack.c.l.bf16 %v681
          %v698 = vunpack.c.l.bf16 %v682
          %v699 = vunpack.c.l.bf16 %v683
          %v700 = vunpack.c.l.bf16 %v684
          %v701 = vunpack.c.l.bf16 %v685
          %v702 = vunpack.c.l.bf16 %v686
          %v703 = vadd.f32 %v655, %v687
          %v704 = vadd.f32 %v656, %v688
          %v705 = vadd.f32 %v657, %v689
          %v706 = vadd.f32 %v658, %v690
          %v707 = vadd.f32 %v659, %v691
          %v708 = vadd.f32 %v660, %v692
          %v709 = vadd.f32 %v661, %v693
          %v710 = vadd.f32 %v662, %v694
          %v711 = vadd.f32 %v663, %v695
          %v712 = vadd.f32 %v664, %v696
          %v713 = vadd.f32 %v665, %v697
          %v714 = vadd.f32 %v666, %v698
          %v715 = vadd.f32 %v667, %v699
          %v716 = vadd.f32 %v668, %v700
          %v717 = vadd.f32 %v669, %v701
          %v718 = vadd.f32 %v670, %v702
          %720 = vset.pattern.permute.xlu0 0
          %721 = vperm.xlu0 %720, %v639
          %v722 = vpop.permute.xlu0 %721
          %725 = vset.pattern.permute.xlu0 0
          %726 = vperm.xlu0 %725, %v640
          %v727 = vpop.permute.xlu0 %726
          %730 = vset.pattern.permute.xlu0 0
          %731 = vperm.xlu0 %730, %v641
          %v732 = vpop.permute.xlu0 %731
          %735 = vset.pattern.permute.xlu0 0
          %736 = vperm.xlu0 %735, %v642
          %v737 = vpop.permute.xlu0 %736
          %740 = vset.pattern.permute.xlu0 0
          %741 = vperm.xlu0 %740, %v643
          %v742 = vpop.permute.xlu0 %741
          %745 = vset.pattern.permute.xlu0 0
          %746 = vperm.xlu0 %745, %v644
          %v747 = vpop.permute.xlu0 %746
          %750 = vset.pattern.permute.xlu0 0
          %751 = vperm.xlu0 %750, %v645
          %v752 = vpop.permute.xlu0 %751
          %755 = vset.pattern.permute.xlu0 0
          %756 = vperm.xlu0 %755, %v646
          %v757 = vpop.permute.xlu0 %756
          %760 = vset.pattern.permute.xlu0 0
          %761 = vperm.xlu0 %760, %v647
          %v762 = vpop.permute.xlu0 %761
          %765 = vset.pattern.permute.xlu0 0
          %766 = vperm.xlu0 %765, %v648
          %v767 = vpop.permute.xlu0 %766
          %770 = vset.pattern.permute.xlu0 0
          %771 = vperm.xlu0 %770, %v649
          %v772 = vpop.permute.xlu0 %771
          %775 = vset.pattern.permute.xlu0 0
          %776 = vperm.xlu0 %775, %v650
          %v777 = vpop.permute.xlu0 %776
          %780 = vset.pattern.permute.xlu0 0
          %781 = vperm.xlu0 %780, %v651
          %v782 = vpop.permute.xlu0 %781
          %785 = vset.pattern.permute.xlu0 0
          %786 = vperm.xlu0 %785, %v652
          %v787 = vpop.permute.xlu0 %786
          %790 = vset.pattern.permute.xlu0 0
          %791 = vperm.xlu0 %790, %v653
          %v792 = vpop.permute.xlu0 %791
          %795 = vset.pattern.permute.xlu0 0
          %796 = vperm.xlu0 %795, %v654
          %v797 = vpop.permute.xlu0 %796
          %v799 = vmul.f32 %v722, %v703
          %v800 = vmul.f32 %v727, %v704
          %v801 = vmul.f32 %v732, %v705
          %v802 = vmul.f32 %v737, %v706
          %v803 = vmul.f32 %v742, %v707
          %v804 = vmul.f32 %v747, %v708
          %v805 = vmul.f32 %v752, %v709
          %v806 = vmul.f32 %v757, %v710
          %v807 = vmul.f32 %v762, %v711
          %v808 = vmul.f32 %v767, %v712
          %v809 = vmul.f32 %v772, %v713
          %v810 = vmul.f32 %v777, %v714
          %v811 = vmul.f32 %v782, %v715
          %v812 = vmul.f32 %v787, %v716
          %v813 = vmul.f32 %v792, %v717
          %v814 = vmul.f32 %v797, %v718
          %v815 = vld [vmem:[%s4] sm:$0x1]
          %v817 = vlaneseq
          %v818 = vshrl.u32 %v817, 7
          %v819 = vsub.s32 0, %v818
          %v820 = vrot.slane %v815, %v819
          %v822 = vadd.f32 %v799, %v820
          %v823 = vadd.f32 %v800, %v820
          %v824 = vadd.f32 %v801, %v820
          %v825 = vadd.f32 %v802, %v820
          %v826 = vadd.f32 %v803, %v820
          %v827 = vadd.f32 %v804, %v820
          %v828 = vadd.f32 %v805, %v820
          %v829 = vadd.f32 %v806, %v820
          %v830 = vadd.f32 %v807, %v820
          %v831 = vadd.f32 %v808, %v820
          %v832 = vadd.f32 %v809, %v820
          %v833 = vadd.f32 %v810, %v820
          %v834 = vadd.f32 %v811, %v820
          %v835 = vadd.f32 %v812, %v820
          %v836 = vadd.f32 %v813, %v820
          %v837 = vadd.f32 %v814, %v820
          %v838 = vld [vmem:[%s5] sm:$0x1]
          %v840 = vlaneseq
          %v841 = vshrl.u32 %v840, 7
          %v842 = vsub.s32 0, %v841
          %v843 = vrot.slane %v838, %v842
          %v845 = vmul.f32 %v822, %v843
          %v846 = vmul.f32 %v823, %v843
          %v847 = vmul.f32 %v824, %v843
          %v848 = vmul.f32 %v825, %v843
          %v849 = vmul.f32 %v826, %v843
          %v850 = vmul.f32 %v827, %v843
          %v851 = vmul.f32 %v828, %v843
          %v852 = vmul.f32 %v829, %v843
          %v853 = vmul.f32 %v830, %v843
          %v854 = vmul.f32 %v831, %v843
          %v855 = vmul.f32 %v832, %v843
          %v856 = vmul.f32 %v833, %v843
          %v857 = vmul.f32 %v834, %v843
          %v858 = vmul.f32 %v835, %v843
          %v859 = vmul.f32 %v836, %v843
          %v860 = vmul.f32 %v837, %v843
          %v861 = vld [vmem:[%s6] sm:$0x1]
          %v863 = vlaneseq
          %v864 = vshrl.u32 %v863, 7
          %v865 = vsub.s32 0, %v864
          %v866 = vrot.slane %v861, %v865
          %v868 = vadd.f32 %v845, %v866
          %v869 = vadd.f32 %v846, %v866
          %v870 = vadd.f32 %v847, %v866
          %v871 = vadd.f32 %v848, %v866
          %v872 = vadd.f32 %v849, %v866
          %v873 = vadd.f32 %v850, %v866
          %v874 = vadd.f32 %v851, %v866
          %v875 = vadd.f32 %v852, %v866
          %v876 = vadd.f32 %v853, %v866
          %v877 = vadd.f32 %v854, %v866
          %v878 = vadd.f32 %v855, %v866
          %v879 = vadd.f32 %v856, %v866
          %v880 = vadd.f32 %v857, %v866
          %v881 = vadd.f32 %v858, %v866
          %v882 = vadd.f32 %v859, %v866
          %v883 = vadd.f32 %v860, %v866
          %v884 = vmax.f32 %v868, 0.0
          %v885 = vmax.f32 %v869, 0.0
          %v886 = vmax.f32 %v870, 0.0
          %v887 = vmax.f32 %v871, 0.0
          %v888 = vmax.f32 %v872, 0.0
          %v889 = vmax.f32 %v873, 0.0
          %v890 = vmax.f32 %v874, 0.0
          %v891 = vmax.f32 %v875, 0.0
          %v892 = vmax.f32 %v876, 0.0
          %v893 = vmax.f32 %v877, 0.0
          %v894 = vmax.f32 %v878, 0.0
          %v895 = vmax.f32 %v879, 0.0
          %v896 = vmax.f32 %v880, 0.0
          %v897 = vmax.f32 %v881, 0.0
          %v898 = vmax.f32 %v882, 0.0
          %v899 = vmax.f32 %v883, 0.0
          %v900 = vpack.c.bf16 %v885, %v884
          %v901 = vpack.c.bf16 %v887, %v886
          %v902 = vpack.c.bf16 %v889, %v888
          %v903 = vpack.c.bf16 %v891, %v890
          %v904 = vpack.c.bf16 %v893, %v892
          %v905 = vpack.c.bf16 %v895, %v894
          %v906 = vpack.c.bf16 %v897, %v896
          %v907 = vpack.c.bf16 %v899, %v898
          %v916 = vunpack.c.l.b16 %v900
          %v917 = vunpack.c.h.b16 %v900
          %v918 = vunpack.c.l.b16 %v901
          %v919 = vunpack.c.h.b16 %v901
          %v920 = vunpack.c.l.b16 %v902
          %v921 = vunpack.c.h.b16 %v902
          %v922 = vunpack.c.l.b16 %v903
          %v923 = vunpack.c.h.b16 %v903
          %v924 = vunpack.c.l.b16 %v904
          %v925 = vunpack.c.h.b16 %v904
          %v926 = vunpack.c.l.b16 %v905
          %v927 = vunpack.c.h.b16 %v905
          %v928 = vunpack.c.l.b16 %v906
          %v929 = vunpack.c.h.b16 %v906
          %v930 = vunpack.c.l.b16 %v907
          %v931 = vunpack.c.h.b16 %v907
          %v932 = vpack.c.b16 %v916, %v916
          %v933 = vpack.c.b16 %v917, %v917
          %v934 = vpack.c.b16 %v918, %v918
          %v935 = vpack.c.b16 %v919, %v919
          %v936 = vpack.c.b16 %v920, %v920
          %v937 = vpack.c.b16 %v921, %v921
          %v938 = vpack.c.b16 %v922, %v922
          %v939 = vpack.c.b16 %v923, %v923
          %v940 = vpack.c.b16 %v924, %v924
          %v941 = vpack.c.b16 %v925, %v925
          %v942 = vpack.c.b16 %v926, %v926
          %v943 = vpack.c.b16 %v927, %v927
          %v944 = vpack.c.b16 %v928, %v928
          %v945 = vpack.c.b16 %v929, %v929
          %v946 = vpack.c.b16 %v930, %v930
          %v947 = vpack.c.b16 %v931, %v931
          %964 = vst [vmem:[%s386] sm:$0xf] %v932
          %965 = vst [vmem:[%s386 + $0x4] sm:$0xf] %v933
          %966 = vst [vmem:[%s386 + $0x8] sm:$0xf] %v934
          %967 = vst [vmem:[%s386 + $0xc] sm:$0xf] %v935
          %968 = vst [vmem:[%s386 + $0x10] sm:$0xf] %v936
          %969 = vst [vmem:[%s386 + $0x14] sm:$0xf] %v937
          %970 = vst [vmem:[%s386 + $0x18] sm:$0xf] %v938
          %971 = vst [vmem:[%s386 + $0x1c] sm:$0xf] %v939
          %972 = vst [vmem:[%s386 + $0x20] sm:$0xf] %v940
          %973 = vst [vmem:[%s386 + $0x24] sm:$0xf] %v941
          %974 = vst [vmem:[%s386 + $0x28] sm:$0xf] %v942
          %975 = vst [vmem:[%s386 + $0x2c] sm:$0xf] %v943
          %976 = vst [vmem:[%s386 + $0x30] sm:$0xf] %v944
          %977 = vst [vmem:[%s386 + $0x34] sm:$0xf] %v945
          %978 = vst [vmem:[%s386 + $0x38] sm:$0xf] %v946
          %979 = vst [vmem:[%s386 + $0x3c] sm:$0xf] %v947
        $region94: #{reweighted_gcn_forward.9} parent=81 // pred_fallthru
          _
        %s980 = smul.u32 16, %s22
        %p981 = scmp.lt.s32.totalorder %s980, 31
        %s982 = scalar_select %p981, %s980, 31
        %s983 = smul.addr %s982, 4
        %s984 = scalar_lea.vmem %s7, %s983
        // Predicated region
        $region95: #{reweighted_gcn_forward.9} parent=81 // pred_check
          %p985 = pneg %p212
        $region96: #{reweighted_gcn_forward.9} parent=81 // pred_check_branch
          %987 = sbr.rel (%p985) target = $region98
        $region97: #{reweighted_gcn_forward.9} parent=81 // pred_region
          %s988 = smul.u32 16, %s22
        $region98: #{reweighted_gcn_forward.9} parent=81 // pred_fallthru
          _
      $region82: #{reweighted_gcn_forward.9} parent=5 // pred_fallthru
        _
      %p989 = scmp.le.s32.totalorder 2, %s13
      // Predicated region
      $region99: #{reweighted_gcn_forward.9} parent=5 // pred_check
        %p990 = pneg %p989
      $region100: #{reweighted_gcn_forward.9} parent=5 // pred_check_branch
        %992 = sbr.rel (%p990) target = $region102
      $region101: #{reweighted_gcn_forward.9} parent=5 // pred_region
        %s993 = ssub.s32 %s13, 2
        // Predicated region
        $region103: #{reweighted_gcn_forward.9} parent=101 // pred_check
          %p994 = pneg %p218
        $region104: #{reweighted_gcn_forward.9} parent=101 // pred_check_branch
          %996 = sbr.rel (%p994) target = $region106
        $region105: #{reweighted_gcn_forward.9} parent=101 // pred_region
          %s997 = smul.u32 16, %s24
          %p998 = scmp.lt.s32.totalorder %s997, 31
          %s999 = scalar_select %p998, %s997, 31
          %s1000 = smul.addr %s999, 4
          %s1001 = scalar_lea.vmem %s7, %s1000
        $region106: #{reweighted_gcn_forward.9} parent=101 // pred_fallthru
          _
      $region102: #{reweighted_gcn_forward.9} parent=5 // pred_fallthru
        _
    $region6: #{reweighted_gcn_forward.9} parent=1 // loop_footer
      %s17 = sadd.s32 1, %s13
    $region7: #{reweighted_gcn_forward.9} parent=1 // loop_footer_branch
      %12 = sbr.rel target = $region3
    $region8: #{reweighted_gcn_forward.9} parent=1 // loop_exit
      _

// kernel: reweighted_gcn_forward.13
$region0: #{reweighted_gcn_forward.13}
  #allocation0 [shape = 'u32[]', space=smem, size = 0x4, offset = 0x4, fixed_abs, tag = 'smem constant byte address 0x4 - core index']
  #allocation1 [shape = 'u32[144,128]{1,0:T(1,128)}', space=vmem, size = 0x12000, scoped, tag = 'internal scratch']
  #allocation2 [shape = 'f32[128,128]{1,0:T(8,128)}', space=vmem, size = 0x10000, scoped, tag = 'scratch operand']
  %s0 = inlined_call_operand.vmem [shape: s8[256,256], index: 0, kind: input, shape index: {}]
  %s1 = inlined_call_operand.vmem [shape: bf16[256,128], index: 1, kind: input, shape index: {}, may-alias: {1,2}]
  %s2 = inlined_call_operand.vmem [shape: bf16[256,128], index: 2, kind: input, shape index: {}, may-alias: {1,2}]
  %s3 = inlined_call_operand.vmem [shape: f32[256,1], index: 3, kind: input, shape index: {}]
  %s4 = inlined_call_operand.vmem [shape: f32[1,128], index: 4, kind: input, shape index: {}]
  %s5 = inlined_call_operand.vmem [shape: f32[256,128], index: 5, kind: output, shape index: {}]
  %s6 = sld [smem:[#allocation0]]
  $region99: #{reweighted_gcn_forward.13} parent=0
    _
  %s8 = ssub.s32 1, %s6
  %s9 = scalar_select 0, %s8, %s6
  $region1: #{reweighted_gcn_forward.13} parent=0
    #allocation3 [shape = 'u8[32768]{0}', space=vmem, size = 0x8000, scoped, tag = 'input window, operand 0']
    loop: start=0, step=1, limit=6
    $region2: #{reweighted_gcn_forward.13} parent=1 // loop_pre_header
      _
    $region3: #{reweighted_gcn_forward.13} parent=1 // loop_header
      %s11 = sphi 0, %s15
      %p12 = scmp.ge.s32.totalorder %s11, 6
      %s18 = sphi 0, %s30
      %s19 = sphi 0, %s26
      %s20 = sphi 0, %s18
      %s21 = sphi 0, %s19
      %s22 = sphi 0, %s20
      %s23 = sphi 0, %s21
      %s35 = sphi 0, %s37
      %s38 = sphi 0, %s35
      %s39 = sphi 0, %s38
      %s55 = sphi 0, %s39
      %s59 = sphi 0, %s59
      %s61 = sphi 0, %s59
      %s62 = sphi 0, %s61
      %s76 = sphi 0, %s62
      %s82 = sphi 0, %s84
      %s85 = sphi 0, %s82
      %s86 = sphi 0, %s85
      %s102 = sphi 0, %s86
      %s108 = sphi 0, %s110
      %s111 = sphi 0, %s108
      %s112 = sphi 0, %s111
      %s128 = sphi 0, %s112
      %s132 = sphi 0, %s132
      %s134 = sphi 0, %s132
      %s135 = sphi 0, %s134
      %s149 = sphi 0, %s135
      %s155 = sphi 0, %s157
      %s158 = sphi 0, %s155
      %s159 = sphi 0, %s158
      %s175 = sphi 0, %s159
    $region4: #{reweighted_gcn_forward.13} parent=1 // loop_header_branch
      %14 = sbr.rel (%p12) target = $region8
    $region5: #{reweighted_gcn_forward.13} parent=1 // loop_body
      %s16 = ssub.s32 %s11, 1
      %s17 = ssub.s32 %s11, 2
      %s24 = sadd.s32 1, %s19
      %p25 = scmp.ge.s32.totalorder %s24, 2
      %s26 = scalar_select %p25, 0, %s24
      %s27 = sadd.s32 1, %s18
      %s28 = scalar_select %p25, %s27, %s18
      %p29 = scmp.ge.s32.totalorder %s28, 2
      %s30 = scalar_select %p29, 0, %s28
      %s31 = ssub.s32 %s18, %s30
      %s32 = ssub.s32 %s19, %s26
      %s33 = sor.u32 %s31, %s32
      %p34 = scmp.eq.s32.totalorder %s33, 0
      %s36 = sadd.s32 %s35, 1
      %s37 = scalar_select %p34, %s35, %s36
      %p40 = pneg %p34
      %p41 = scmp.eq.s32.totalorder %s11, 3
      %p42 = por %p40, %p41
      %p43 = scmp.ne.s32.totalorder %s35, %s38
      %p44 = scmp.eq.s32.totalorder %s11, 0
      %p45 = por %p43, %p44
      %p46 = scmp.ne.s32.totalorder %s35, %s38
      %p47 = scmp.eq.s32.totalorder %s16, 3
      %p48 = por %p46, %p47
      %p49 = scmp.ne.s32.totalorder %s38, %s39
      %p50 = scmp.eq.s32.totalorder %s16, 0
      %p51 = por %p49, %p50
      %p52 = scmp.ne.s32.totalorder %s38, %s39
      %p53 = scmp.eq.s32.totalorder %s17, 3
      %p54 = por %p52, %p53
      %p56 = scmp.ne.s32.totalorder %s39, %s55
      %p57 = scmp.eq.s32.totalorder %s17, 0
      %p58 = por %p56, %p57
      %s60 = sadd.s32 %s59, 1
      %p63 = scmp.eq.s32.totalorder %s11, 3
      %p64 = scmp.ne.s32.totalorder %s59, %s61
      %p65 = scmp.eq.s32.totalorder %s11, 0
      %p66 = por %p64, %p65
      %p67 = scmp.ne.s32.totalorder %s59, %s61
      %p68 = scmp.eq.s32.totalorder %s16, 3
      %p69 = por %p67, %p68
      %p70 = scmp.ne.s32.totalorder %s61, %s62
      %p71 = scmp.eq.s32.totalorder %s16, 0
      %p72 = por %p70, %p71
      %p73 = scmp.ne.s32.totalorder %s61, %s62
      %p74 = scmp.eq.s32.totalorder %s17, 3
      %p75 = por %p73, %p74
      %p77 = scmp.ne.s32.totalorder %s62, %s76
      %p78 = scmp.eq.s32.totalorder %s17, 0
      %p79 = por %p77, %p78
      %s80 = ssub.s32 %s18, %s30
      %p81 = scmp.eq.s32.totalorder %s80, 0
      %s83 = sadd.s32 %s82, 1
      %s84 = scalar_select %p81, %s82, %s83
      %p87 = pneg %p81
      %p88 = scmp.eq.s32.totalorder %s11, 3
      %p89 = por %p87, %p88
      %p90 = scmp.ne.s32.totalorder %s82, %s85
      %p91 = scmp.eq.s32.totalorder %s11, 0
      %p92 = por %p90, %p91
      %p93 = scmp.ne.s32.totalorder %s82, %s85
      %p94 = scmp.eq.s32.totalorder %s16, 3
      %p95 = por %p93, %p94
      %p96 = scmp.ne.s32.totalorder %s85, %s86
      %p97 = scmp.eq.s32.totalorder %s16, 0
      %p98 = por %p96, %p97
      %p99 = scmp.ne.s32.totalorder %s85, %s86
      %p100 = scmp.eq.s32.totalorder %s17, 3
      %p101 = por %p99, %p100
      %p103 = scmp.ne.s32.totalorder %s86, %s102
      %p104 = scmp.eq.s32.totalorder %s17, 0
      %p105 = por %p103, %p104
      %s106 = ssub.s32 %s18, %s30
      %p107 = scmp.eq.s32.totalorder %s106, 0
      %s109 = sadd.s32 %s108, 1
      %s110 = scalar_select %p107, %s108, %s109
      %p113 = pneg %p107
      %p114 = scmp.eq.s32.totalorder %s11, 3
      %p115 = por %p113, %p114
      %p116 = scmp.ne.s32.totalorder %s108, %s111
      %p117 = scmp.eq.s32.totalorder %s11, 0
      %p118 = por %p116, %p117
      %p119 = scmp.ne.s32.totalorder %s108, %s111
      %p120 = scmp.eq.s32.totalorder %s16, 3
      %p121 = por %p119, %p120
      %p122 = scmp.ne.s32.totalorder %s111, %s112
      %p123 = scmp.eq.s32.totalorder %s16, 0
      %p124 = por %p122, %p123
      %p125 = scmp.ne.s32.totalorder %s111, %s112
      %p126 = scmp.eq.s32.totalorder %s17, 3
      %p127 = por %p125, %p126
      %p129 = scmp.ne.s32.totalorder %s112, %s128
      %p130 = scmp.eq.s32.totalorder %s17, 0
      %p131 = por %p129, %p130
      %s133 = sadd.s32 %s132, 1
      %p136 = scmp.eq.s32.totalorder %s11, 3
      %p137 = scmp.ne.s32.totalorder %s132, %s134
      %p138 = scmp.eq.s32.totalorder %s11, 0
      %p139 = por %p137, %p138
      %p140 = scmp.ne.s32.totalorder %s132, %s134
      %p141 = scmp.eq.s32.totalorder %s16, 3
      %p142 = por %p140, %p141
      %p143 = scmp.ne.s32.totalorder %s134, %s135
      %p144 = scmp.eq.s32.totalorder %s16, 0
      %p145 = por %p143, %p144
      %p146 = scmp.ne.s32.totalorder %s134, %s135
      %p147 = scmp.eq.s32.totalorder %s17, 3
      %p148 = por %p146, %p147
      %p150 = scmp.ne.s32.totalorder %s135, %s149
      %p151 = scmp.eq.s32.totalorder %s17, 0
      %p152 = por %p150, %p151
      %s153 = ssub.s32 %s18, %s30
      %p154 = scmp.eq.s32.totalorder %s153, 0
      %s156 = sadd.s32 %s155, 1
      %s157 = scalar_select %p154, %s155, %s156
      %p160 = pneg %p154
      %p161 = scmp.eq.s32.totalorder %s11, 3
      %p162 = por %p160, %p161
      %p163 = scmp.ne.s32.totalorder %s155, %s158
      %p164 = scmp.eq.s32.totalorder %s11, 0
      %p165 = por %p163, %p164
      %p166 = scmp.ne.s32.totalorder %s155, %s158
      %p167 = scmp.eq.s32.totalorder %s16, 3
      %p168 = por %p166, %p167
      %p169 = scmp.ne.s32.totalorder %s158, %s159
      %p170 = scmp.eq.s32.totalorder %s16, 0
      %p171 = por %p169, %p170
      %p172 = scmp.ne.s32.totalorder %s158, %s159
      %p173 = scmp.eq.s32.totalorder %s17, 3
      %p174 = por %p172, %p173
      %p176 = scmp.ne.s32.totalorder %s159, %s175
      %p177 = scmp.eq.s32.totalorder %s17, 0
      %p178 = por %p176, %p177
      %p179 = scmp.le.s32.totalorder 1, %s11
      %p180 = scmp.lt.s32.totalorder %s11, 5
      %p181 = pnand %p179, %p180
      %p182 = pneg %p181
      // Predicated region
      $region9: #{reweighted_gcn_forward.13} parent=5 // pred_check
        _
      $region10: #{reweighted_gcn_forward.13} parent=5 // pred_check_branch
        %184 = sbr.rel (%p181) target = $region12
      $region11: #{reweighted_gcn_forward.13} parent=5 // pred_region
        %s185 = ssub.s32 %s11, 1
        // Predicated region
        $region13: #{reweighted_gcn_forward.13} parent=11 // pred_check
          %p186 = pneg %p72
        $region14: #{reweighted_gcn_forward.13} parent=11 // pred_check_branch
          %188 = sbr.rel (%p186) target = $region16
        $region15: #{reweighted_gcn_forward.13} parent=11 // pred_region
          _
        $region16: #{reweighted_gcn_forward.13} parent=11 // pred_fallthru
          _
        // Predicated region
        $region17: #{reweighted_gcn_forward.13} parent=11 // pred_check
          %p189 = pneg %p145
        $region18: #{reweighted_gcn_forward.13} parent=11 // pred_check_branch
          %191 = sbr.rel (%p189) target = $region20
        $region19: #{reweighted_gcn_forward.13} parent=11 // pred_region
          _
        $region20: #{reweighted_gcn_forward.13} parent=11 // pred_fallthru
          _
      $region12: #{reweighted_gcn_forward.13} parent=5 // pred_fallthru
        _
      %p192 = scmp.lt.s32.totalorder %s11, 4
      // Predicated region
      $region21: #{reweighted_gcn_forward.13} parent=5 // pred_check
        %p193 = pneg %p192
      $region22: #{reweighted_gcn_forward.13} parent=5 // pred_check_branch
        %195 = sbr.rel (%p193) target = $region24
      $region23: #{reweighted_gcn_forward.13} parent=5 // pred_region
        // Predicated region
        $region25: #{reweighted_gcn_forward.13} parent=23 // pred_check
          %p196 = pneg %p45
        $region26: #{reweighted_gcn_forward.13} parent=23 // pred_check_branch
          %198 = sbr.rel (%p196) target = $region28
        $region27: #{reweighted_gcn_forward.13} parent=23 // pred_region
          %s199 = sand.u32 %s35, 1
          %s200 = sand.u32 %s35, 1
          %s201 = smul.addr %s200, 32
          %s202 = scalar_lea.vmem [#allocation3], %s201
          %s203 = smul.u32 4, %s18
          %s204 = smul.addr %s203, 2
          %s205 = sadd.s32 %s19, %s204
          %s206 = smul.addr %s205, 8
          %s207 = scalar_lea.vmem %s0, %s206
          // Predicated region
          $region29: #{reweighted_gcn_forward.13} parent=27 // pred_check
            _
          $region30: #{reweighted_gcn_forward.13} parent=27 // pred_check_branch
            %209 = sbr.rel (0) target = $region32
          $region31: #{reweighted_gcn_forward.13} parent=27 // pred_region
            // Predicated region
            $region33: #{reweighted_gcn_forward.13} parent=31 // pred_check
              _
            $region34: #{reweighted_gcn_forward.13} parent=31 // pred_check_branch
              %211 = sbr.rel (0) target = $region36
            $region35: #{reweighted_gcn_forward.13} parent=31 // pred_region
              // Predicated region
              $region48: #{reweighted_gcn_forward.13} parent=35 // pred_check
                _
              $region49: #{reweighted_gcn_forward.13} parent=35 // pred_check_branch
                %232 = sbr.rel (0) target = $region51
              $region50: #{reweighted_gcn_forward.13} parent=35 // pred_region
                loop: start=0, step=1, limit=1
                $region52: #{reweighted_gcn_forward.13} parent=50 // loop_pre_header
                  _
                $region53: #{reweighted_gcn_forward.13} parent=50 // loop_header
                  %s234 = sphi 0, %s238
                  %p235 = scmp.ge.s32.totalorder %s234, 1
                  %s239 = sphi %s207, %s207
                  %s240 = sphi %s202, %s202
                $region54: #{reweighted_gcn_forward.13} parent=50 // loop_header_branch
                  %237 = sbr.rel (%p235) target = $region58
                $region55: #{reweighted_gcn_forward.13} parent=50 // loop_body
                  %v241 = vld [vmem:[%s239] sm:$0xff]
                  %242 = vst [vmem:[%s240] sm:$0xff] %v241
                  %v243 = vld [vmem:[%s239 + $0x10] sm:$0xff]
                  %244 = vst [vmem:[%s240 + $0x8] sm:$0xff] %v243
                  %v245 = vld [vmem:[%s239 + $0x20] sm:$0xff]
                  %246 = vst [vmem:[%s240 + $0x10] sm:$0xff] %v245
                  %v247 = vld [vmem:[%s239 + $0x30] sm:$0xff]
                  %248 = vst [vmem:[%s240 + $0x18] sm:$0xff] %v247
                $region56: #{reweighted_gcn_forward.13} parent=50 // loop_footer
                  %s238 = sadd.s32 1, %s234
                $region57: #{reweighted_gcn_forward.13} parent=50 // loop_footer_branch
                  %233 = sbr.rel target = $region53
                $region58: #{reweighted_gcn_forward.13} parent=50 // loop_exit
                  _
              $region51: #{reweighted_gcn_forward.13} parent=35 // pred_fallthru
                _
              // Predicated region
              $region59: #{reweighted_gcn_forward.13} parent=35 // pred_check
                _
              $region60: #{reweighted_gcn_forward.13} parent=35 // pred_check_branch
                %250 = sbr.rel target = $region62
              $region61: #{reweighted_gcn_forward.13} parent=35 // pred_region
                _
              $region62: #{reweighted_gcn_forward.13} parent=35 // pred_fallthru
                _
            $region36: #{reweighted_gcn_forward.13} parent=31 // pred_fallthru
              _
            // Predicated region
            $region37: #{reweighted_gcn_forward.13} parent=31 // pred_check
              _
            $region38: #{reweighted_gcn_forward.13} parent=31 // pred_check_branch
              %213 = sbr.rel target = $region40
            $region39: #{reweighted_gcn_forward.13} parent=31 // pred_region
              loop: start=0, step=1, limit=1
              $region41: #{reweighted_gcn_forward.13} parent=39 // loop_pre_header
                _
              $region42: #{reweighted_gcn_forward.13} parent=39 // loop_header
                %s216 = sphi 0, %s220
                %p217 = scmp.ge.s32.totalorder %s216, 1
                %s221 = sphi %s207, %s207
                %s222 = sphi %s202, %s202
              $region43: #{reweighted_gcn_forward.13} parent=39 // loop_header_branch
                %219 = sbr.rel (%p217) target = $region47
              $region44: #{reweighted_gcn_forward.13} parent=39 // loop_body
                %v223 = vld [vmem:[%s221] sm:$0xff]
                %224 = vst [vmem:[%s222] sm:$0xff] %v223
                %v225 = vld [vmem:[%s221 + $0x10] sm:$0xff]
                %226 = vst [vmem:[%s222 + $0x8] sm:$0xff] %v225
                %v227 = vld [vmem:[%s221 + $0x20] sm:$0xff]
                %228 = vst [vmem:[%s222 + $0x10] sm:$0xff] %v227
                %v229 = vld [vmem:[%s221 + $0x30] sm:$0xff]
                %230 = vst [vmem:[%s222 + $0x18] sm:$0xff] %v229
              $region45: #{reweighted_gcn_forward.13} parent=39 // loop_footer
                %s220 = sadd.s32 1, %s216
              $region46: #{reweighted_gcn_forward.13} parent=39 // loop_footer_branch
                %215 = sbr.rel target = $region42
              $region47: #{reweighted_gcn_forward.13} parent=39 // loop_exit
                _
            $region40: #{reweighted_gcn_forward.13} parent=31 // pred_fallthru
              _
          $region32: #{reweighted_gcn_forward.13} parent=27 // pred_fallthru
            _
          %251 = vnop
        $region28: #{reweighted_gcn_forward.13} parent=23 // pred_fallthru
          _
        // Predicated region
        $region63: #{reweighted_gcn_forward.13} parent=23 // pred_check
          %p252 = pneg %p92
        $region64: #{reweighted_gcn_forward.13} parent=23 // pred_check_branch
          %254 = sbr.rel (%p252) target = $region66
        $region65: #{reweighted_gcn_forward.13} parent=23 // pred_region
          %s255 = smul.u32 16, %s18
          %p256 = scmp.lt.s32.totalorder %s255, 31
          %s257 = scalar_select %p256, %s255, 31
          %s258 = smul.addr %s257, 4
          %s259 = scalar_lea.vmem %s2, %s258
          %s260 = smul.u32 16, %s18
        $region66: #{reweighted_gcn_forward.13} parent=23 // pred_fallthru
          _
        // Predicated region
        $region67: #{reweighted_gcn_forward.13} parent=23 // pred_check
          %p261 = pneg %p118
        $region68: #{reweighted_gcn_forward.13} parent=23 // pred_check_branch
          %263 = sbr.rel (%p261) target = $region70
        $region69: #{reweighted_gcn_forward.13} parent=23 // pred_region
          %s264 = smul.u32 16, %s18
          %p265 = scmp.lt.s32.totalorder %s264, 31
          %s266 = scalar_select %p265, %s264, 31
          %s267 = smul.addr %s266, 8
          %s268 = scalar_lea.vmem %s3, %s267
          %s269 = smul.u32 16, %s18
        $region70: #{reweighted_gcn_forward.13} parent=23 // pred_fallthru
          _
      $region24: #{reweighted_gcn_forward.13} parent=5 // pred_fallthru
        _
      %p270 = scmp.le.s32.totalorder 1, %s11
      %p271 = scmp.lt.s32.totalorder %s11, 5
      %p272 = pnand %p270, %p271
      %p273 = pneg %p272
      // Predicated region
      $region71: #{reweighted_gcn_forward.13} parent=5 // pred_check
        _
      $region72: #{reweighted_gcn_forward.13} parent=5 // pred_check_branch
        %275 = sbr.rel (%p272) target = $region74
      $region73: #{reweighted_gcn_forward.13} parent=5 // pred_region
        %s276 = ssub.s32 %s11, 1
        %s277 = sand.u32 %s38, 1
        %s278 = sand.u32 %s38, 1
        %s279 = smul.addr %s278, 32
        %s280 = scalar_lea.vmem [#allocation3], %s279
        // Predicated region
        $region75: #{reweighted_gcn_forward.13} parent=73 // pred_check
          %p281 = pneg %p51
        $region76: #{reweighted_gcn_forward.13} parent=73 // pred_check_branch
          %283 = sbr.rel (%p281) target = $region78
        $region77: #{reweighted_gcn_forward.13} parent=73 // pred_region
          _
        $region78: #{reweighted_gcn_forward.13} parent=73 // pred_fallthru
          _
        %s284 = sand.u32 %s38, 1
        %s285 = sand.u32 %s38, 1
        %s286 = smul.addr %s285, 32
        %s287 = scalar_lea.vmem [#allocation3], %s286
        %p288 = pneg %p51
        %p289 = pneg %p48
        %p290 = pneg %p72
        %p291 = pneg %p69
        %s292 = smul.u32 16, %s20
        %p293 = scmp.lt.s32.totalorder %s292, 31
        %s294 = scalar_select %p293, %s292, 31
        %s295 = smul.addr %s294, 4
        %s296 = scalar_lea.vmem %s2, %s295
        %p297 = pneg %p98
        %p298 = pneg %p95
        %s299 = smul.u32 16, %s20
        %p300 = scmp.lt.s32.totalorder %s299, 31
        %s301 = scalar_select %p300, %s299, 31
        %s302 = smul.addr %s301, 8
        %s303 = scalar_lea.vmem %s3, %s302
        %p304 = pneg %p124
        %p305 = pneg %p121
        %p306 = pneg %p145
        %p307 = pneg %p142
        %p308 = pneg %p171
        %p309 = pneg %p168
        %s310 = smul.u32 16, %s20
        %p311 = scmp.lt.s32.totalorder %s310, 31
        %s312 = scalar_select %p311, %s310, 31
        %s313 = smul.addr %s312, 8
        %s314 = scalar_lea.vmem %s5, %s313
        %s315 = smul.u32 4, %s20
        %s316 = smul.u32 16, %s20
        %p317 = scmp.lt.s32.totalorder %s316, 31
        %s318 = scalar_select %p317, %s316, 31
        %s319 = smul.addr %s318, 4
        %s320 = scalar_lea.vmem %s2, %s319
        %s321 = smul.u32 16, %s20
        %s322 = smul.u32 16, %s20
        %p323 = scmp.lt.s32.totalorder %s322, 31
        %s324 = scalar_select %p323, %s322, 31
        %s325 = smul.addr %s324, 8
        %s326 = scalar_lea.vmem %s3, %s325
        %s327 = smul.u32 16, %s20
        %s328 = smul.u32 16, %s20
        %p329 = scmp.lt.s32.totalorder %s328, 31
        %s330 = scalar_select %p329, %s328, 31
        %s331 = smul.addr %s330, 8
        %s332 = scalar_lea.vmem %s5, %s331
        %s333 = smul.u32 16, %s20
        %p335 = scmp.eq.s32.totalorder %s21, 0
        // Predicated region
        $region79: #{reweighted_gcn_forward.13} parent=73 // pred_check
          %p336 = pneg %p335
        $region80: #{reweighted_gcn_forward.13} parent=73 // pred_check_branch
          %338 = sbr.rel (%p336) target = $region82
        $region81: #{reweighted_gcn_forward.13} parent=73 // pred_region
          %339 = vst [vmem:[#allocation2] sm:$0xff] 0.0
          %340 = vst [vmem:[#allocation2 + $0x8] sm:$0xff] 0.0
          %341 = vst [vmem:[#allocation2 + $0x10] sm:$0xff] 0.0
          %342 = vst [vmem:[#allocation2 + $0x18] sm:$0xff] 0.0
          %343 = vst [vmem:[#allocation2 + $0x20] sm:$0xff] 0.0
          %344 = vst [vmem:[#allocation2 + $0x28] sm:$0xff] 0.0
          %345 = vst [vmem:[#allocation2 + $0x30] sm:$0xff] 0.0
          %346 = vst [vmem:[#allocation2 + $0x38] sm:$0xff] 0.0
          %347 = vst [vmem:[#allocation2 + $0x40] sm:$0xff] 0.0
          %348 = vst [vmem:[#allocation2 + $0x48] sm:$0xff] 0.0
          %349 = vst [vmem:[#allocation2 + $0x50] sm:$0xff] 0.0
          %350 = vst [vmem:[#allocation2 + $0x58] sm:$0xff] 0.0
          %351 = vst [vmem:[#allocation2 + $0x60] sm:$0xff] 0.0
          %352 = vst [vmem:[#allocation2 + $0x68] sm:$0xff] 0.0
          %353 = vst [vmem:[#allocation2 + $0x70] sm:$0xff] 0.0
          %354 = vst [vmem:[#allocation2 + $0x78] sm:$0xff] 0.0
        $region82: #{reweighted_gcn_forward.13} parent=73 // pred_fallthru
          _
        %s355 = smul.u32 %s21, 128
        %s356 = sshra.s32 %s355, 3
        %s357 = sand.u32 %s355, 7
        %s358 = smul.addr %s356, 4
        %s359 = scalar_lea.vmem %s1, %s358
        %v360 = vld [vmem:[%s359] sm:$0xf]
        %v361 = vld [vmem:[%s359 + $0x4] sm:$0xf]
        %v362 = vld [vmem:[%s359 + $0x8] sm:$0xf]
        %v363 = vld [vmem:[%s359 + $0xc] sm:$0xf]
        %v364 = vld [vmem:[%s359 + $0x10] sm:$0xf]
        %v365 = vld [vmem:[%s359 + $0x14] sm:$0xf]
        %v366 = vld [vmem:[%s359 + $0x18] sm:$0xf]
        %v367 = vld [vmem:[%s359 + $0x1c] sm:$0xf]
        %v368 = vld [vmem:[%s359 + $0x20] sm:$0xf]
        %v369 = vld [vmem:[%s359 + $0x24] sm:$0xf]
        %v370 = vld [vmem:[%s359 + $0x28] sm:$0xf]
        %v371 = vld [vmem:[%s359 + $0x2c] sm:$0xf]
        %v372 = vld [vmem:[%s359 + $0x30] sm:$0xf]
        %v373 = vld [vmem:[%s359 + $0x34] sm:$0xf]
        %v374 = vld [vmem:[%s359 + $0x38] sm:$0xf]
        %v375 = vld [vmem:[%s359 + $0x3c] sm:$0xf]
        %v376 = vld [vmem:[%s280] sm:$0xff]
        %v377 = vld [vmem:[%s280 + $0x8] sm:$0xff]
        %v378 = vld [vmem:[%s280 + $0x10] sm:$0xff]
        %v379 = vld [vmem:[%s280 + $0x18] sm:$0xff]
        %v380 = vunpack.c.l.s8.bf16 %v376
        %v381 = vunpack.c.h.s8.bf16 %v376
        %v382 = vunpack.c.l.s8.bf16 %v377
        %v383 = vunpack.c.h.s8.bf16 %v377
        %v384 = vunpack.c.l.s8.bf16 %v378
        %v385 = vunpack.c.h.s8.bf16 %v378
        %v386 = vunpack.c.l.s8.bf16 %v379
        %v387 = vunpack.c.h.s8.bf16 %v379
        %v388 = vld [vmem:[#allocation2] sm:$0xff]
        %v389 = vld [vmem:[#allocation2 + $0x8] sm:$0xff]
        %v390 = vld [vmem:[#allocation2 + $0x10] sm:$0xff]
        %v391 = vld [vmem:[#allocation2 + $0x18] sm:$0xff]
        %v392 = vld [vmem:[#allocation2 + $0x20] sm:$0xff]
        %v393 = vld [vmem:[#allocation2 + $0x28] sm:$0xff]
        %v394 = vld [vmem:[#allocation2 + $0x30] sm:$0xff]
        %v395 = vld [vmem:[#allocation2 + $0x38] sm:$0xff]
        %v396 = vld [vmem:[#allocation2 + $0x40] sm:$0xff]
        %v397 = vld [vmem:[#allocation2 + $0x48] sm:$0xff]
        %v398 = vld [vmem:[#allocation2 + $0x50] sm:$0xff]
        %v399 = vld [vmem:[#allocation2 + $0x58] sm:$0xff]
        %v400 = vld [vmem:[#allocation2 + $0x60] sm:$0xff]
        %v401 = vld [vmem:[#allocation2 + $0x68] sm:$0xff]
        %v402 = vld [vmem:[#allocation2 + $0x70] sm:$0xff]
        %v403 = vld [vmem:[#allocation2 + $0x78] sm:$0xff]
        %v420 = vunpack.c.l.b16 %v360
        %v421 = vunpack.c.l.b16 %v361
        %v422 = vunpack.c.l.b16 %v362
        %v423 = vunpack.c.l.b16 %v363
        %v424 = vunpack.c.l.b16 %v364
        %v425 = vunpack.c.l.b16 %v365
        %v426 = vunpack.c.l.b16 %v366
        %v427 = vunpack.c.l.b16 %v367
        %v428 = vunpack.c.l.b16 %v368
        %v429 = vunpack.c.l.b16 %v369
        %v430 = vunpack.c.l.b16 %v370
        %v431 = vunpack.c.l.b16 %v371
        %v432 = vunpack.c.l.b16 %v372
        %v433 = vunpack.c.l.b16 %v373
        %v434 = vunpack.c.l.b16 %v374
        %v435 = vunpack.c.l.b16 %v375
        %v436 = vpack.c.b16 %v421, %v420
        %v437 = vpack.c.b16 %v423, %v422
        %v438 = vpack.c.b16 %v425, %v424
        %v439 = vpack.c.b16 %v427, %v426
        %v440 = vpack.c.b16 %v429, %v428
        %v441 = vpack.c.b16 %v431, %v430
        %v442 = vpack.c.b16 %v433, %v432
        %v443 = vpack.c.b16 %v435, %v434
        %452 = vmatprep.subr.bf16.mxu0 0
        %453 = vmatpush1.bf16.msra.mxu0 %v436
        %454 = vmatprep.subr.bf16.mxu0 0
        %455 = vmatpush1.bf16.msra.mxu0 %v437
        %456 = vmatprep.subr.bf16.mxu0 0
        %457 = vmatpush1.bf16.msra.mxu0 %v438
        %458 = vmatprep.subr.bf16.mxu0 0
        %459 = vmatpush1.bf16.msra.mxu0 %v439
        %460 = vmatprep.subr.bf16.mxu0 0
        %461 = vmatpush1.bf16.msra.mxu0 %v440
        %462 = vmatprep.subr.bf16.mxu0 0
        %463 = vmatpush1.bf16.msra.mxu0 %v441
        %464 = vmatprep.subr.bf16.mxu0 0
        %465 = vmatpush1.bf16.msra.mxu0 %v442
        %466 = vmatprep.subr.bf16.mxu0 0
        %467 = vmatpush1.bf16.msra.mxu0 %v443
        %468 = vmatprep.subr.bf16.mxu0 0
        %469 = vmatpush1.bf16.msra.mxu0 0
        %470 = vmatprep.subr.bf16.mxu0 0
        %471 = vmatpush1.bf16.msra.mxu0 0
        %472 = vmatprep.subr.bf16.mxu0 0
        %473 = vmatpush1.bf16.msra.mxu0 0
        %474 = vmatprep.subr.bf16.mxu0 0
        %475 = vmatpush1.bf16.msra.mxu0 0
        %476 = vmatprep.subr.bf16.mxu0 0
        %477 = vmatpush1.bf16.msra.mxu0 0
        %478 = vmatprep.subr.bf16.mxu0 0
        %479 = vmatpush1.bf16.msra.mxu0 0
        %480 = vmatprep.subr.bf16.mxu0 0
        %481 = vmatpush1.bf16.msra.mxu0 0
        %482 = vmatprep.subr.bf16.mxu0 0
        %483 = vmatpush1.bf16.msra.mxu0 0
        %484 = vmatprep.mubr.bf16.mxu0 0
        %485 = vmatmul.mubr.bf16.gmra.mrb[0].mxu0 %v380
        %v486 = vpop.f32.mrb[0].mxu0
        %v487 = vadd.f32 0.0, %v486
        %v488 = vpop.f32.mrb[0].mxu0
        %v489 = vpop.f32.mrb[0].mxu0
        %v490 = vadd.f32 0.0, %v489
        %v491 = vpop.f32.mrb[0].mxu0
        %492 = vmatprep.mubr.bf16.mxu0 0
        %493 = vmatmul.mubr.bf16.gmra.mrb[0].mxu0 %v381
        %v494 = vpop.f32.mrb[0].mxu0
        %v495 = vadd.f32 0.0, %v494
        %v496 = vpop.f32.mrb[0].mxu0
        %v497 = vpop.f32.mrb[0].mxu0
        %v498 = vadd.f32 0.0, %v497
        %v499 = vpop.f32.mrb[0].mxu0
        %500 = vmatprep.mubr.bf16.mxu0 0
        %501 = vmatmul.mubr.bf16.gmra.mrb[0].mxu0 %v382
        %v502 = vpop.f32.mrb[0].mxu0
        %v503 = vadd.f32 0.0, %v502
        %v504 = vpop.f32.mrb[0].mxu0
        %v505 = vpop.f32.mrb[0].mxu0
        %v506 = vadd.f32 0.0, %v505
        %v507 = vpop.f32.mrb[0].mxu0
        %508 = vmatprep.mubr.bf16.mxu0 0
        %509 = vmatmul.mubr.bf16.gmra.mrb[0].mxu0 %v383
        %v510 = vpop.f32.mrb[0].mxu0
        %v511 = vadd.f32 0.0, %v510
        %v512 = vpop.f32.mrb[0].mxu0
        %v513 = vpop.f32.mrb[0].mxu0
        %v514 = vadd.f32 0.0, %v513
        %v515 = vpop.f32.mrb[0].mxu0
        %516 = vmatprep.mubr.bf16.mxu0 0
        %517 = vmatmul.mubr.bf16.gmra.mrb[0].mxu0 %v384
        %v518 = vpop.f32.mrb[0].mxu0
        %v519 = vadd.f32 0.0, %v518
        %v520 = vpop.f32.mrb[0].mxu0
        %v521 = vpop.f32.mrb[0].mxu0
        %v522 = vadd.f32 0.0, %v521
        %v523 = vpop.f32.mrb[0].mxu0
        %524 = vmatprep.mubr.bf16.mxu0 0
        %525 = vmatmul.mubr.bf16.gmra.mrb[0].mxu0 %v385
        %v526 = vpop.f32.mrb[0].mxu0
        %v527 = vadd.f32 0.0, %v526
        %v528 = vpop.f32.mrb[0].mxu0
        %v529 = vpop.f32.mrb[0].mxu0
        %v530 = vadd.f32 0.0, %v529
        %v531 = vpop.f32.mrb[0].mxu0
        %532 = vmatprep.mubr.bf16.mxu0 0
        %533 = vmatmul.mubr.bf16.gmra.mrb[0].mxu0 %v386
        %v534 = vpop.f32.mrb[0].mxu0
        %v535 = vadd.f32 0.0, %v534
        %v536 = vpop.f32.mrb[0].mxu0
        %v537 = vpop.f32.mrb[0].mxu0
        %v538 = vadd.f32 0.0, %v537
        %v539 = vpop.f32.mrb[0].mxu0
        %540 = vmatprep.mubr.bf16.mxu0 0
        %541 = vmatmul.mubr.bf16.gmra.mrb[0].mxu0 %v387
        %v542 = vpop.f32.mrb[0].mxu0
        %v543 = vadd.f32 0.0, %v542
        %v544 = vpop.f32.mrb[0].mxu0
        %v545 = vpop.f32.mrb[0].mxu0
        %v546 = vadd.f32 0.0, %v545
        %v547 = vpop.f32.mrb[0].mxu0
        %548 = vdwg.mxu0
        %v549 = vadd.f32 %v388, %v487
        %v550 = vadd.f32 %v389, %v490
        %v551 = vadd.f32 %v390, %v495
        %v552 = vadd.f32 %v391, %v498
        %v553 = vadd.f32 %v392, %v503
        %v554 = vadd.f32 %v393, %v506
        %v555 = vadd.f32 %v394, %v511
        %v556 = vadd.f32 %v395, %v514
        %v557 = vadd.f32 %v396, %v519
        %v558 = vadd.f32 %v397, %v522
        %v559 = vadd.f32 %v398, %v527
        %v560 = vadd.f32 %v399, %v530
        %v561 = vadd.f32 %v400, %v535
        %v562 = vadd.f32 %v401, %v538
        %v563 = vadd.f32 %v402, %v543
        %v564 = vadd.f32 %v403, %v546
        %565 = vst [vmem:[#allocation2] sm:$0xff] %v549
        %566 = vst [vmem:[#allocation2 + $0x8] sm:$0xff] %v550
        %567 = vst [vmem:[#allocation2 + $0x10] sm:$0xff] %v551
        %568 = vst [vmem:[#allocation2 + $0x18] sm:$0xff] %v552
        %569 = vst [vmem:[#allocation2 + $0x20] sm:$0xff] %v553
        %570 = vst [vmem:[#allocation2 + $0x28] sm:$0xff] %v554
        %571 = vst [vmem:[#allocation2 + $0x30] sm:$0xff] %v555
        %572 = vst [vmem:[#allocation2 + $0x38] sm:$0xff] %v556
        %573 = vst [vmem:[#allocation2 + $0x40] sm:$0xff] %v557
        %574 = vst [vmem:[#allocation2 + $0x48] sm:$0xff] %v558
        %575 = vst [vmem:[#allocation2 + $0x50] sm:$0xff] %v559
        %576 = vst [vmem:[#allocation2 + $0x58] sm:$0xff] %v560
        %577 = vst [vmem:[#allocation2 + $0x60] sm:$0xff] %v561
        %578 = vst [vmem:[#allocation2 + $0x68] sm:$0xff] %v562
        %579 = vst [vmem:[#allocation2 + $0x70] sm:$0xff] %v563
        %580 = vst [vmem:[#allocation2 + $0x78] sm:$0xff] %v564
        %p581 = scmp.eq.s32.totalorder %s21, 1
        // Predicated region
        $region83: #{reweighted_gcn_forward.13} parent=73 // pred_check
          %p582 = pneg %p581
        $region84: #{reweighted_gcn_forward.13} parent=73 // pred_check_branch
          %584 = sbr.rel (%p582) target = $region86
        $region85: #{reweighted_gcn_forward.13} parent=73 // pred_region
          %v585 = vld [vmem:[%s326] sm:$0xff]
          %v586 = vld [vmem:[%s326 + $0x8] sm:$0xff]
          %v587 = vld [vmem:[%s326 + $0x10] sm:$0xff]
          %v588 = vld [vmem:[%s326 + $0x18] sm:$0xff]
          %v589 = vld [vmem:[%s326 + $0x20] sm:$0xff]
          %v590 = vld [vmem:[%s326 + $0x28] sm:$0xff]
          %v591 = vld [vmem:[%s326 + $0x30] sm:$0xff]
          %v592 = vld [vmem:[%s326 + $0x38] sm:$0xff]
          %v593 = vld [vmem:[%s326 + $0x40] sm:$0xff]
          %v594 = vld [vmem:[%s326 + $0x48] sm:$0xff]
          %v595 = vld [vmem:[%s326 + $0x50] sm:$0xff]
          %v596 = vld [vmem:[%s326 + $0x58] sm:$0xff]
          %v597 = vld [vmem:[%s326 + $0x60] sm:$0xff]
          %v598 = vld [vmem:[%s326 + $0x68] sm:$0xff]
          %v599 = vld [vmem:[%s326 + $0x70] sm:$0xff]
          %v600 = vld [vmem:[%s326 + $0x78] sm:$0xff]
          %v601 = vld [vmem:[#allocation2] sm:$0xff]
          %v602 = vld [vmem:[#allocation2 + $0x8] sm:$0xff]
          %v603 = vld [vmem:[#allocation2 + $0x10] sm:$0xff]
          %v604 = vld [vmem:[#allocation2 + $0x18] sm:$0xff]
          %v605 = vld [vmem:[#allocation2 + $0x20] sm:$0xff]
          %v606 = vld [vmem:[#allocation2 + $0x28] sm:$0xff]
          %v607 = vld [vmem:[#allocation2 + $0x30] sm:$0xff]
          %v608 = vld [vmem:[#allocation2 + $0x38] sm:$0xff]
          %v609 = vld [vmem:[#allocation2 + $0x40] sm:$0xff]
          %v610 = vld [vmem:[#allocation2 + $0x48] sm:$0xff]
          %v611 = vld [vmem:[#allocation2 + $0x50] sm:$0xff]
          %v612 = vld [vmem:[#allocation2 + $0x58] sm:$0xff]
          %v613 = vld [vmem:[#allocation2 + $0x60] sm:$0xff]
          %v614 = vld [vmem:[#allocation2 + $0x68] sm:$0xff]
          %v615 = vld [vmem:[#allocation2 + $0x70] sm:$0xff]
          %v616 = vld [vmem:[#allocation2 + $0x78] sm:$0xff]
          %v617 = vld [vmem:[%s320] sm:$0xf]
          %v618 = vld [vmem:[%s320 + $0x4] sm:$0xf]
          %v619 = vld [vmem:[%s320 + $0x8] sm:$0xf]
          %v620 = vld [vmem:[%s320 + $0xc] sm:$0xf]
          %v621 = vld [vmem:[%s320 + $0x10] sm:$0xf]
          %v622 = vld [vmem:[%s320 + $0x14] sm:$0xf]
          %v623 = vld [vmem:[%s320 + $0x18] sm:$0xf]
          %v624 = vld [vmem:[%s320 + $0x1c] sm:$0xf]
          %v625 = vld [vmem:[%s320 + $0x20] sm:$0xf]
          %v626 = vld [vmem:[%s320 + $0x24] sm:$0xf]
          %v627 = vld [vmem:[%s320 + $0x28] sm:$0xf]
          %v628 = vld [vmem:[%s320 + $0x2c] sm:$0xf]
          %v629 = vld [vmem:[%s320 + $0x30] sm:$0xf]
          %v630 = vld [vmem:[%s320 + $0x34] sm:$0xf]
          %v631 = vld [vmem:[%s320 + $0x38] sm:$0xf]
          %v632 = vld [vmem:[%s320 + $0x3c] sm:$0xf]
          %v633 = vunpack.c.l.bf16 %v617
          %v634 = vunpack.c.l.bf16 %v618
          %v635 = vunpack.c.l.bf16 %v619
          %v636 = vunpack.c.l.bf16 %v620
          %v637 = vunpack.c.l.bf16 %v621
          %v638 = vunpack.c.l.bf16 %v622
          %v639 = vunpack.c.l.bf16 %v623
          %v640 = vunpack.c.l.bf16 %v624
          %v641 = vunpack.c.l.bf16 %v625
          %v642 = vunpack.c.l.bf16 %v626
          %v643 = vunpack.c.l.bf16 %v627
          %v644 = vunpack.c.l.bf16 %v628
          %v645 = vunpack.c.l.bf16 %v629
          %v646 = vunpack.c.l.bf16 %v630
          %v647 = vunpack.c.l.bf16 %v631
          %v648 = vunpack.c.l.bf16 %v632
          %v649 = vadd.f32 %v601, %v633
          %v650 = vadd.f32 %v602, %v634
          %v651 = vadd.f32 %v603, %v635
          %v652 = vadd.f32 %v604, %v636
          %v653 = vadd.f32 %v605, %v637
          %v654 = vadd.f32 %v606, %v638
          %v655 = vadd.f32 %v607, %v639
          %v656 = vadd.f32 %v608, %v640
          %v657 = vadd.f32 %v609, %v641
          %v658 = vadd.f32 %v610, %v642
          %v659 = vadd.f32 %v611, %v643
          %v660 = vadd.f32 %v612, %v644
          %v661 = vadd.f32 %v613, %v645
          %v662 = vadd.f32 %v614, %v646
          %v663 = vadd.f32 %v615, %v647
          %v664 = vadd.f32 %v616, %v648
          %666 = vset.pattern.permute.xlu0 0
          %667 = vperm.xlu0 %666, %v585
          %v668 = vpop.permute.xlu0 %667
          %671 = vset.pattern.permute.xlu0 0
          %672 = vperm.xlu0 %671, %v586
          %v673 = vpop.permute.xlu0 %672
          %676 = vset.pattern.permute.xlu0 0
          %677 = vperm.xlu0 %676, %v587
          %v678 = vpop.permute.xlu0 %677
          %681 = vset.pattern.permute.xlu0 0
          %682 = vperm.xlu0 %681, %v588
          %v683 = vpop.permute.xlu0 %682
          %686 = vset.pattern.permute.xlu0 0
          %687 = vperm.xlu0 %686, %v589
          %v688 = vpop.permute.xlu0 %687
          %691 = vset.pattern.permute.xlu0 0
          %692 = vperm.xlu0 %691, %v590
          %v693 = vpop.permute.xlu0 %692
          %696 = vset.pattern.permute.xlu0 0
          %697 = vperm.xlu0 %696, %v591
          %v698 = vpop.permute.xlu0 %697
          %701 = vset.pattern.permute.xlu0 0
          %702 = vperm.xlu0 %701, %v592
          %v703 = vpop.permute.xlu0 %702
          %706 = vset.pattern.permute.xlu0 0
          %707 = vperm.xlu0 %706, %v593
          %v708 = vpop.permute.xlu0 %707
          %711 = vset.pattern.permute.xlu0 0
          %712 = vperm.xlu0 %711, %v594
          %v713 = vpop.permute.xlu0 %712
          %716 = vset.pattern.permute.xlu0 0
          %717 = vperm.xlu0 %716, %v595
          %v718 = vpop.permute.xlu0 %717
          %721 = vset.pattern.permute.xlu0 0
          %722 = vperm.xlu0 %721, %v596
          %v723 = vpop.permute.xlu0 %722
          %726 = vset.pattern.permute.xlu0 0
          %727 = vperm.xlu0 %726, %v597
          %v728 = vpop.permute.xlu0 %727
          %731 = vset.pattern.permute.xlu0 0
          %732 = vperm.xlu0 %731, %v598
          %v733 = vpop.permute.xlu0 %732
          %736 = vset.pattern.permute.xlu0 0
          %737 = vperm.xlu0 %736, %v599
          %v738 = vpop.permute.xlu0 %737
          %741 = vset.pattern.permute.xlu0 0
          %742 = vperm.xlu0 %741, %v600
          %v743 = vpop.permute.xlu0 %742
          %v745 = vmul.f32 %v668, %v649
          %v746 = vmul.f32 %v673, %v650
          %v747 = vmul.f32 %v678, %v651
          %v748 = vmul.f32 %v683, %v652
          %v749 = vmul.f32 %v688, %v653
          %v750 = vmul.f32 %v693, %v654
          %v751 = vmul.f32 %v698, %v655
          %v752 = vmul.f32 %v703, %v656
          %v753 = vmul.f32 %v708, %v657
          %v754 = vmul.f32 %v713, %v658
          %v755 = vmul.f32 %v718, %v659
          %v756 = vmul.f32 %v723, %v660
          %v757 = vmul.f32 %v728, %v661
          %v758 = vmul.f32 %v733, %v662
          %v759 = vmul.f32 %v738, %v663
          %v760 = vmul.f32 %v743, %v664
          %v761 = vld [vmem:[%s4] sm:$0x1]
          %v763 = vlaneseq
          %v764 = vshrl.u32 %v763, 7
          %v765 = vsub.s32 0, %v764
          %v766 = vrot.slane %v761, %v765
          %v768 = vadd.f32 %v745, %v766
          %v769 = vadd.f32 %v746, %v766
          %v770 = vadd.f32 %v747, %v766
          %v771 = vadd.f32 %v748, %v766
          %v772 = vadd.f32 %v749, %v766
          %v773 = vadd.f32 %v750, %v766
          %v774 = vadd.f32 %v751, %v766
          %v775 = vadd.f32 %v752, %v766
          %v776 = vadd.f32 %v753, %v766
          %v777 = vadd.f32 %v754, %v766
          %v778 = vadd.f32 %v755, %v766
          %v779 = vadd.f32 %v756, %v766
          %v780 = vadd.f32 %v757, %v766
          %v781 = vadd.f32 %v758, %v766
          %v782 = vadd.f32 %v759, %v766
          %v783 = vadd.f32 %v760, %v766
          %v784 = vlaneseq
          %v785 = vand.u32 %v784, 127
          %vm786 = vcmp.lt.s32.totalorder %v785, 8
          %v787 = vsel %vm786, %v768, -1e+30
          %v788 = vsel %vm786, %v769, -1e+30
          %v789 = vsel %vm786, %v770, -1e+30
          %v790 = vsel %vm786, %v771, -1e+30
          %v791 = vsel %vm786, %v772, -1e+30
          %v792 = vsel %vm786, %v773, -1e+30
          %v793 = vsel %vm786, %v774, -1e+30
          %v794 = vsel %vm786, %v775, -1e+30
          %v795 = vsel %vm786, %v776, -1e+30
          %v796 = vsel %vm786, %v777, -1e+30
          %v797 = vsel %vm786, %v778, -1e+30
          %v798 = vsel %vm786, %v779, -1e+30
          %v799 = vsel %vm786, %v780, -1e+30
          %v800 = vsel %vm786, %v781, -1e+30
          %v801 = vsel %vm786, %v782, -1e+30
          %v802 = vsel %vm786, %v783, -1e+30
          %803 = vmax.xlane.f32.xlu0 %v787
          %v804 = vpop.xlane.xlu0 %803
          %805 = vmax.xlane.f32.xlu0 %v788
          %v806 = vpop.xlane.xlu0 %805
          %807 = vmax.xlane.f32.xlu0 %v789
          %v808 = vpop.xlane.xlu0 %807
          %809 = vmax.xlane.f32.xlu0 %v790
          %v810 = vpop.xlane.xlu0 %809
          %811 = vmax.xlane.f32.xlu0 %v791
          %v812 = vpop.xlane.xlu0 %811
          %813 = vmax.xlane.f32.xlu0 %v792
          %v814 = vpop.xlane.xlu0 %813
          %815 = vmax.xlane.f32.xlu0 %v793
          %v816 = vpop.xlane.xlu0 %815
          %817 = vmax.xlane.f32.xlu0 %v794
          %v818 = vpop.xlane.xlu0 %817
          %819 = vmax.xlane.f32.xlu0 %v795
          %v820 = vpop.xlane.xlu0 %819
          %821 = vmax.xlane.f32.xlu0 %v796
          %v822 = vpop.xlane.xlu0 %821
          %823 = vmax.xlane.f32.xlu0 %v797
          %v824 = vpop.xlane.xlu0 %823
          %825 = vmax.xlane.f32.xlu0 %v798
          %v826 = vpop.xlane.xlu0 %825
          %827 = vmax.xlane.f32.xlu0 %v799
          %v828 = vpop.xlane.xlu0 %827
          %829 = vmax.xlane.f32.xlu0 %v800
          %v830 = vpop.xlane.xlu0 %829
          %831 = vmax.xlane.f32.xlu0 %v801
          %v832 = vpop.xlane.xlu0 %831
          %833 = vmax.xlane.f32.xlu0 %v802
          %v834 = vpop.xlane.xlu0 %833
          %v835 = vsub.f32 %v787, %v804
          %v836 = vsub.f32 %v788, %v806
          %v837 = vsub.f32 %v789, %v808
          %v838 = vsub.f32 %v790, %v810
          %v839 = vsub.f32 %v791, %v812
          %v840 = vsub.f32 %v792, %v814
          %v841 = vsub.f32 %v793, %v816
          %v842 = vsub.f32 %v794, %v818
          %v843 = vsub.f32 %v795, %v820
          %v844 = vsub.f32 %v796, %v822
          %v845 = vsub.f32 %v797, %v824
          %v846 = vsub.f32 %v798, %v826
          %v847 = vsub.f32 %v799, %v828
          %v848 = vsub.f32 %v800, %v830
          %v849 = vsub.f32 %v801, %v832
          %v850 = vsub.f32 %v802, %v834
          %v851 = vmul.f32 %v835, 1.442695
          %v852 = vpow.pop %v851
          %v853 = vmul.f32 %v836, 1.442695
          %v854 = vpow.pop %v853
          %v855 = vmul.f32 %v837, 1.442695
          %v856 = vpow.pop %v855
          %v857 = vmul.f32 %v838, 1.442695
          %v858 = vpow.pop %v857
          %v859 = vmul.f32 %v839, 1.442695
          %v860 = vpow.pop %v859
          %v861 = vmul.f32 %v840, 1.442695
          %v862 = vpow.pop %v861
          %v863 = vmul.f32 %v841, 1.442695
          %v864 = vpow.pop %v863
          %v865 = vmul.f32 %v842, 1.442695
          %v866 = vpow.pop %v865
          %v867 = vmul.f32 %v843, 1.442695
          %v868 = vpow.pop %v867
          %v869 = vmul.f32 %v844, 1.442695
          %v870 = vpow.pop %v869
          %v871 = vmul.f32 %v845, 1.442695
          %v872 = vpow.pop %v871
          %v873 = vmul.f32 %v846, 1.442695
          %v874 = vpow.pop %v873
          %v875 = vmul.f32 %v847, 1.442695
          %v876 = vpow.pop %v875
          %v877 = vmul.f32 %v848, 1.442695
          %v878 = vpow.pop %v877
          %v879 = vmul.f32 %v849, 1.442695
          %v880 = vpow.pop %v879
          %v881 = vmul.f32 %v850, 1.442695
          %v882 = vpow.pop %v881
          %883 = vadd.xlane.f32.xlu0 %v852
          %v884 = vpop.xlane.xlu0 %883
          %885 = vadd.xlane.f32.xlu0 %v854
          %v886 = vpop.xlane.xlu0 %885
          %887 = vadd.xlane.f32.xlu0 %v856
          %v888 = vpop.xlane.xlu0 %887
          %889 = vadd.xlane.f32.xlu0 %v858
          %v890 = vpop.xlane.xlu0 %889
          %891 = vadd.xlane.f32.xlu0 %v860
          %v892 = vpop.xlane.xlu0 %891
          %893 = vadd.xlane.f32.xlu0 %v862
          %v894 = vpop.xlane.xlu0 %893
          %895 = vadd.xlane.f32.xlu0 %v864
          %v896 = vpop.xlane.xlu0 %895
          %897 = vadd.xlane.f32.xlu0 %v866
          %v898 = vpop.xlane.xlu0 %897
          %899 = vadd.xlane.f32.xlu0 %v868
          %v900 = vpop.xlane.xlu0 %899
          %901 = vadd.xlane.f32.xlu0 %v870
          %v902 = vpop.xlane.xlu0 %901
          %903 = vadd.xlane.f32.xlu0 %v872
          %v904 = vpop.xlane.xlu0 %903
          %905 = vadd.xlane.f32.xlu0 %v874
          %v906 = vpop.xlane.xlu0 %905
          %907 = vadd.xlane.f32.xlu0 %v876
          %v908 = vpop.xlane.xlu0 %907
          %909 = vadd.xlane.f32.xlu0 %v878
          %v910 = vpop.xlane.xlu0 %909
          %911 = vadd.xlane.f32.xlu0 %v880
          %v912 = vpop.xlane.xlu0 %911
          %913 = vadd.xlane.f32.xlu0 %v882
          %v914 = vpop.xlane.xlu0 %913
          %v915 = vlog2.pop %v884
          %v916 = vmul.f32 %v915, 0.6931472
          %v917 = vlog2.pop %v886
          %v918 = vmul.f32 %v917, 0.6931472
          %v919 = vlog2.pop %v888
          %v920 = vmul.f32 %v919, 0.6931472
          %v921 = vlog2.pop %v890
          %v922 = vmul.f32 %v921, 0.6931472
          %v923 = vlog2.pop %v892
          %v924 = vmul.f32 %v923, 0.6931472
          %v925 = vlog2.pop %v894
          %v926 = vmul.f32 %v925, 0.6931472
          %v927 = vlog2.pop %v896
          %v928 = vmul.f32 %v927, 0.6931472
          %v929 = vlog2.pop %v898
          %v930 = vmul.f32 %v929, 0.6931472
          %v931 = vlog2.pop %v900
          %v932 = vmul.f32 %v931, 0.6931472
          %v933 = vlog2.pop %v902
          %v934 = vmul.f32 %v933, 0.6931472
          %v935 = vlog2.pop %v904
          %v936 = vmul.f32 %v935, 0.6931472
          %v937 = vlog2.pop %v906
          %v938 = vmul.f32 %v937, 0.6931472
          %v939 = vlog2.pop %v908
          %v940 = vmul.f32 %v939, 0.6931472
          %v941 = vlog2.pop %v910
          %v942 = vmul.f32 %v941, 0.6931472
          %v943 = vlog2.pop %v912
          %v944 = vmul.f32 %v943, 0.6931472
          %v945 = vlog2.pop %v914
          %v946 = vmul.f32 %v945, 0.6931472
          %v947 = vsub.f32 %v835, %v916
          %v948 = vsub.f32 %v836, %v918
          %v949 = vsub.f32 %v837, %v920
          %v950 = vsub.f32 %v838, %v922
          %v951 = vsub.f32 %v839, %v924
          %v952 = vsub.f32 %v840, %v926
          %v953 = vsub.f32 %v841, %v928
          %v954 = vsub.f32 %v842, %v930
          %v955 = vsub.f32 %v843, %v932
          %v956 = vsub.f32 %v844, %v934
          %v957 = vsub.f32 %v845, %v936
          %v958 = vsub.f32 %v846, %v938
          %v959 = vsub.f32 %v847, %v940
          %v960 = vsub.f32 %v848, %v942
          %v961 = vsub.f32 %v849, %v944
          %v962 = vsub.f32 %v850, %v946
          %963 = vst [vmem:[%s332] sm:$0xff] %v947
          %964 = vst [vmem:[%s332 + $0x8] sm:$0xff] %v948
          %965 = vst [vmem:[%s332 + $0x10] sm:$0xff] %v949
          %966 = vst [vmem:[%s332 + $0x18] sm:$0xff] %v950
          %967 = vst [vmem:[%s332 + $0x20] sm:$0xff] %v951
          %968 = vst [vmem:[%s332 + $0x28] sm:$0xff] %v952
          %969 = vst [vmem:[%s332 + $0x30] sm:$0xff] %v953
          %970 = vst [vmem:[%s332 + $0x38] sm:$0xff] %v954
          %971 = vst [vmem:[%s332 + $0x40] sm:$0xff] %v955
          %972 = vst [vmem:[%s332 + $0x48] sm:$0xff] %v956
          %973 = vst [vmem:[%s332 + $0x50] sm:$0xff] %v957
          %974 = vst [vmem:[%s332 + $0x58] sm:$0xff] %v958
          %975 = vst [vmem:[%s332 + $0x60] sm:$0xff] %v959
          %976 = vst [vmem:[%s332 + $0x68] sm:$0xff] %v960
          %977 = vst [vmem:[%s332 + $0x70] sm:$0xff] %v961
          %978 = vst [vmem:[%s332 + $0x78] sm:$0xff] %v962
        $region86: #{reweighted_gcn_forward.13} parent=73 // pred_fallthru
          _
        %s979 = smul.u32 16, %s20
        %p980 = scmp.lt.s32.totalorder %s979, 31
        %s981 = scalar_select %p980, %s979, 31
        %s982 = smul.addr %s981, 8
        %s983 = scalar_lea.vmem %s5, %s982
        // Predicated region
        $region87: #{reweighted_gcn_forward.13} parent=73 // pred_check
          %p984 = pneg %p168
        $region88: #{reweighted_gcn_forward.13} parent=73 // pred_check_branch
          %986 = sbr.rel (%p984) target = $region90
        $region89: #{reweighted_gcn_forward.13} parent=73 // pred_region
          %s987 = smul.u32 16, %s20
        $region90: #{reweighted_gcn_forward.13} parent=73 // pred_fallthru
          _
      $region74: #{reweighted_gcn_forward.13} parent=5 // pred_fallthru
        _
      %p988 = scmp.le.s32.totalorder 2, %s11
      // Predicated region
      $region91: #{reweighted_gcn_forward.13} parent=5 // pred_check
        %p989 = pneg %p988
      $region92: #{reweighted_gcn_forward.13} parent=5 // pred_check_branch
        %991 = sbr.rel (%p989) target = $region94
      $region93: #{reweighted_gcn_forward.13} parent=5 // pred_region
        %s992 = ssub.s32 %s11, 2
        // Predicated region
        $region95: #{reweighted_gcn_forward.13} parent=93 // pred_check
          %p993 = pneg %p174
        $region96: #{reweighted_gcn_forward.13} parent=93 // pred_check_branch
          %995 = sbr.rel (%p993) target = $region98
        $region97: #{reweighted_gcn_forward.13} parent=93 // pred_region
          %s996 = smul.u32 16, %s22
          %p997 = scmp.lt.s32.totalorder %s996, 31
          %s998 = scalar_select %p997, %s996, 31
          %s999 = smul.addr %s998, 8
          %s1000 = scalar_lea.vmem %s5, %s999
        $region98: #{reweighted_gcn_forward.13} parent=93 // pred_fallthru
          _
      $region94: #{reweighted_gcn_forward.13} parent=5 // pred_fallthru
        _
    $region6: #{reweighted_gcn_forward.13} parent=1 // loop_footer
      %s15 = sadd.s32 1, %s11
    $region7: #{reweighted_gcn_forward.13} parent=1 // loop_footer_branch
      %10 = sbr.rel target = $region3
    $region8: #{reweighted_gcn_forward.13} parent=1 // loop_exit
      _

</llo_original>
